<compile_context>
chip_gen: v6e
topology: v6e:2x2x1
jax: 0.10.0
libtpu: 0.0.40
codegen_flags: <defaults>
</compile_context>

<pallas_src>
import jax
import jax.numpy as jnp
import numpy as np
from jax.experimental import pallas as pl
from jax.experimental.pallas import tpu as pltpu

# Operand dtype for MXU matmuls (accumulation is always f32 via preferred_element_type).
_MXU_DTYPE = jnp.float32


def _mx(a):
    return a.astype(_MXU_DTYPE)


def _gates_ifog(pre, H):
    """pre: (B, 4H) with gate columns ordered [i, f, o, g] -> one sigmoid + one tanh."""
    sg = jax.nn.sigmoid(pre[:, 0:3 * H])
    g = jnp.tanh(pre[:, 3 * H:4 * H])
    return sg[:, 0:H], sg[:, H:2 * H], sg[:, 2 * H:3 * H], g


# ----------------------------------------------------------------------------
# Kernel: one grid step processes B independent series end-to-end.
# ----------------------------------------------------------------------------
def autoencoder_kernel(x_ref,                                  # (1, B, T)
                       we1_ih_ref, we1_hh_ref, be1_ref,        # encoder rnn1 (1 -> 2E)
                       we2_ih_ref, be2_ref,                    # encoder rnn2 (2E -> E)
                       wd1_ih_ref, b_dec_ref, w_dec_ref,       # fused decoder (see pack_params)
                       wo_ref, bo_ref,                         # head, rows zero-padded to [h1|h2]
                       out_ref):                               # (1, T*B, n_features)
    f32 = jnp.float32
    He = we1_hh_ref.shape[0]        # 2 * embedding_dim
    E = wd1_ih_ref.shape[0]         # embedding_dim
    K = E + He                      # fused decoder state width [h1 | h2]
    B = x_ref.shape[1]              # series per grid step (sublane batch)
    T = x_ref.shape[2]              # seq_len (compile-time constant)

    x_bt = x_ref[0].astype(f32)     # (B, T)

    # ---------------- encoder rnn1 : LSTM(n_features=1 -> 2E) ----------------
    h = jnp.zeros((B, He), f32)
    c = jnp.zeros((B, He), f32)
    for t in range(T):                                          # fully unrolled
        pre = (x_bt[:, t:t + 1] * we1_ih_ref[...] + be1_ref[...]
               + jnp.dot(_mx(h), _mx(we1_hh_ref[...]), preferred_element_type=f32))
        i, f, o, g = _gates_ifog(pre, He)
        c = f * c + i * g
        h = o * jnp.tanh(c)

    # ---------------- encoder rnn2 : exactly ONE step from a zero state ------
    # zero initial state + single step  =>  h_prev @ W_hh == 0  and  c_new = i * g.
    pre = jnp.dot(_mx(h), _mx(we2_ih_ref[...]), preferred_element_type=f32) + be2_ref[...]
    i, f, o, g = _gates_ifog(pre, E)
    lat = o * jnp.tanh(i * g)                                   # latent, (B, E)

    # ---------------- decoder : skew-fused two-layer LSTM --------------------
    # Loop-invariant input+bias row, already in the fused column order.
    add_row = (jnp.dot(_mx(lat), _mx(wd1_ih_ref[...]), preferred_element_type=f32)
               + b_dec_ref[...])                                # (B, 4K)

    # Peeled super-step 0: s == 0, so m == add_row; only layer-1 columns matter.
    i1 = jax.nn.sigmoid(add_row[:, 0:E])
    o1 = jax.nn.sigmoid(add_row[:, 2 * K:2 * K + E])
    g1 = jnp.tanh(add_row[:, 3 * K:3 * K + E])
    c1 = i1 * g1                                                # c1_{-1} == 0
    h1 = o1 * jnp.tanh(c1)
    z2 = jnp.zeros((B, He), f32)
    s = jnp.concatenate([h1, z2], axis=1)                       # [h1_0 | h2_{-1}=0]
    cc = jnp.concatenate([c1, z2], axis=1)                      # [c1_0 | c2_{-1}=0]

    # Super-steps 1..T: ONE matmul + ONE sigmoid slab + ONE tanh slab update BOTH
    # layers at once; s after step t is [h1_t | h2_{t-1}] = next matmul's LHS.
    s_rows = []
    for t in range(1, T + 1):                                   # fully unrolled
        m = (jnp.dot(_mx(s), _mx(w_dec_ref[...]), preferred_element_type=f32)
             + add_row)                                         # (B, 4K)
        sg = jax.nn.sigmoid(m[:, 0:3 * K])
        gg = jnp.tanh(m[:, 3 * K:4 * K])
        cc = sg[:, K:2 * K] * cc + sg[:, 0:K] * gg
        s = sg[:, 2 * K:3 * K] * jnp.tanh(cc)
        s_rows.append(s)                                        # layer-2 half is h2_{t-1}

    # ---------------- linear head, once, after the recurrence ----------------
    # wo_ref rows [0, E) are zero, so only the h2 half of each state row contributes.
    s_all = jnp.concatenate(s_rows, axis=0)                     # (T*B, K), row = t*B + b
    y = jnp.dot(_mx(s_all), _mx(wo_ref[...]), preferred_element_type=f32) + bo_ref[...]
    out_ref[0] = y.astype(out_ref.dtype)


# ----------------------------------------------------------------------------
# Host wrapper: N series per call, B series per grid step.
# ----------------------------------------------------------------------------
def autoencoder_forward(x, kp, seq_len, n_features, embedding_dim, series_per_block=8):
    """x: (N, seq_len, n_features) independent series -> (N, seq_len, n_features)."""
    assert n_features == 1, "module forward only makes sense for n_features == 1"
    N = x.shape[0]
    B = series_per_block
    assert N % B == 0, "N must be a multiple of series_per_block"
    G = N // B                                   # grid steps ("parallel" -> v7x 2nd TC)
    T = seq_len

    x_g = x.reshape(N, T).astype(jnp.float32).reshape(G, B, T)
    weights = (kp["We1_ih"], kp["We1_hh"], kp["be1"],
               kp["We2_ih"], kp["be2"],
               kp["Wd1_ih_f"], kp["b_dec_f"], kp["W_dec"],
               kp["W_out_pad"], kp["b_out"])

    def full_spec(a):                            # whole array, same block every grid step
        return pl.BlockSpec(a.shape, lambda g: (0,) * a.ndim)

    out = pl.pallas_call(
        autoencoder_kernel,
        out_shape=jax.ShapeDtypeStruct((G, T * B, n_features), jnp.float32),
        grid=(G,),
        in_specs=[pl.BlockSpec((1, B, T), lambda g: (g, 0, 0))]
                 + [full_spec(w) for w in weights],
        out_specs=pl.BlockSpec((1, T * B, n_features), lambda g: (g, 0, 0)),
        compiler_params=pltpu.CompilerParams(dimension_semantics=("parallel",)),
    )(x_g, *weights)

    # (G, T*B, nf) with row t*B + b  ->  (N, T, nf)
    return out.reshape(G, T, B, n_features).transpose(0, 2, 1, 3).reshape(N, T, n_features)


# ----------------------------------------------------------------------------
# Parameters: PyTorch-equivalent layout (pre-transposed (in, 4H), torch gate order
# [i,f,g,o], fused bias b_ih+b_hh) + packing into the kernel's fused layouts.
# ----------------------------------------------------------------------------
def init_params(key, n_features, embedding_dim):
    E = embedding_dim
    He = 2 * E
    ks = jax.random.split(key, 14)
    u = lambda k, shape, h: jax.random.uniform(
        k, shape, jnp.float32, -1.0 / np.sqrt(h), 1.0 / np.sqrt(h))
    return {
        # encoder rnn1: LSTM(n_features -> 2E)
        "We1_ih": u(ks[0], (n_features, 4 * He), He),
        "We1_hh": u(ks[1], (He, 4 * He), He),
        "be1":    u(ks[2], (1, 4 * He), He),
        # encoder rnn2: LSTM(2E -> E)   (W_hh contributes zero: zero state, 1 step)
        "We2_ih": u(ks[3], (He, 4 * E), E),
        "We2_hh": u(ks[4], (E, 4 * E), E),
        "be2":    u(ks[5], (1, 4 * E), E),
        # decoder rnn1: LSTM(E -> E)
        "Wd1_ih": u(ks[6], (E, 4 * E), E),
        "Wd1_hh": u(ks[7], (E, 4 * E), E),
        "bd1":    u(ks[8], (1, 4 * E), E),
        # decoder rnn2: LSTM(E -> 2E)
        "Wd2_ih": u(ks[9], (E, 4 * He), He),
        "Wd2_hh": u(ks[10], (He, 4 * He), He),
        "bd2":    u(ks[11], (1, 4 * He), He),
        # output head: Linear(2E -> n_features)
        "W_out":  u(ks[12], (He, n_features), He),
        "b_out":  u(ks[13], (1, n_features), He),
    }


def _split_ifgo(w, H):
    """Split the last dim (4H, torch order) into (i, f, g, o)."""
    return w[..., 0:H], w[..., H:2 * H], w[..., 2 * H:3 * H], w[..., 3 * H:4 * H]


def _reorder_ifgo_to_ifog(w, H):
    i, f, g, o = _split_ifgo(w, H)
    return jnp.concatenate([i, f, o, g], axis=-1)


def pack_params(p, embedding_dim, n_features):
    E = embedding_dim
    He = 2 * E
    f32 = jnp.float32

    # decoder layer-1 (E-wide gates) and layer-2 (He-wide gates) pieces
    i1h, f1h, g1h, o1h = _split_ifgo(p["Wd1_hh"], E)       # (E, E)
    i1x, f1x, g1x, o1x = _split_ifgo(p["Wd1_ih"], E)       # (E, E)
    bi1, bf1, bg1, bo1 = _split_ifgo(p["bd1"], E)          # (1, E)
    i2x, f2x, g2x, o2x = _split_ifgo(p["Wd2_ih"], He)      # (E, He)
    i2h, f2h, g2h, o2h = _split_ifgo(p["Wd2_hh"], He)      # (He, He)
    bi2, bf2, bg2, bo2 = _split_ifgo(p["bd2"], He)         # (1, He)

    zE = jnp.zeros((He, E), f32)   # layer-1 columns get no h2 contribution
    zX = jnp.zeros((E, He), f32)   # layer-2 columns get no latent-input contribution

    # Fused recurrent weight: rows [h1 | h2], cols [i1 i2 | f1 f2 | o1 o2 | g1 g2].
    W_dec = jnp.concatenate([
        jnp.concatenate([i1h, i2x, f1h, f2x, o1h, o2x, g1h, g2x], axis=1),   # top E rows
        jnp.concatenate([zE,  i2h, zE,  f2h, zE,  o2h, zE,  g2h], axis=1),   # bottom He rows
    ], axis=0)                                                               # (E+He, 4(E+He))
    # Latent-input weight and fused bias in the same column order.
    Wd1_ih_f = jnp.concatenate([i1x, zX, f1x, zX, o1x, zX, g1x, zX], axis=1)  # (E, 4(E+He))
    b_dec_f = jnp.concatenate([bi1, bi2, bf1, bf2, bo1, bo2, bg1, bg2], axis=1)

    return {
        "We1_ih": _reorder_ifgo_to_ifog(p["We1_ih"], He),
        "We1_hh": _reorder_ifgo_to_ifog(p["We1_hh"], He),
        "be1":    _reorder_ifgo_to_ifog(p["be1"], He),
        "We2_ih": _reorder_ifgo_to_ifog(p["We2_ih"], E),
        "be2":    _reorder_ifgo_to_ifog(p["be2"], E),
        "W_dec": W_dec, "Wd1_ih_f": Wd1_ih_f, "b_dec_f": b_dec_f,
        # Head weight zero-padded to the [h1 | h2] row width (h1 rows contribute 0).
        "W_out_pad": jnp.concatenate(
            [jnp.zeros((E, n_features), f32), p["W_out"]], axis=0),
        "b_out": p["b_out"],
    }


# ----------------------------------------------------------------------------
# Plain-JAX single-series reference (standard torch [i,f,g,o] layout)
# ----------------------------------------------------------------------------
def _lstm_ref(xs, W_ih, W_hh, b, H):
    T = xs.shape[0]
    h = jnp.zeros((H,), jnp.float32)
    c = jnp.zeros((H,), jnp.float32)
    outs = []
    for t in range(T):
        pre = xs[t] @ W_ih + h @ W_hh + b
        i = jax.nn.sigmoid(pre[0:H])
        f = jax.nn.sigmoid(pre[H:2 * H])
        g = jnp.tanh(pre[2 * H:3 * H])
        o = jax.nn.sigmoid(pre[3 * H:4 * H])
        c = f * c + i * g
        h = o * jnp.tanh(c)
        outs.append(h)
    return jnp.stack(outs), h


def autoencoder_ref(x, p, seq_len, n_features, embedding_dim):
    E = embedding_dim
    He = 2 * E
    xs = x.reshape(seq_len, n_features)
    _, h_e1 = _lstm_ref(xs, p["We1_ih"], p["We1_hh"], p["be1"][0], He)
    _, lat = _lstm_ref(h_e1[None, :], p["We2_ih"], p["We2_hh"], p["be2"][0], E)
    xs_d = jnp.tile(lat[None, :], (seq_len, 1))                  # x.repeat(seq_len, 1)
    h1_seq, _ = _lstm_ref(xs_d, p["Wd1_ih"], p["Wd1_hh"], p["bd1"][0], E)
    h2_seq, _ = _lstm_ref(h1_seq, p["Wd2_ih"], p["Wd2_hh"], p["bd2"][0], He)
    return h2_seq @ p["W_out"] + p["b_out"][0]                   # (T, n_features)


# ----------------------------------------------------------------------------
if __name__ == "__main__":
    seq_len, n_features, embedding_dim = 8, 1, 32
    n_series = 16                       # 2 grid steps x 8 series per sublane batch
    key = jax.random.PRNGKey(0)
    kx, kp_key = jax.random.split(key)

    x = jax.random.normal(kx, (n_series, seq_len, n_features), dtype=jnp.float32)
    params = init_params(kp_key, n_features, embedding_dim)
    kparams = pack_params(params, embedding_dim, n_features)

    out = autoencoder_forward(x, kparams, seq_len, n_features, embedding_dim)
    out = jax.block_until_ready(out)
    assert out.shape == (n_series, seq_len, n_features), out.shape

    ref_single = lambda xs: autoencoder_ref(xs, params, seq_len, n_features, embedding_dim)
    ref = jax.jit(jax.vmap(ref_single))(x)
    np.testing.assert_allclose(np.asarray(out), np.asarray(ref), rtol=5e-3, atol=5e-3)

    print("KERNEL_OK")
</pallas_src>

<mosaic_0001>
module attributes {stable_mosaic.version = 11 : i64} {
  func.func @autoencoder_kernel(%arg0: i32, %arg1: memref<1x8x8xf32, #tpu.memory_space<vmem>>, %arg2: memref<1x256xf32, #tpu.memory_space<vmem>>, %arg3: memref<64x256xf32, #tpu.memory_space<vmem>>, %arg4: memref<1x256xf32, #tpu.memory_space<vmem>>, %arg5: memref<64x128xf32, #tpu.memory_space<vmem>>, %arg6: memref<1x128xf32, #tpu.memory_space<vmem>>, %arg7: memref<32x384xf32, #tpu.memory_space<vmem>>, %arg8: memref<1x384xf32, #tpu.memory_space<vmem>>, %arg9: memref<96x384xf32, #tpu.memory_space<vmem>>, %arg10: memref<96x1xf32, #tpu.memory_space<vmem>>, %arg11: memref<1x1xf32, #tpu.memory_space<vmem>>, %arg12: memref<1x64x1xf32, #tpu.memory_space<vmem>>) attributes {dimension_semantics = [#tpu.dimension_semantics<parallel>], iteration_bounds = array<i64: 2>, scalar_prefetch = 0 : i64, scratch_operands = 0 : i64, tpu.core_type = #tpu.core_type<tc>, window_params = [{transform_indices = @transform_0, window_bounds = array<i64: 1, 8, 8>}, {pipeline_mode = #tpu.pipeline_mode<synchronous>, transform_indices = @transform_1, window_bounds = array<i64: 1, 256>}, {pipeline_mode = #tpu.pipeline_mode<synchronous>, transform_indices = @transform_2, window_bounds = array<i64: 64, 256>}, {pipeline_mode = #tpu.pipeline_mode<synchronous>, transform_indices = @transform_3, window_bounds = array<i64: 1, 256>}, {pipeline_mode = #tpu.pipeline_mode<synchronous>, transform_indices = @transform_4, window_bounds = array<i64: 64, 128>}, {pipeline_mode = #tpu.pipeline_mode<synchronous>, transform_indices = @transform_5, window_bounds = array<i64: 1, 128>}, {pipeline_mode = #tpu.pipeline_mode<synchronous>, transform_indices = @transform_6, window_bounds = array<i64: 32, 384>}, {pipeline_mode = #tpu.pipeline_mode<synchronous>, transform_indices = @transform_7, window_bounds = array<i64: 1, 384>}, {pipeline_mode = #tpu.pipeline_mode<synchronous>, transform_indices = @transform_8, window_bounds = array<i64: 96, 384>}, {pipeline_mode = #tpu.pipeline_mode<synchronous>, transform_indices = @transform_9, window_bounds = array<i64: 96, 1>}, {pipeline_mode = #tpu.pipeline_mode<synchronous>, transform_indices = @transform_10, window_bounds = array<i64: 1, 1>}, {transform_indices = @transform_11, window_bounds = array<i64: 1, 64, 1>}]} {
    %c0 = arith.constant 0 : index
    %c0_0 = arith.constant 0 : index
    %c0_1 = arith.constant 0 : index
    %0 = vector.load %arg1[%c0, %c0_0, %c0_1] : memref<1x8x8xf32, #tpu.memory_space<vmem>>, vector<1x8x8xf32>
    %1 = vector.shape_cast %0 : vector<1x8x8xf32> to vector<8x8xf32>
    %cst = arith.constant 0.000000e+00 : f32
    %2 = vector.broadcast %cst : f32 to vector<8x64xf32>
    %cst_2 = arith.constant 0.000000e+00 : f32
    %3 = vector.broadcast %cst_2 : f32 to vector<8x64xf32>
    %4 = vector.extract_strided_slice %1 {offsets = [0, 0], sizes = [8, 1], strides = [1, 1]} : vector<8x8xf32> to vector<8x1xf32>
    %c0_3 = arith.constant 0 : index
    %c0_4 = arith.constant 0 : index
    %5 = vector.load %arg2[%c0_3, %c0_4] : memref<1x256xf32, #tpu.memory_space<vmem>>, vector<1x256xf32>
    %6 = vector.broadcast %4 : vector<8x1xf32> to vector<8x256xf32>
    %7 = vector.broadcast %5 : vector<1x256xf32> to vector<8x256xf32>
    %8 = arith.mulf %6, %7 : vector<8x256xf32>
    %c0_5 = arith.constant 0 : index
    %c0_6 = arith.constant 0 : index
    %9 = vector.load %arg4[%c0_5, %c0_6] : memref<1x256xf32, #tpu.memory_space<vmem>>, vector<1x256xf32>
    %10 = vector.broadcast %9 : vector<1x256xf32> to vector<8x256xf32>
    %11 = arith.addf %8, %10 : vector<8x256xf32>
    %c0_7 = arith.constant 0 : index
    %c0_8 = arith.constant 0 : index
    %12 = vector.load %arg3[%c0_7, %c0_8] : memref<64x256xf32, #tpu.memory_space<vmem>>, vector<64x256xf32>
    %cst_9 = arith.constant dense<0.000000e+00> : vector<8x256xf32>
    %13 = tpu.matmul %2, %12, %cst_9 {dimension_numbers = #tpu.dot_dimension_numbers<[1], [0], [0], [1], [0, 0, 1, 1], [], []>} : vector<8x64xf32>, vector<64x256xf32>, vector<8x256xf32> -> vector<8x256xf32>
    %14 = arith.addf %11, %13 : vector<8x256xf32>
    %15 = vector.extract_strided_slice %14 {offsets = [0, 0], sizes = [8, 192], strides = [1, 1]} : vector<8x256xf32> to vector<8x192xf32>
    %16 = arith.negf %15 : vector<8x192xf32>
    %17 = math.exp %16 : vector<8x192xf32>
    %cst_10 = arith.constant 1.000000e+00 : f32
    %18 = vector.broadcast %cst_10 : f32 to vector<8x192xf32>
    %19 = arith.addf %18, %17 : vector<8x192xf32>
    %20 = arith.divf %18, %19 : vector<8x192xf32>
    %21 = vector.extract_strided_slice %14 {offsets = [0, 192], sizes = [8, 64], strides = [1, 1]} : vector<8x256xf32> to vector<8x64xf32>
    %22 = math.tanh %21 : vector<8x64xf32>
    %23 = vector.extract_strided_slice %20 {offsets = [0, 0], sizes = [8, 64], strides = [1, 1]} : vector<8x192xf32> to vector<8x64xf32>
    %24 = vector.extract_strided_slice %20 {offsets = [0, 64], sizes = [8, 64], strides = [1, 1]} : vector<8x192xf32> to vector<8x64xf32>
    %25 = vector.extract_strided_slice %20 {offsets = [0, 128], sizes = [8, 64], strides = [1, 1]} : vector<8x192xf32> to vector<8x64xf32>
    %26 = arith.mulf %24, %3 : vector<8x64xf32>
    %27 = arith.mulf %23, %22 : vector<8x64xf32>
    %28 = arith.addf %26, %27 : vector<8x64xf32>
    %29 = math.tanh %28 : vector<8x64xf32>
    %30 = arith.mulf %25, %29 : vector<8x64xf32>
    %31 = vector.extract_strided_slice %1 {offsets = [0, 1], sizes = [8, 1], strides = [1, 1]} : vector<8x8xf32> to vector<8x1xf32>
    %c0_11 = arith.constant 0 : index
    %c0_12 = arith.constant 0 : index
    %32 = vector.load %arg2[%c0_11, %c0_12] : memref<1x256xf32, #tpu.memory_space<vmem>>, vector<1x256xf32>
    %33 = vector.broadcast %31 : vector<8x1xf32> to vector<8x256xf32>
    %34 = vector.broadcast %32 : vector<1x256xf32> to vector<8x256xf32>
    %35 = arith.mulf %33, %34 : vector<8x256xf32>
    %c0_13 = arith.constant 0 : index
    %c0_14 = arith.constant 0 : index
    %36 = vector.load %arg4[%c0_13, %c0_14] : memref<1x256xf32, #tpu.memory_space<vmem>>, vector<1x256xf32>
    %37 = vector.broadcast %36 : vector<1x256xf32> to vector<8x256xf32>
    %38 = arith.addf %35, %37 : vector<8x256xf32>
    %c0_15 = arith.constant 0 : index
    %c0_16 = arith.constant 0 : index
    %39 = vector.load %arg3[%c0_15, %c0_16] : memref<64x256xf32, #tpu.memory_space<vmem>>, vector<64x256xf32>
    %cst_17 = arith.constant dense<0.000000e+00> : vector<8x256xf32>
    %40 = tpu.matmul %30, %39, %cst_17 {dimension_numbers = #tpu.dot_dimension_numbers<[1], [0], [0], [1], [0, 0, 1, 1], [], []>} : vector<8x64xf32>, vector<64x256xf32>, vector<8x256xf32> -> vector<8x256xf32>
    %41 = arith.addf %38, %40 : vector<8x256xf32>
    %42 = vector.extract_strided_slice %41 {offsets = [0, 0], sizes = [8, 192], strides = [1, 1]} : vector<8x256xf32> to vector<8x192xf32>
    %43 = arith.negf %42 : vector<8x192xf32>
    %44 = math.exp %43 : vector<8x192xf32>
    %cst_18 = arith.constant 1.000000e+00 : f32
    %45 = vector.broadcast %cst_18 : f32 to vector<8x192xf32>
    %46 = arith.addf %45, %44 : vector<8x192xf32>
    %47 = arith.divf %45, %46 : vector<8x192xf32>
    %48 = vector.extract_strided_slice %41 {offsets = [0, 192], sizes = [8, 64], strides = [1, 1]} : vector<8x256xf32> to vector<8x64xf32>
    %49 = math.tanh %48 : vector<8x64xf32>
    %50 = vector.extract_strided_slice %47 {offsets = [0, 0], sizes = [8, 64], strides = [1, 1]} : vector<8x192xf32> to vector<8x64xf32>
    %51 = vector.extract_strided_slice %47 {offsets = [0, 64], sizes = [8, 64], strides = [1, 1]} : vector<8x192xf32> to vector<8x64xf32>
    %52 = vector.extract_strided_slice %47 {offsets = [0, 128], sizes = [8, 64], strides = [1, 1]} : vector<8x192xf32> to vector<8x64xf32>
    %53 = arith.mulf %51, %28 : vector<8x64xf32>
    %54 = arith.mulf %50, %49 : vector<8x64xf32>
    %55 = arith.addf %53, %54 : vector<8x64xf32>
    %56 = math.tanh %55 : vector<8x64xf32>
    %57 = arith.mulf %52, %56 : vector<8x64xf32>
    %58 = vector.extract_strided_slice %1 {offsets = [0, 2], sizes = [8, 1], strides = [1, 1]} : vector<8x8xf32> to vector<8x1xf32>
    %c0_19 = arith.constant 0 : index
    %c0_20 = arith.constant 0 : index
    %59 = vector.load %arg2[%c0_19, %c0_20] : memref<1x256xf32, #tpu.memory_space<vmem>>, vector<1x256xf32>
    %60 = vector.broadcast %58 : vector<8x1xf32> to vector<8x256xf32>
    %61 = vector.broadcast %59 : vector<1x256xf32> to vector<8x256xf32>
    %62 = arith.mulf %60, %61 : vector<8x256xf32>
    %c0_21 = arith.constant 0 : index
    %c0_22 = arith.constant 0 : index
    %63 = vector.load %arg4[%c0_21, %c0_22] : memref<1x256xf32, #tpu.memory_space<vmem>>, vector<1x256xf32>
    %64 = vector.broadcast %63 : vector<1x256xf32> to vector<8x256xf32>
    %65 = arith.addf %62, %64 : vector<8x256xf32>
    %c0_23 = arith.constant 0 : index
    %c0_24 = arith.constant 0 : index
    %66 = vector.load %arg3[%c0_23, %c0_24] : memref<64x256xf32, #tpu.memory_space<vmem>>, vector<64x256xf32>
    %cst_25 = arith.constant dense<0.000000e+00> : vector<8x256xf32>
    %67 = tpu.matmul %57, %66, %cst_25 {dimension_numbers = #tpu.dot_dimension_numbers<[1], [0], [0], [1], [0, 0, 1, 1], [], []>} : vector<8x64xf32>, vector<64x256xf32>, vector<8x256xf32> -> vector<8x256xf32>
    %68 = arith.addf %65, %67 : vector<8x256xf32>
    %69 = vector.extract_strided_slice %68 {offsets = [0, 0], sizes = [8, 192], strides = [1, 1]} : vector<8x256xf32> to vector<8x192xf32>
    %70 = arith.negf %69 : vector<8x192xf32>
    %71 = math.exp %70 : vector<8x192xf32>
    %cst_26 = arith.constant 1.000000e+00 : f32
    %72 = vector.broadcast %cst_26 : f32 to vector<8x192xf32>
    %73 = arith.addf %72, %71 : vector<8x192xf32>
    %74 = arith.divf %72, %73 : vector<8x192xf32>
    %75 = vector.extract_strided_slice %68 {offsets = [0, 192], sizes = [8, 64], strides = [1, 1]} : vector<8x256xf32> to vector<8x64xf32>
    %76 = math.tanh %75 : vector<8x64xf32>
    %77 = vector.extract_strided_slice %74 {offsets = [0, 0], sizes = [8, 64], strides = [1, 1]} : vector<8x192xf32> to vector<8x64xf32>
    %78 = vector.extract_strided_slice %74 {offsets = [0, 64], sizes = [8, 64], strides = [1, 1]} : vector<8x192xf32> to vector<8x64xf32>
    %79 = vector.extract_strided_slice %74 {offsets = [0, 128], sizes = [8, 64], strides = [1, 1]} : vector<8x192xf32> to vector<8x64xf32>
    %80 = arith.mulf %78, %55 : vector<8x64xf32>
    %81 = arith.mulf %77, %76 : vector<8x64xf32>
    %82 = arith.addf %80, %81 : vector<8x64xf32>
    %83 = math.tanh %82 : vector<8x64xf32>
    %84 = arith.mulf %79, %83 : vector<8x64xf32>
    %85 = vector.extract_strided_slice %1 {offsets = [0, 3], sizes = [8, 1], strides = [1, 1]} : vector<8x8xf32> to vector<8x1xf32>
    %c0_27 = arith.constant 0 : index
    %c0_28 = arith.constant 0 : index
    %86 = vector.load %arg2[%c0_27, %c0_28] : memref<1x256xf32, #tpu.memory_space<vmem>>, vector<1x256xf32>
    %87 = vector.broadcast %85 : vector<8x1xf32> to vector<8x256xf32>
    %88 = vector.broadcast %86 : vector<1x256xf32> to vector<8x256xf32>
    %89 = arith.mulf %87, %88 : vector<8x256xf32>
    %c0_29 = arith.constant 0 : index
    %c0_30 = arith.constant 0 : index
    %90 = vector.load %arg4[%c0_29, %c0_30] : memref<1x256xf32, #tpu.memory_space<vmem>>, vector<1x256xf32>
    %91 = vector.broadcast %90 : vector<1x256xf32> to vector<8x256xf32>
    %92 = arith.addf %89, %91 : vector<8x256xf32>
    %c0_31 = arith.constant 0 : index
    %c0_32 = arith.constant 0 : index
    %93 = vector.load %arg3[%c0_31, %c0_32] : memref<64x256xf32, #tpu.memory_space<vmem>>, vector<64x256xf32>
    %cst_33 = arith.constant dense<0.000000e+00> : vector<8x256xf32>
    %94 = tpu.matmul %84, %93, %cst_33 {dimension_numbers = #tpu.dot_dimension_numbers<[1], [0], [0], [1], [0, 0, 1, 1], [], []>} : vector<8x64xf32>, vector<64x256xf32>, vector<8x256xf32> -> vector<8x256xf32>
    %95 = arith.addf %92, %94 : vector<8x256xf32>
    %96 = vector.extract_strided_slice %95 {offsets = [0, 0], sizes = [8, 192], strides = [1, 1]} : vector<8x256xf32> to vector<8x192xf32>
    %97 = arith.negf %96 : vector<8x192xf32>
    %98 = math.exp %97 : vector<8x192xf32>
    %cst_34 = arith.constant 1.000000e+00 : f32
    %99 = vector.broadcast %cst_34 : f32 to vector<8x192xf32>
    %100 = arith.addf %99, %98 : vector<8x192xf32>
    %101 = arith.divf %99, %100 : vector<8x192xf32>
    %102 = vector.extract_strided_slice %95 {offsets = [0, 192], sizes = [8, 64], strides = [1, 1]} : vector<8x256xf32> to vector<8x64xf32>
    %103 = math.tanh %102 : vector<8x64xf32>
    %104 = vector.extract_strided_slice %101 {offsets = [0, 0], sizes = [8, 64], strides = [1, 1]} : vector<8x192xf32> to vector<8x64xf32>
    %105 = vector.extract_strided_slice %101 {offsets = [0, 64], sizes = [8, 64], strides = [1, 1]} : vector<8x192xf32> to vector<8x64xf32>
    %106 = vector.extract_strided_slice %101 {offsets = [0, 128], sizes = [8, 64], strides = [1, 1]} : vector<8x192xf32> to vector<8x64xf32>
    %107 = arith.mulf %105, %82 : vector<8x64xf32>
    %108 = arith.mulf %104, %103 : vector<8x64xf32>
    %109 = arith.addf %107, %108 : vector<8x64xf32>
    %110 = math.tanh %109 : vector<8x64xf32>
    %111 = arith.mulf %106, %110 : vector<8x64xf32>
    %112 = vector.extract_strided_slice %1 {offsets = [0, 4], sizes = [8, 1], strides = [1, 1]} : vector<8x8xf32> to vector<8x1xf32>
    %c0_35 = arith.constant 0 : index
    %c0_36 = arith.constant 0 : index
    %113 = vector.load %arg2[%c0_35, %c0_36] : memref<1x256xf32, #tpu.memory_space<vmem>>, vector<1x256xf32>
    %114 = vector.broadcast %112 : vector<8x1xf32> to vector<8x256xf32>
    %115 = vector.broadcast %113 : vector<1x256xf32> to vector<8x256xf32>
    %116 = arith.mulf %114, %115 : vector<8x256xf32>
    %c0_37 = arith.constant 0 : index
    %c0_38 = arith.constant 0 : index
    %117 = vector.load %arg4[%c0_37, %c0_38] : memref<1x256xf32, #tpu.memory_space<vmem>>, vector<1x256xf32>
    %118 = vector.broadcast %117 : vector<1x256xf32> to vector<8x256xf32>
    %119 = arith.addf %116, %118 : vector<8x256xf32>
    %c0_39 = arith.constant 0 : index
    %c0_40 = arith.constant 0 : index
    %120 = vector.load %arg3[%c0_39, %c0_40] : memref<64x256xf32, #tpu.memory_space<vmem>>, vector<64x256xf32>
    %cst_41 = arith.constant dense<0.000000e+00> : vector<8x256xf32>
    %121 = tpu.matmul %111, %120, %cst_41 {dimension_numbers = #tpu.dot_dimension_numbers<[1], [0], [0], [1], [0, 0, 1, 1], [], []>} : vector<8x64xf32>, vector<64x256xf32>, vector<8x256xf32> -> vector<8x256xf32>
    %122 = arith.addf %119, %121 : vector<8x256xf32>
    %123 = vector.extract_strided_slice %122 {offsets = [0, 0], sizes = [8, 192], strides = [1, 1]} : vector<8x256xf32> to vector<8x192xf32>
    %124 = arith.negf %123 : vector<8x192xf32>
    %125 = math.exp %124 : vector<8x192xf32>
    %cst_42 = arith.constant 1.000000e+00 : f32
    %126 = vector.broadcast %cst_42 : f32 to vector<8x192xf32>
    %127 = arith.addf %126, %125 : vector<8x192xf32>
    %128 = arith.divf %126, %127 : vector<8x192xf32>
    %129 = vector.extract_strided_slice %122 {offsets = [0, 192], sizes = [8, 64], strides = [1, 1]} : vector<8x256xf32> to vector<8x64xf32>
    %130 = math.tanh %129 : vector<8x64xf32>
    %131 = vector.extract_strided_slice %128 {offsets = [0, 0], sizes = [8, 64], strides = [1, 1]} : vector<8x192xf32> to vector<8x64xf32>
    %132 = vector.extract_strided_slice %128 {offsets = [0, 64], sizes = [8, 64], strides = [1, 1]} : vector<8x192xf32> to vector<8x64xf32>
    %133 = vector.extract_strided_slice %128 {offsets = [0, 128], sizes = [8, 64], strides = [1, 1]} : vector<8x192xf32> to vector<8x64xf32>
    %134 = arith.mulf %132, %109 : vector<8x64xf32>
    %135 = arith.mulf %131, %130 : vector<8x64xf32>
    %136 = arith.addf %134, %135 : vector<8x64xf32>
    %137 = math.tanh %136 : vector<8x64xf32>
    %138 = arith.mulf %133, %137 : vector<8x64xf32>
    %139 = vector.extract_strided_slice %1 {offsets = [0, 5], sizes = [8, 1], strides = [1, 1]} : vector<8x8xf32> to vector<8x1xf32>
    %c0_43 = arith.constant 0 : index
    %c0_44 = arith.constant 0 : index
    %140 = vector.load %arg2[%c0_43, %c0_44] : memref<1x256xf32, #tpu.memory_space<vmem>>, vector<1x256xf32>
    %141 = vector.broadcast %139 : vector<8x1xf32> to vector<8x256xf32>
    %142 = vector.broadcast %140 : vector<1x256xf32> to vector<8x256xf32>
    %143 = arith.mulf %141, %142 : vector<8x256xf32>
    %c0_45 = arith.constant 0 : index
    %c0_46 = arith.constant 0 : index
    %144 = vector.load %arg4[%c0_45, %c0_46] : memref<1x256xf32, #tpu.memory_space<vmem>>, vector<1x256xf32>
    %145 = vector.broadcast %144 : vector<1x256xf32> to vector<8x256xf32>
    %146 = arith.addf %143, %145 : vector<8x256xf32>
    %c0_47 = arith.constant 0 : index
    %c0_48 = arith.constant 0 : index
    %147 = vector.load %arg3[%c0_47, %c0_48] : memref<64x256xf32, #tpu.memory_space<vmem>>, vector<64x256xf32>
    %cst_49 = arith.constant dense<0.000000e+00> : vector<8x256xf32>
    %148 = tpu.matmul %138, %147, %cst_49 {dimension_numbers = #tpu.dot_dimension_numbers<[1], [0], [0], [1], [0, 0, 1, 1], [], []>} : vector<8x64xf32>, vector<64x256xf32>, vector<8x256xf32> -> vector<8x256xf32>
    %149 = arith.addf %146, %148 : vector<8x256xf32>
    %150 = vector.extract_strided_slice %149 {offsets = [0, 0], sizes = [8, 192], strides = [1, 1]} : vector<8x256xf32> to vector<8x192xf32>
    %151 = arith.negf %150 : vector<8x192xf32>
    %152 = math.exp %151 : vector<8x192xf32>
    %cst_50 = arith.constant 1.000000e+00 : f32
    %153 = vector.broadcast %cst_50 : f32 to vector<8x192xf32>
    %154 = arith.addf %153, %152 : vector<8x192xf32>
    %155 = arith.divf %153, %154 : vector<8x192xf32>
    %156 = vector.extract_strided_slice %149 {offsets = [0, 192], sizes = [8, 64], strides = [1, 1]} : vector<8x256xf32> to vector<8x64xf32>
    %157 = math.tanh %156 : vector<8x64xf32>
    %158 = vector.extract_strided_slice %155 {offsets = [0, 0], sizes = [8, 64], strides = [1, 1]} : vector<8x192xf32> to vector<8x64xf32>
    %159 = vector.extract_strided_slice %155 {offsets = [0, 64], sizes = [8, 64], strides = [1, 1]} : vector<8x192xf32> to vector<8x64xf32>
    %160 = vector.extract_strided_slice %155 {offsets = [0, 128], sizes = [8, 64], strides = [1, 1]} : vector<8x192xf32> to vector<8x64xf32>
    %161 = arith.mulf %159, %136 : vector<8x64xf32>
    %162 = arith.mulf %158, %157 : vector<8x64xf32>
    %163 = arith.addf %161, %162 : vector<8x64xf32>
    %164 = math.tanh %163 : vector<8x64xf32>
    %165 = arith.mulf %160, %164 : vector<8x64xf32>
    %166 = vector.extract_strided_slice %1 {offsets = [0, 6], sizes = [8, 1], strides = [1, 1]} : vector<8x8xf32> to vector<8x1xf32>
    %c0_51 = arith.constant 0 : index
    %c0_52 = arith.constant 0 : index
    %167 = vector.load %arg2[%c0_51, %c0_52] : memref<1x256xf32, #tpu.memory_space<vmem>>, vector<1x256xf32>
    %168 = vector.broadcast %166 : vector<8x1xf32> to vector<8x256xf32>
    %169 = vector.broadcast %167 : vector<1x256xf32> to vector<8x256xf32>
    %170 = arith.mulf %168, %169 : vector<8x256xf32>
    %c0_53 = arith.constant 0 : index
    %c0_54 = arith.constant 0 : index
    %171 = vector.load %arg4[%c0_53, %c0_54] : memref<1x256xf32, #tpu.memory_space<vmem>>, vector<1x256xf32>
    %172 = vector.broadcast %171 : vector<1x256xf32> to vector<8x256xf32>
    %173 = arith.addf %170, %172 : vector<8x256xf32>
    %c0_55 = arith.constant 0 : index
    %c0_56 = arith.constant 0 : index
    %174 = vector.load %arg3[%c0_55, %c0_56] : memref<64x256xf32, #tpu.memory_space<vmem>>, vector<64x256xf32>
    %cst_57 = arith.constant dense<0.000000e+00> : vector<8x256xf32>
    %175 = tpu.matmul %165, %174, %cst_57 {dimension_numbers = #tpu.dot_dimension_numbers<[1], [0], [0], [1], [0, 0, 1, 1], [], []>} : vector<8x64xf32>, vector<64x256xf32>, vector<8x256xf32> -> vector<8x256xf32>
    %176 = arith.addf %173, %175 : vector<8x256xf32>
    %177 = vector.extract_strided_slice %176 {offsets = [0, 0], sizes = [8, 192], strides = [1, 1]} : vector<8x256xf32> to vector<8x192xf32>
    %178 = arith.negf %177 : vector<8x192xf32>
    %179 = math.exp %178 : vector<8x192xf32>
    %cst_58 = arith.constant 1.000000e+00 : f32
    %180 = vector.broadcast %cst_58 : f32 to vector<8x192xf32>
    %181 = arith.addf %180, %179 : vector<8x192xf32>
    %182 = arith.divf %180, %181 : vector<8x192xf32>
    %183 = vector.extract_strided_slice %176 {offsets = [0, 192], sizes = [8, 64], strides = [1, 1]} : vector<8x256xf32> to vector<8x64xf32>
    %184 = math.tanh %183 : vector<8x64xf32>
    %185 = vector.extract_strided_slice %182 {offsets = [0, 0], sizes = [8, 64], strides = [1, 1]} : vector<8x192xf32> to vector<8x64xf32>
    %186 = vector.extract_strided_slice %182 {offsets = [0, 64], sizes = [8, 64], strides = [1, 1]} : vector<8x192xf32> to vector<8x64xf32>
    %187 = vector.extract_strided_slice %182 {offsets = [0, 128], sizes = [8, 64], strides = [1, 1]} : vector<8x192xf32> to vector<8x64xf32>
    %188 = arith.mulf %186, %163 : vector<8x64xf32>
    %189 = arith.mulf %185, %184 : vector<8x64xf32>
    %190 = arith.addf %188, %189 : vector<8x64xf32>
    %191 = math.tanh %190 : vector<8x64xf32>
    %192 = arith.mulf %187, %191 : vector<8x64xf32>
    %193 = vector.extract_strided_slice %1 {offsets = [0, 7], sizes = [8, 1], strides = [1, 1]} : vector<8x8xf32> to vector<8x1xf32>
    %c0_59 = arith.constant 0 : index
    %c0_60 = arith.constant 0 : index
    %194 = vector.load %arg2[%c0_59, %c0_60] : memref<1x256xf32, #tpu.memory_space<vmem>>, vector<1x256xf32>
    %195 = vector.broadcast %193 : vector<8x1xf32> to vector<8x256xf32>
    %196 = vector.broadcast %194 : vector<1x256xf32> to vector<8x256xf32>
    %197 = arith.mulf %195, %196 : vector<8x256xf32>
    %c0_61 = arith.constant 0 : index
    %c0_62 = arith.constant 0 : index
    %198 = vector.load %arg4[%c0_61, %c0_62] : memref<1x256xf32, #tpu.memory_space<vmem>>, vector<1x256xf32>
    %199 = vector.broadcast %198 : vector<1x256xf32> to vector<8x256xf32>
    %200 = arith.addf %197, %199 : vector<8x256xf32>
    %c0_63 = arith.constant 0 : index
    %c0_64 = arith.constant 0 : index
    %201 = vector.load %arg3[%c0_63, %c0_64] : memref<64x256xf32, #tpu.memory_space<vmem>>, vector<64x256xf32>
    %cst_65 = arith.constant dense<0.000000e+00> : vector<8x256xf32>
    %202 = tpu.matmul %192, %201, %cst_65 {dimension_numbers = #tpu.dot_dimension_numbers<[1], [0], [0], [1], [0, 0, 1, 1], [], []>} : vector<8x64xf32>, vector<64x256xf32>, vector<8x256xf32> -> vector<8x256xf32>
    %203 = arith.addf %200, %202 : vector<8x256xf32>
    %204 = vector.extract_strided_slice %203 {offsets = [0, 0], sizes = [8, 192], strides = [1, 1]} : vector<8x256xf32> to vector<8x192xf32>
    %205 = arith.negf %204 : vector<8x192xf32>
    %206 = math.exp %205 : vector<8x192xf32>
    %cst_66 = arith.constant 1.000000e+00 : f32
    %207 = vector.broadcast %cst_66 : f32 to vector<8x192xf32>
    %208 = arith.addf %207, %206 : vector<8x192xf32>
    %209 = arith.divf %207, %208 : vector<8x192xf32>
    %210 = vector.extract_strided_slice %203 {offsets = [0, 192], sizes = [8, 64], strides = [1, 1]} : vector<8x256xf32> to vector<8x64xf32>
    %211 = math.tanh %210 : vector<8x64xf32>
    %212 = vector.extract_strided_slice %209 {offsets = [0, 0], sizes = [8, 64], strides = [1, 1]} : vector<8x192xf32> to vector<8x64xf32>
    %213 = vector.extract_strided_slice %209 {offsets = [0, 64], sizes = [8, 64], strides = [1, 1]} : vector<8x192xf32> to vector<8x64xf32>
    %214 = vector.extract_strided_slice %209 {offsets = [0, 128], sizes = [8, 64], strides = [1, 1]} : vector<8x192xf32> to vector<8x64xf32>
    %215 = arith.mulf %213, %190 : vector<8x64xf32>
    %216 = arith.mulf %212, %211 : vector<8x64xf32>
    %217 = arith.addf %215, %216 : vector<8x64xf32>
    %218 = math.tanh %217 : vector<8x64xf32>
    %219 = arith.mulf %214, %218 : vector<8x64xf32>
    %c0_67 = arith.constant 0 : index
    %c0_68 = arith.constant 0 : index
    %220 = vector.load %arg5[%c0_67, %c0_68] : memref<64x128xf32, #tpu.memory_space<vmem>>, vector<64x128xf32>
    %cst_69 = arith.constant dense<0.000000e+00> : vector<8x128xf32>
    %221 = tpu.matmul %219, %220, %cst_69 {dimension_numbers = #tpu.dot_dimension_numbers<[1], [0], [0], [1], [0, 0, 1, 1], [], []>} : vector<8x64xf32>, vector<64x128xf32>, vector<8x128xf32> -> vector<8x128xf32>
    %c0_70 = arith.constant 0 : index
    %c0_71 = arith.constant 0 : index
    %222 = vector.load %arg6[%c0_70, %c0_71] : memref<1x128xf32, #tpu.memory_space<vmem>>, vector<1x128xf32>
    %223 = vector.broadcast %222 : vector<1x128xf32> to vector<8x128xf32>
    %224 = arith.addf %221, %223 : vector<8x128xf32>
    %225 = vector.extract_strided_slice %224 {offsets = [0, 0], sizes = [8, 96], strides = [1, 1]} : vector<8x128xf32> to vector<8x96xf32>
    %226 = arith.negf %225 : vector<8x96xf32>
    %227 = math.exp %226 : vector<8x96xf32>
    %cst_72 = arith.constant 1.000000e+00 : f32
    %228 = vector.broadcast %cst_72 : f32 to vector<8x96xf32>
    %229 = arith.addf %228, %227 : vector<8x96xf32>
    %230 = arith.divf %228, %229 : vector<8x96xf32>
    %231 = vector.extract_strided_slice %224 {offsets = [0, 96], sizes = [8, 32], strides = [1, 1]} : vector<8x128xf32> to vector<8x32xf32>
    %232 = math.tanh %231 : vector<8x32xf32>
    %233 = vector.extract_strided_slice %230 {offsets = [0, 0], sizes = [8, 32], strides = [1, 1]} : vector<8x96xf32> to vector<8x32xf32>
    %234 = vector.extract_strided_slice %230 {offsets = [0, 64], sizes = [8, 32], strides = [1, 1]} : vector<8x96xf32> to vector<8x32xf32>
    %235 = arith.mulf %233, %232 : vector<8x32xf32>
    %236 = math.tanh %235 : vector<8x32xf32>
    %237 = arith.mulf %234, %236 : vector<8x32xf32>
    %c0_73 = arith.constant 0 : index
    %c0_74 = arith.constant 0 : index
    %238 = vector.load %arg7[%c0_73, %c0_74] : memref<32x384xf32, #tpu.memory_space<vmem>>, vector<32x384xf32>
    %cst_75 = arith.constant dense<0.000000e+00> : vector<8x384xf32>
    %239 = tpu.matmul %237, %238, %cst_75 {dimension_numbers = #tpu.dot_dimension_numbers<[1], [0], [0], [1], [0, 0, 1, 1], [], []>} : vector<8x32xf32>, vector<32x384xf32>, vector<8x384xf32> -> vector<8x384xf32>
    %c0_76 = arith.constant 0 : index
    %c0_77 = arith.constant 0 : index
    %240 = vector.load %arg8[%c0_76, %c0_77] : memref<1x384xf32, #tpu.memory_space<vmem>>, vector<1x384xf32>
    %241 = vector.broadcast %240 : vector<1x384xf32> to vector<8x384xf32>
    %242 = arith.addf %239, %241 : vector<8x384xf32>
    %243 = vector.extract_strided_slice %242 {offsets = [0, 0], sizes = [8, 32], strides = [1, 1]} : vector<8x384xf32> to vector<8x32xf32>
    %244 = arith.negf %243 : vector<8x32xf32>
    %245 = math.exp %244 : vector<8x32xf32>
    %cst_78 = arith.constant 1.000000e+00 : f32
    %246 = vector.broadcast %cst_78 : f32 to vector<8x32xf32>
    %247 = arith.addf %246, %245 : vector<8x32xf32>
    %248 = arith.divf %246, %247 : vector<8x32xf32>
    %249 = vector.extract_strided_slice %242 {offsets = [0, 192], sizes = [8, 32], strides = [1, 1]} : vector<8x384xf32> to vector<8x32xf32>
    %250 = arith.negf %249 : vector<8x32xf32>
    %251 = math.exp %250 : vector<8x32xf32>
    %cst_79 = arith.constant 1.000000e+00 : f32
    %252 = vector.broadcast %cst_79 : f32 to vector<8x32xf32>
    %253 = arith.addf %252, %251 : vector<8x32xf32>
    %254 = arith.divf %252, %253 : vector<8x32xf32>
    %255 = vector.extract_strided_slice %242 {offsets = [0, 288], sizes = [8, 32], strides = [1, 1]} : vector<8x384xf32> to vector<8x32xf32>
    %256 = math.tanh %255 : vector<8x32xf32>
    %257 = arith.mulf %248, %256 : vector<8x32xf32>
    %258 = math.tanh %257 : vector<8x32xf32>
    %259 = arith.mulf %254, %258 : vector<8x32xf32>
    %cst_80 = arith.constant 0.000000e+00 : f32
    %260 = vector.broadcast %cst_80 : f32 to vector<8x64xf32>
    %261 = tpu.concatenate %259, %260 in 1 : vector<8x32xf32>, vector<8x64xf32> -> vector<8x96xf32>
    %262 = tpu.concatenate %257, %260 in 1 : vector<8x32xf32>, vector<8x64xf32> -> vector<8x96xf32>
    %c0_81 = arith.constant 0 : index
    %c0_82 = arith.constant 0 : index
    %263 = vector.load %arg9[%c0_81, %c0_82] : memref<96x384xf32, #tpu.memory_space<vmem>>, vector<96x384xf32>
    %cst_83 = arith.constant dense<0.000000e+00> : vector<8x384xf32>
    %264 = tpu.matmul %261, %263, %cst_83 {dimension_numbers = #tpu.dot_dimension_numbers<[1], [0], [0], [1], [0, 0, 1, 1], [], []>} : vector<8x96xf32>, vector<96x384xf32>, vector<8x384xf32> -> vector<8x384xf32>
    %265 = arith.addf %264, %242 : vector<8x384xf32>
    %266 = vector.extract_strided_slice %265 {offsets = [0, 0], sizes = [8, 288], strides = [1, 1]} : vector<8x384xf32> to vector<8x288xf32>
    %267 = arith.negf %266 : vector<8x288xf32>
    %268 = math.exp %267 : vector<8x288xf32>
    %cst_84 = arith.constant 1.000000e+00 : f32
    %269 = vector.broadcast %cst_84 : f32 to vector<8x288xf32>
    %270 = arith.addf %269, %268 : vector<8x288xf32>
    %271 = arith.divf %269, %270 : vector<8x288xf32>
    %272 = vector.extract_strided_slice %265 {offsets = [0, 288], sizes = [8, 96], strides = [1, 1]} : vector<8x384xf32> to vector<8x96xf32>
    %273 = math.tanh %272 : vector<8x96xf32>
    %274 = vector.extract_strided_slice %271 {offsets = [0, 96], sizes = [8, 96], strides = [1, 1]} : vector<8x288xf32> to vector<8x96xf32>
    %275 = arith.mulf %274, %262 : vector<8x96xf32>
    %276 = vector.extract_strided_slice %271 {offsets = [0, 0], sizes = [8, 96], strides = [1, 1]} : vector<8x288xf32> to vector<8x96xf32>
    %277 = arith.mulf %276, %273 : vector<8x96xf32>
    %278 = arith.addf %275, %277 : vector<8x96xf32>
    %279 = vector.extract_strided_slice %271 {offsets = [0, 192], sizes = [8, 96], strides = [1, 1]} : vector<8x288xf32> to vector<8x96xf32>
    %280 = math.tanh %278 : vector<8x96xf32>
    %281 = arith.mulf %279, %280 : vector<8x96xf32>
    %c0_85 = arith.constant 0 : index
    %c0_86 = arith.constant 0 : index
    %282 = vector.load %arg9[%c0_85, %c0_86] : memref<96x384xf32, #tpu.memory_space<vmem>>, vector<96x384xf32>
    %cst_87 = arith.constant dense<0.000000e+00> : vector<8x384xf32>
    %283 = tpu.matmul %281, %282, %cst_87 {dimension_numbers = #tpu.dot_dimension_numbers<[1], [0], [0], [1], [0, 0, 1, 1], [], []>} : vector<8x96xf32>, vector<96x384xf32>, vector<8x384xf32> -> vector<8x384xf32>
    %284 = arith.addf %283, %242 : vector<8x384xf32>
    %285 = vector.extract_strided_slice %284 {offsets = [0, 0], sizes = [8, 288], strides = [1, 1]} : vector<8x384xf32> to vector<8x288xf32>
    %286 = arith.negf %285 : vector<8x288xf32>
    %287 = math.exp %286 : vector<8x288xf32>
    %cst_88 = arith.constant 1.000000e+00 : f32
    %288 = vector.broadcast %cst_88 : f32 to vector<8x288xf32>
    %289 = arith.addf %288, %287 : vector<8x288xf32>
    %290 = arith.divf %288, %289 : vector<8x288xf32>
    %291 = vector.extract_strided_slice %284 {offsets = [0, 288], sizes = [8, 96], strides = [1, 1]} : vector<8x384xf32> to vector<8x96xf32>
    %292 = math.tanh %291 : vector<8x96xf32>
    %293 = vector.extract_strided_slice %290 {offsets = [0, 96], sizes = [8, 96], strides = [1, 1]} : vector<8x288xf32> to vector<8x96xf32>
    %294 = arith.mulf %293, %278 : vector<8x96xf32>
    %295 = vector.extract_strided_slice %290 {offsets = [0, 0], sizes = [8, 96], strides = [1, 1]} : vector<8x288xf32> to vector<8x96xf32>
    %296 = arith.mulf %295, %292 : vector<8x96xf32>
    %297 = arith.addf %294, %296 : vector<8x96xf32>
    %298 = vector.extract_strided_slice %290 {offsets = [0, 192], sizes = [8, 96], strides = [1, 1]} : vector<8x288xf32> to vector<8x96xf32>
    %299 = math.tanh %297 : vector<8x96xf32>
    %300 = arith.mulf %298, %299 : vector<8x96xf32>
    %c0_89 = arith.constant 0 : index
    %c0_90 = arith.constant 0 : index
    %301 = vector.load %arg9[%c0_89, %c0_90] : memref<96x384xf32, #tpu.memory_space<vmem>>, vector<96x384xf32>
    %cst_91 = arith.constant dense<0.000000e+00> : vector<8x384xf32>
    %302 = tpu.matmul %300, %301, %cst_91 {dimension_numbers = #tpu.dot_dimension_numbers<[1], [0], [0], [1], [0, 0, 1, 1], [], []>} : vector<8x96xf32>, vector<96x384xf32>, vector<8x384xf32> -> vector<8x384xf32>
    %303 = arith.addf %302, %242 : vector<8x384xf32>
    %304 = vector.extract_strided_slice %303 {offsets = [0, 0], sizes = [8, 288], strides = [1, 1]} : vector<8x384xf32> to vector<8x288xf32>
    %305 = arith.negf %304 : vector<8x288xf32>
    %306 = math.exp %305 : vector<8x288xf32>
    %cst_92 = arith.constant 1.000000e+00 : f32
    %307 = vector.broadcast %cst_92 : f32 to vector<8x288xf32>
    %308 = arith.addf %307, %306 : vector<8x288xf32>
    %309 = arith.divf %307, %308 : vector<8x288xf32>
    %310 = vector.extract_strided_slice %303 {offsets = [0, 288], sizes = [8, 96], strides = [1, 1]} : vector<8x384xf32> to vector<8x96xf32>
    %311 = math.tanh %310 : vector<8x96xf32>
    %312 = vector.extract_strided_slice %309 {offsets = [0, 96], sizes = [8, 96], strides = [1, 1]} : vector<8x288xf32> to vector<8x96xf32>
    %313 = arith.mulf %312, %297 : vector<8x96xf32>
    %314 = vector.extract_strided_slice %309 {offsets = [0, 0], sizes = [8, 96], strides = [1, 1]} : vector<8x288xf32> to vector<8x96xf32>
    %315 = arith.mulf %314, %311 : vector<8x96xf32>
    %316 = arith.addf %313, %315 : vector<8x96xf32>
    %317 = vector.extract_strided_slice %309 {offsets = [0, 192], sizes = [8, 96], strides = [1, 1]} : vector<8x288xf32> to vector<8x96xf32>
    %318 = math.tanh %316 : vector<8x96xf32>
    %319 = arith.mulf %317, %318 : vector<8x96xf32>
    %c0_93 = arith.constant 0 : index
    %c0_94 = arith.constant 0 : index
    %320 = vector.load %arg9[%c0_93, %c0_94] : memref<96x384xf32, #tpu.memory_space<vmem>>, vector<96x384xf32>
    %cst_95 = arith.constant dense<0.000000e+00> : vector<8x384xf32>
    %321 = tpu.matmul %319, %320, %cst_95 {dimension_numbers = #tpu.dot_dimension_numbers<[1], [0], [0], [1], [0, 0, 1, 1], [], []>} : vector<8x96xf32>, vector<96x384xf32>, vector<8x384xf32> -> vector<8x384xf32>
    %322 = arith.addf %321, %242 : vector<8x384xf32>
    %323 = vector.extract_strided_slice %322 {offsets = [0, 0], sizes = [8, 288], strides = [1, 1]} : vector<8x384xf32> to vector<8x288xf32>
    %324 = arith.negf %323 : vector<8x288xf32>
    %325 = math.exp %324 : vector<8x288xf32>
    %cst_96 = arith.constant 1.000000e+00 : f32
    %326 = vector.broadcast %cst_96 : f32 to vector<8x288xf32>
    %327 = arith.addf %326, %325 : vector<8x288xf32>
    %328 = arith.divf %326, %327 : vector<8x288xf32>
    %329 = vector.extract_strided_slice %322 {offsets = [0, 288], sizes = [8, 96], strides = [1, 1]} : vector<8x384xf32> to vector<8x96xf32>
    %330 = math.tanh %329 : vector<8x96xf32>
    %331 = vector.extract_strided_slice %328 {offsets = [0, 96], sizes = [8, 96], strides = [1, 1]} : vector<8x288xf32> to vector<8x96xf32>
    %332 = arith.mulf %331, %316 : vector<8x96xf32>
    %333 = vector.extract_strided_slice %328 {offsets = [0, 0], sizes = [8, 96], strides = [1, 1]} : vector<8x288xf32> to vector<8x96xf32>
    %334 = arith.mulf %333, %330 : vector<8x96xf32>
    %335 = arith.addf %332, %334 : vector<8x96xf32>
    %336 = vector.extract_strided_slice %328 {offsets = [0, 192], sizes = [8, 96], strides = [1, 1]} : vector<8x288xf32> to vector<8x96xf32>
    %337 = math.tanh %335 : vector<8x96xf32>
    %338 = arith.mulf %336, %337 : vector<8x96xf32>
    %c0_97 = arith.constant 0 : index
    %c0_98 = arith.constant 0 : index
    %339 = vector.load %arg9[%c0_97, %c0_98] : memref<96x384xf32, #tpu.memory_space<vmem>>, vector<96x384xf32>
    %cst_99 = arith.constant dense<0.000000e+00> : vector<8x384xf32>
    %340 = tpu.matmul %338, %339, %cst_99 {dimension_numbers = #tpu.dot_dimension_numbers<[1], [0], [0], [1], [0, 0, 1, 1], [], []>} : vector<8x96xf32>, vector<96x384xf32>, vector<8x384xf32> -> vector<8x384xf32>
    %341 = arith.addf %340, %242 : vector<8x384xf32>
    %342 = vector.extract_strided_slice %341 {offsets = [0, 0], sizes = [8, 288], strides = [1, 1]} : vector<8x384xf32> to vector<8x288xf32>
    %343 = arith.negf %342 : vector<8x288xf32>
    %344 = math.exp %343 : vector<8x288xf32>
    %cst_100 = arith.constant 1.000000e+00 : f32
    %345 = vector.broadcast %cst_100 : f32 to vector<8x288xf32>
    %346 = arith.addf %345, %344 : vector<8x288xf32>
    %347 = arith.divf %345, %346 : vector<8x288xf32>
    %348 = vector.extract_strided_slice %341 {offsets = [0, 288], sizes = [8, 96], strides = [1, 1]} : vector<8x384xf32> to vector<8x96xf32>
    %349 = math.tanh %348 : vector<8x96xf32>
    %350 = vector.extract_strided_slice %347 {offsets = [0, 96], sizes = [8, 96], strides = [1, 1]} : vector<8x288xf32> to vector<8x96xf32>
    %351 = arith.mulf %350, %335 : vector<8x96xf32>
    %352 = vector.extract_strided_slice %347 {offsets = [0, 0], sizes = [8, 96], strides = [1, 1]} : vector<8x288xf32> to vector<8x96xf32>
    %353 = arith.mulf %352, %349 : vector<8x96xf32>
    %354 = arith.addf %351, %353 : vector<8x96xf32>
    %355 = vector.extract_strided_slice %347 {offsets = [0, 192], sizes = [8, 96], strides = [1, 1]} : vector<8x288xf32> to vector<8x96xf32>
    %356 = math.tanh %354 : vector<8x96xf32>
    %357 = arith.mulf %355, %356 : vector<8x96xf32>
    %c0_101 = arith.constant 0 : index
    %c0_102 = arith.constant 0 : index
    %358 = vector.load %arg9[%c0_101, %c0_102] : memref<96x384xf32, #tpu.memory_space<vmem>>, vector<96x384xf32>
    %cst_103 = arith.constant dense<0.000000e+00> : vector<8x384xf32>
    %359 = tpu.matmul %357, %358, %cst_103 {dimension_numbers = #tpu.dot_dimension_numbers<[1], [0], [0], [1], [0, 0, 1, 1], [], []>} : vector<8x96xf32>, vector<96x384xf32>, vector<8x384xf32> -> vector<8x384xf32>
    %360 = arith.addf %359, %242 : vector<8x384xf32>
    %361 = vector.extract_strided_slice %360 {offsets = [0, 0], sizes = [8, 288], strides = [1, 1]} : vector<8x384xf32> to vector<8x288xf32>
    %362 = arith.negf %361 : vector<8x288xf32>
    %363 = math.exp %362 : vector<8x288xf32>
    %cst_104 = arith.constant 1.000000e+00 : f32
    %364 = vector.broadcast %cst_104 : f32 to vector<8x288xf32>
    %365 = arith.addf %364, %363 : vector<8x288xf32>
    %366 = arith.divf %364, %365 : vector<8x288xf32>
    %367 = vector.extract_strided_slice %360 {offsets = [0, 288], sizes = [8, 96], strides = [1, 1]} : vector<8x384xf32> to vector<8x96xf32>
    %368 = math.tanh %367 : vector<8x96xf32>
    %369 = vector.extract_strided_slice %366 {offsets = [0, 96], sizes = [8, 96], strides = [1, 1]} : vector<8x288xf32> to vector<8x96xf32>
    %370 = arith.mulf %369, %354 : vector<8x96xf32>
    %371 = vector.extract_strided_slice %366 {offsets = [0, 0], sizes = [8, 96], strides = [1, 1]} : vector<8x288xf32> to vector<8x96xf32>
    %372 = arith.mulf %371, %368 : vector<8x96xf32>
    %373 = arith.addf %370, %372 : vector<8x96xf32>
    %374 = vector.extract_strided_slice %366 {offsets = [0, 192], sizes = [8, 96], strides = [1, 1]} : vector<8x288xf32> to vector<8x96xf32>
    %375 = math.tanh %373 : vector<8x96xf32>
    %376 = arith.mulf %374, %375 : vector<8x96xf32>
    %c0_105 = arith.constant 0 : index
    %c0_106 = arith.constant 0 : index
    %377 = vector.load %arg9[%c0_105, %c0_106] : memref<96x384xf32, #tpu.memory_space<vmem>>, vector<96x384xf32>
    %cst_107 = arith.constant dense<0.000000e+00> : vector<8x384xf32>
    %378 = tpu.matmul %376, %377, %cst_107 {dimension_numbers = #tpu.dot_dimension_numbers<[1], [0], [0], [1], [0, 0, 1, 1], [], []>} : vector<8x96xf32>, vector<96x384xf32>, vector<8x384xf32> -> vector<8x384xf32>
    %379 = arith.addf %378, %242 : vector<8x384xf32>
    %380 = vector.extract_strided_slice %379 {offsets = [0, 0], sizes = [8, 288], strides = [1, 1]} : vector<8x384xf32> to vector<8x288xf32>
    %381 = arith.negf %380 : vector<8x288xf32>
    %382 = math.exp %381 : vector<8x288xf32>
    %cst_108 = arith.constant 1.000000e+00 : f32
    %383 = vector.broadcast %cst_108 : f32 to vector<8x288xf32>
    %384 = arith.addf %383, %382 : vector<8x288xf32>
    %385 = arith.divf %383, %384 : vector<8x288xf32>
    %386 = vector.extract_strided_slice %379 {offsets = [0, 288], sizes = [8, 96], strides = [1, 1]} : vector<8x384xf32> to vector<8x96xf32>
    %387 = math.tanh %386 : vector<8x96xf32>
    %388 = vector.extract_strided_slice %385 {offsets = [0, 96], sizes = [8, 96], strides = [1, 1]} : vector<8x288xf32> to vector<8x96xf32>
    %389 = arith.mulf %388, %373 : vector<8x96xf32>
    %390 = vector.extract_strided_slice %385 {offsets = [0, 0], sizes = [8, 96], strides = [1, 1]} : vector<8x288xf32> to vector<8x96xf32>
    %391 = arith.mulf %390, %387 : vector<8x96xf32>
    %392 = arith.addf %389, %391 : vector<8x96xf32>
    %393 = vector.extract_strided_slice %385 {offsets = [0, 192], sizes = [8, 96], strides = [1, 1]} : vector<8x288xf32> to vector<8x96xf32>
    %394 = math.tanh %392 : vector<8x96xf32>
    %395 = arith.mulf %393, %394 : vector<8x96xf32>
    %c0_109 = arith.constant 0 : index
    %c0_110 = arith.constant 0 : index
    %396 = vector.load %arg9[%c0_109, %c0_110] : memref<96x384xf32, #tpu.memory_space<vmem>>, vector<96x384xf32>
    %cst_111 = arith.constant dense<0.000000e+00> : vector<8x384xf32>
    %397 = tpu.matmul %395, %396, %cst_111 {dimension_numbers = #tpu.dot_dimension_numbers<[1], [0], [0], [1], [0, 0, 1, 1], [], []>} : vector<8x96xf32>, vector<96x384xf32>, vector<8x384xf32> -> vector<8x384xf32>
    %398 = arith.addf %397, %242 : vector<8x384xf32>
    %399 = vector.extract_strided_slice %398 {offsets = [0, 0], sizes = [8, 288], strides = [1, 1]} : vector<8x384xf32> to vector<8x288xf32>
    %400 = arith.negf %399 : vector<8x288xf32>
    %401 = math.exp %400 : vector<8x288xf32>
    %cst_112 = arith.constant 1.000000e+00 : f32
    %402 = vector.broadcast %cst_112 : f32 to vector<8x288xf32>
    %403 = arith.addf %402, %401 : vector<8x288xf32>
    %404 = arith.divf %402, %403 : vector<8x288xf32>
    %405 = vector.extract_strided_slice %398 {offsets = [0, 288], sizes = [8, 96], strides = [1, 1]} : vector<8x384xf32> to vector<8x96xf32>
    %406 = math.tanh %405 : vector<8x96xf32>
    %407 = vector.extract_strided_slice %404 {offsets = [0, 96], sizes = [8, 96], strides = [1, 1]} : vector<8x288xf32> to vector<8x96xf32>
    %408 = arith.mulf %407, %392 : vector<8x96xf32>
    %409 = vector.extract_strided_slice %404 {offsets = [0, 0], sizes = [8, 96], strides = [1, 1]} : vector<8x288xf32> to vector<8x96xf32>
    %410 = arith.mulf %409, %406 : vector<8x96xf32>
    %411 = arith.addf %408, %410 : vector<8x96xf32>
    %412 = vector.extract_strided_slice %404 {offsets = [0, 192], sizes = [8, 96], strides = [1, 1]} : vector<8x288xf32> to vector<8x96xf32>
    %413 = math.tanh %411 : vector<8x96xf32>
    %414 = arith.mulf %412, %413 : vector<8x96xf32>
    %415 = tpu.concatenate %281, %300, %319, %338, %357, %376, %395, %414 in 0 : vector<8x96xf32>, vector<8x96xf32>, vector<8x96xf32>, vector<8x96xf32>, vector<8x96xf32>, vector<8x96xf32>, vector<8x96xf32>, vector<8x96xf32> -> vector<64x96xf32>
    %c0_113 = arith.constant 0 : index
    %c0_114 = arith.constant 0 : index
    %416 = vector.load %arg10[%c0_113, %c0_114] : memref<96x1xf32, #tpu.memory_space<vmem>>, vector<96x1xf32>
    %cst_115 = arith.constant dense<0.000000e+00> : vector<64x1xf32>
    %417 = tpu.matmul %415, %416, %cst_115 {dimension_numbers = #tpu.dot_dimension_numbers<[1], [0], [0], [1], [0, 0, 1, 1], [], []>} : vector<64x96xf32>, vector<96x1xf32>, vector<64x1xf32> -> vector<64x1xf32>
    %c0_116 = arith.constant 0 : index
    %c0_117 = arith.constant 0 : index
    %418 = vector.load %arg11[%c0_116, %c0_117] : memref<1x1xf32, #tpu.memory_space<vmem>>, vector<1x1xf32>
    %419 = vector.broadcast %418 : vector<1x1xf32> to vector<64x1xf32>
    %420 = arith.addf %417, %419 : vector<64x1xf32>
    %c0_118 = arith.constant 0 : index
    %c0_119 = arith.constant 0 : index
    %c0_120 = arith.constant 0 : index
    %421 = vector.load %arg12[%c0_118, %c0_119, %c0_120] : memref<1x64x1xf32, #tpu.memory_space<vmem>>, vector<1x64x1xf32>
    %422 = vector.shape_cast %421 : vector<1x64x1xf32> to vector<64x1xf32>
    %423 = vector.shape_cast %420 : vector<64x1xf32> to vector<1x64x1xf32>
    tpu.vector_store %arg12[%c0_118, %c0_119, %c0_120], %423 {strides = array<i32>} : memref<1x64x1xf32, #tpu.memory_space<vmem>>, vector<1x64x1xf32>,
    return
  }
  func.func @transform_0(%arg0: i32) -> (i32, i32, i32) {
    %c0_i32 = arith.constant 0 : i32
    %c0_i32_0 = arith.constant 0 : i32
    %c0_i32_1 = arith.constant 0 : i32
    return %arg0, %c0_i32, %c0_i32_0 : i32, i32, i32
  }
  func.func @transform_1(%arg0: i32) -> (i32, i32) {
    %c0_i32 = arith.constant 0 : i32
    %c0_i32_0 = arith.constant 0 : i32
    %c0_i32_1 = arith.constant 0 : i32
    return %c0_i32, %c0_i32_0 : i32, i32
  }
  func.func @transform_2(%arg0: i32) -> (i32, i32) {
    %c0_i32 = arith.constant 0 : i32
    %c0_i32_0 = arith.constant 0 : i32
    %c0_i32_1 = arith.constant 0 : i32
    return %c0_i32, %c0_i32_0 : i32, i32
  }
  func.func @transform_3(%arg0: i32) -> (i32, i32) {
    %c0_i32 = arith.constant 0 : i32
    %c0_i32_0 = arith.constant 0 : i32
    %c0_i32_1 = arith.constant 0 : i32
    return %c0_i32, %c0_i32_0 : i32, i32
  }
  func.func @transform_4(%arg0: i32) -> (i32, i32) {
    %c0_i32 = arith.constant 0 : i32
    %c0_i32_0 = arith.constant 0 : i32
    %c0_i32_1 = arith.constant 0 : i32
    return %c0_i32, %c0_i32_0 : i32, i32
  }
  func.func @transform_5(%arg0: i32) -> (i32, i32) {
    %c0_i32 = arith.constant 0 : i32
    %c0_i32_0 = arith.constant 0 : i32
    %c0_i32_1 = arith.constant 0 : i32
    return %c0_i32, %c0_i32_0 : i32, i32
  }
  func.func @transform_6(%arg0: i32) -> (i32, i32) {
    %c0_i32 = arith.constant 0 : i32
    %c0_i32_0 = arith.constant 0 : i32
    %c0_i32_1 = arith.constant 0 : i32
    return %c0_i32, %c0_i32_0 : i32, i32
  }
  func.func @transform_7(%arg0: i32) -> (i32, i32) {
    %c0_i32 = arith.constant 0 : i32
    %c0_i32_0 = arith.constant 0 : i32
    %c0_i32_1 = arith.constant 0 : i32
    return %c0_i32, %c0_i32_0 : i32, i32
  }
  func.func @transform_8(%arg0: i32) -> (i32, i32) {
    %c0_i32 = arith.constant 0 : i32
    %c0_i32_0 = arith.constant 0 : i32
    %c0_i32_1 = arith.constant 0 : i32
    return %c0_i32, %c0_i32_0 : i32, i32
  }
  func.func @transform_9(%arg0: i32) -> (i32, i32) {
    %c0_i32 = arith.constant 0 : i32
    %c0_i32_0 = arith.constant 0 : i32
    %c0_i32_1 = arith.constant 0 : i32
    return %c0_i32, %c0_i32_0 : i32, i32
  }
  func.func @transform_10(%arg0: i32) -> (i32, i32) {
    %c0_i32 = arith.constant 0 : i32
    %c0_i32_0 = arith.constant 0 : i32
    %c0_i32_1 = arith.constant 0 : i32
    return %c0_i32, %c0_i32_0 : i32, i32
  }
  func.func @transform_11(%arg0: i32) -> (i32, i32, i32) {
    %c0_i32 = arith.constant 0 : i32
    %c0_i32_0 = arith.constant 0 : i32
    %c0_i32_1 = arith.constant 0 : i32
    return %arg0, %c0_i32, %c0_i32_0 : i32, i32, i32
  }
}

</mosaic_0001>

<llo_original>
// kernel: tpu_custom_call.1
$region0: #{tpu_custom_call.1}
  #allocation0 [shape = 'u32[]', space=smem, size = 0x4, offset = 0x4, fixed_abs, tag = 'smem constant byte address 0x4 - core index']
  #allocation1 [shape = 'u32[144,128]{1,0:T(1,128)}', space=vmem, size = 0x12000, scoped, tag = 'internal scratch']
  #allocation2 [shape = 'f32[1,1]{1,0:T(1,128)S(1)}', space=vmem, size = 0x200, scoped, tag = 'scoped memory for tpu_custom_call.1']
  %s0 = inlined_call_operand.hbm [shape: f32[2,8,8], index: 0, kind: input, shape index: {}]
  %s1 = inlined_call_operand.vmem [shape: f32[1,256], index: 1, kind: input, shape index: {}]
  %s2 = inlined_call_operand.hbm [shape: f32[64,256], index: 2, kind: input, shape index: {}]
  %s3 = inlined_call_operand.vmem [shape: f32[1,256], index: 3, kind: input, shape index: {}]
  %s4 = inlined_call_operand.hbm [shape: f32[64,128], index: 4, kind: input, shape index: {}]
  %s5 = inlined_call_operand.vmem [shape: f32[1,128], index: 5, kind: input, shape index: {}]
  %s6 = inlined_call_operand.vmem [shape: f32[32,384], index: 6, kind: input, shape index: {}]
  %s7 = inlined_call_operand.vmem [shape: f32[1,384], index: 7, kind: input, shape index: {}]
  %s8 = inlined_call_operand.hbm [shape: f32[96,384], index: 8, kind: input, shape index: {}]
  %s9 = inlined_call_operand.vmem [shape: f32[96,1], index: 9, kind: input, shape index: {}]
  %s10 = inlined_call_operand.<no memory space> [shape: f32[1,1], index: 10, kind: input, shape index: {}]
  %s11 = inlined_call_operand.vmem [shape: f32[2,64,1], index: 11, kind: output, shape index: {}]
  %s12 = sld [smem:[#allocation0]]
  $region93: #{tpu_custom_call.1} parent=0
    _
  %s14 = ssub.s32 1, %s12
  %s15 = scalar_select 0, %s14, %s12
  %v16 = vstv %s10
  %17 = vst [vmem:[#allocation2] sm:$0x1] %v16
  $region1: #{tpu_custom_call.1} parent=0
    #allocation3 [shape = 'u8[8192]{0}', space=vmem, size = 0x2000, scoped, tag = 'input window, operand 0']
    #allocation4 [shape = 's32[2]{0}', space=sflag, size = 0x8, scoped, tag = 'scoped memory for tpu_custom_call.1']
    #allocation5 [shape = 'u8[65536]{0}', space=vmem, size = 0x10000, scoped, tag = 'input window, operand 2, single buffered']
    #allocation6 [shape = 's32[1]{0}', space=sflag, size = 0x4, scoped, tag = 'scoped memory for tpu_custom_call.1']
    #allocation7 [shape = 'u8[32768]{0}', space=vmem, size = 0x8000, scoped, tag = 'input window, operand 4, single buffered']
    #allocation8 [shape = 'u8[147456]{0}', space=vmem, size = 0x24000, scoped, tag = 'input window, operand 8, single buffered']
    #allocation9 [shape = 's32[1]{0}', space=sflag, size = 0x4, scoped, tag = 'scoped memory for tpu_custom_call.1']
    %18 = vsyncpa [#allocation4], 0
    %s19 = scalar_lea.sflag [#allocation4], 1
    %20 = vsyncpa %s19, 0
    %21 = vsyncpa [#allocation6], 0
    %22 = vsyncpa [#allocation9], 0
    loop: start=0, step=1, limit=4
    $region2: #{tpu_custom_call.1} parent=1 // loop_pre_header
      _
    $region3: #{tpu_custom_call.1} parent=1 // loop_header
      %s24 = sphi 0, %s28
      %p25 = scmp.ge.s32.totalorder %s24, 4
      %s34 = sphi 0, %s36
      %s37 = sphi 0, %s34
      %s38 = sphi 0, %s37
      %s54 = sphi 0, %s38
      %s58 = sphi 0, %s58
      %s60 = sphi 0, %s58
      %s61 = sphi 0, %s60
      %s75 = sphi 0, %s61
      %s79 = sphi 0, %s79
      %s81 = sphi 0, %s79
      %s82 = sphi 0, %s81
      %s96 = sphi 0, %s82
      %s100 = sphi 0, %s100
      %s102 = sphi 0, %s100
      %s103 = sphi 0, %s102
      %s117 = sphi 0, %s103
      %s121 = sphi 0, %s121
      %s123 = sphi 0, %s121
      %s124 = sphi 0, %s123
      %s138 = sphi 0, %s124
      %s142 = sphi 0, %s142
      %s144 = sphi 0, %s142
      %s145 = sphi 0, %s144
      %s159 = sphi 0, %s145
      %s163 = sphi 0, %s163
      %s165 = sphi 0, %s163
      %s166 = sphi 0, %s165
      %s180 = sphi 0, %s166
      %s184 = sphi 0, %s184
      %s186 = sphi 0, %s184
      %s187 = sphi 0, %s186
      %s201 = sphi 0, %s187
      %s205 = sphi 0, %s205
      %s207 = sphi 0, %s205
      %s208 = sphi 0, %s207
      %s222 = sphi 0, %s208
      %s226 = sphi 0, %s226
      %s228 = sphi 0, %s226
      %s229 = sphi 0, %s228
      %s243 = sphi 0, %s229
      %s247 = sphi 0, %s247
      %s249 = sphi 0, %s247
      %s250 = sphi 0, %s249
      %s264 = sphi 0, %s250
      %s270 = sphi 0, %s272
      %s273 = sphi 0, %s270
      %s274 = sphi 0, %s273
      %s290 = sphi 0, %s274
    $region4: #{tpu_custom_call.1} parent=1 // loop_header_branch
      %27 = sbr.rel (%p25) target = $region8
    $region5: #{tpu_custom_call.1} parent=1 // loop_body
      %s29 = ssub.s32 %s24, 1
      %s30 = ssub.s32 %s24, 2
      %s31 = sadd.s32 %s24, 1
      %s32 = ssub.s32 %s24, %s31
      %p33 = scmp.eq.s32.totalorder %s32, 0
      %s35 = sadd.s32 %s34, 1
      %s36 = scalar_select %p33, %s34, %s35
      %p39 = pneg %p33
      %p40 = scmp.eq.s32.totalorder %s24, 1
      %p41 = por %p39, %p40
      %p42 = scmp.ne.s32.totalorder %s34, %s37
      %p43 = scmp.eq.s32.totalorder %s24, 0
      %p44 = por %p42, %p43
      %p45 = scmp.ne.s32.totalorder %s34, %s37
      %p46 = scmp.eq.s32.totalorder %s29, 1
      %p47 = por %p45, %p46
      %p48 = scmp.ne.s32.totalorder %s37, %s38
      %p49 = scmp.eq.s32.totalorder %s29, 0
      %p50 = por %p48, %p49
      %p51 = scmp.ne.s32.totalorder %s37, %s38
      %p52 = scmp.eq.s32.totalorder %s30, 1
      %p53 = por %p51, %p52
      %p55 = scmp.ne.s32.totalorder %s38, %s54
      %p56 = scmp.eq.s32.totalorder %s30, 0
      %p57 = por %p55, %p56
      %s59 = sadd.s32 %s58, 1
      %p62 = scmp.eq.s32.totalorder %s24, 1
      %p63 = scmp.ne.s32.totalorder %s58, %s60
      %p64 = scmp.eq.s32.totalorder %s24, 0
      %p65 = por %p63, %p64
      %p66 = scmp.ne.s32.totalorder %s58, %s60
      %p67 = scmp.eq.s32.totalorder %s29, 1
      %p68 = por %p66, %p67
      %p69 = scmp.ne.s32.totalorder %s60, %s61
      %p70 = scmp.eq.s32.totalorder %s29, 0
      %p71 = por %p69, %p70
      %p72 = scmp.ne.s32.totalorder %s60, %s61
      %p73 = scmp.eq.s32.totalorder %s30, 1
      %p74 = por %p72, %p73
      %p76 = scmp.ne.s32.totalorder %s61, %s75
      %p77 = scmp.eq.s32.totalorder %s30, 0
      %p78 = por %p76, %p77
      %s80 = sadd.s32 %s79, 1
      %p83 = scmp.eq.s32.totalorder %s24, 1
      %p84 = scmp.ne.s32.totalorder %s79, %s81
      %p85 = scmp.eq.s32.totalorder %s24, 0
      %p86 = por %p84, %p85
      %p87 = scmp.ne.s32.totalorder %s79, %s81
      %p88 = scmp.eq.s32.totalorder %s29, 1
      %p89 = por %p87, %p88
      %p90 = scmp.ne.s32.totalorder %s81, %s82
      %p91 = scmp.eq.s32.totalorder %s29, 0
      %p92 = por %p90, %p91
      %p93 = scmp.ne.s32.totalorder %s81, %s82
      %p94 = scmp.eq.s32.totalorder %s30, 1
      %p95 = por %p93, %p94
      %p97 = scmp.ne.s32.totalorder %s82, %s96
      %p98 = scmp.eq.s32.totalorder %s30, 0
      %p99 = por %p97, %p98
      %s101 = sadd.s32 %s100, 1
      %p104 = scmp.eq.s32.totalorder %s24, 1
      %p105 = scmp.ne.s32.totalorder %s100, %s102
      %p106 = scmp.eq.s32.totalorder %s24, 0
      %p107 = por %p105, %p106
      %p108 = scmp.ne.s32.totalorder %s100, %s102
      %p109 = scmp.eq.s32.totalorder %s29, 1
      %p110 = por %p108, %p109
      %p111 = scmp.ne.s32.totalorder %s102, %s103
      %p112 = scmp.eq.s32.totalorder %s29, 0
      %p113 = por %p111, %p112
      %p114 = scmp.ne.s32.totalorder %s102, %s103
      %p115 = scmp.eq.s32.totalorder %s30, 1
      %p116 = por %p114, %p115
      %p118 = scmp.ne.s32.totalorder %s103, %s117
      %p119 = scmp.eq.s32.totalorder %s30, 0
      %p120 = por %p118, %p119
      %s122 = sadd.s32 %s121, 1
      %p125 = scmp.eq.s32.totalorder %s24, 1
      %p126 = scmp.ne.s32.totalorder %s121, %s123
      %p127 = scmp.eq.s32.totalorder %s24, 0
      %p128 = por %p126, %p127
      %p129 = scmp.ne.s32.totalorder %s121, %s123
      %p130 = scmp.eq.s32.totalorder %s29, 1
      %p131 = por %p129, %p130
      %p132 = scmp.ne.s32.totalorder %s123, %s124
      %p133 = scmp.eq.s32.totalorder %s29, 0
      %p134 = por %p132, %p133
      %p135 = scmp.ne.s32.totalorder %s123, %s124
      %p136 = scmp.eq.s32.totalorder %s30, 1
      %p137 = por %p135, %p136
      %p139 = scmp.ne.s32.totalorder %s124, %s138
      %p140 = scmp.eq.s32.totalorder %s30, 0
      %p141 = por %p139, %p140
      %s143 = sadd.s32 %s142, 1
      %p146 = scmp.eq.s32.totalorder %s24, 1
      %p147 = scmp.ne.s32.totalorder %s142, %s144
      %p148 = scmp.eq.s32.totalorder %s24, 0
      %p149 = por %p147, %p148
      %p150 = scmp.ne.s32.totalorder %s142, %s144
      %p151 = scmp.eq.s32.totalorder %s29, 1
      %p152 = por %p150, %p151
      %p153 = scmp.ne.s32.totalorder %s144, %s145
      %p154 = scmp.eq.s32.totalorder %s29, 0
      %p155 = por %p153, %p154
      %p156 = scmp.ne.s32.totalorder %s144, %s145
      %p157 = scmp.eq.s32.totalorder %s30, 1
      %p158 = por %p156, %p157
      %p160 = scmp.ne.s32.totalorder %s145, %s159
      %p161 = scmp.eq.s32.totalorder %s30, 0
      %p162 = por %p160, %p161
      %s164 = sadd.s32 %s163, 1
      %p167 = scmp.eq.s32.totalorder %s24, 1
      %p168 = scmp.ne.s32.totalorder %s163, %s165
      %p169 = scmp.eq.s32.totalorder %s24, 0
      %p170 = por %p168, %p169
      %p171 = scmp.ne.s32.totalorder %s163, %s165
      %p172 = scmp.eq.s32.totalorder %s29, 1
      %p173 = por %p171, %p172
      %p174 = scmp.ne.s32.totalorder %s165, %s166
      %p175 = scmp.eq.s32.totalorder %s29, 0
      %p176 = por %p174, %p175
      %p177 = scmp.ne.s32.totalorder %s165, %s166
      %p178 = scmp.eq.s32.totalorder %s30, 1
      %p179 = por %p177, %p178
      %p181 = scmp.ne.s32.totalorder %s166, %s180
      %p182 = scmp.eq.s32.totalorder %s30, 0
      %p183 = por %p181, %p182
      %s185 = sadd.s32 %s184, 1
      %p188 = scmp.eq.s32.totalorder %s24, 1
      %p189 = scmp.ne.s32.totalorder %s184, %s186
      %p190 = scmp.eq.s32.totalorder %s24, 0
      %p191 = por %p189, %p190
      %p192 = scmp.ne.s32.totalorder %s184, %s186
      %p193 = scmp.eq.s32.totalorder %s29, 1
      %p194 = por %p192, %p193
      %p195 = scmp.ne.s32.totalorder %s186, %s187
      %p196 = scmp.eq.s32.totalorder %s29, 0
      %p197 = por %p195, %p196
      %p198 = scmp.ne.s32.totalorder %s186, %s187
      %p199 = scmp.eq.s32.totalorder %s30, 1
      %p200 = por %p198, %p199
      %p202 = scmp.ne.s32.totalorder %s187, %s201
      %p203 = scmp.eq.s32.totalorder %s30, 0
      %p204 = por %p202, %p203
      %s206 = sadd.s32 %s205, 1
      %p209 = scmp.eq.s32.totalorder %s24, 1
      %p210 = scmp.ne.s32.totalorder %s205, %s207
      %p211 = scmp.eq.s32.totalorder %s24, 0
      %p212 = por %p210, %p211
      %p213 = scmp.ne.s32.totalorder %s205, %s207
      %p214 = scmp.eq.s32.totalorder %s29, 1
      %p215 = por %p213, %p214
      %p216 = scmp.ne.s32.totalorder %s207, %s208
      %p217 = scmp.eq.s32.totalorder %s29, 0
      %p218 = por %p216, %p217
      %p219 = scmp.ne.s32.totalorder %s207, %s208
      %p220 = scmp.eq.s32.totalorder %s30, 1
      %p221 = por %p219, %p220
      %p223 = scmp.ne.s32.totalorder %s208, %s222
      %p224 = scmp.eq.s32.totalorder %s30, 0
      %p225 = por %p223, %p224
      %s227 = sadd.s32 %s226, 1
      %p230 = scmp.eq.s32.totalorder %s24, 1
      %p231 = scmp.ne.s32.totalorder %s226, %s228
      %p232 = scmp.eq.s32.totalorder %s24, 0
      %p233 = por %p231, %p232
      %p234 = scmp.ne.s32.totalorder %s226, %s228
      %p235 = scmp.eq.s32.totalorder %s29, 1
      %p236 = por %p234, %p235
      %p237 = scmp.ne.s32.totalorder %s228, %s229
      %p238 = scmp.eq.s32.totalorder %s29, 0
      %p239 = por %p237, %p238
      %p240 = scmp.ne.s32.totalorder %s228, %s229
      %p241 = scmp.eq.s32.totalorder %s30, 1
      %p242 = por %p240, %p241
      %p244 = scmp.ne.s32.totalorder %s229, %s243
      %p245 = scmp.eq.s32.totalorder %s30, 0
      %p246 = por %p244, %p245
      %s248 = sadd.s32 %s247, 1
      %p251 = scmp.eq.s32.totalorder %s24, 1
      %p252 = scmp.ne.s32.totalorder %s247, %s249
      %p253 = scmp.eq.s32.totalorder %s24, 0
      %p254 = por %p252, %p253
      %p255 = scmp.ne.s32.totalorder %s247, %s249
      %p256 = scmp.eq.s32.totalorder %s29, 1
      %p257 = por %p255, %p256
      %p258 = scmp.ne.s32.totalorder %s249, %s250
      %p259 = scmp.eq.s32.totalorder %s29, 0
      %p260 = por %p258, %p259
      %p261 = scmp.ne.s32.totalorder %s249, %s250
      %p262 = scmp.eq.s32.totalorder %s30, 1
      %p263 = por %p261, %p262
      %p265 = scmp.ne.s32.totalorder %s250, %s264
      %p266 = scmp.eq.s32.totalorder %s30, 0
      %p267 = por %p265, %p266
      %s268 = ssub.s32 %s24, %s31
      %p269 = scmp.eq.s32.totalorder %s268, 0
      %s271 = sadd.s32 %s270, 1
      %s272 = scalar_select %p269, %s270, %s271
      %p275 = pneg %p269
      %p276 = scmp.eq.s32.totalorder %s24, 1
      %p277 = por %p275, %p276
      %p278 = scmp.ne.s32.totalorder %s270, %s273
      %p279 = scmp.eq.s32.totalorder %s24, 0
      %p280 = por %p278, %p279
      %p281 = scmp.ne.s32.totalorder %s270, %s273
      %p282 = scmp.eq.s32.totalorder %s29, 1
      %p283 = por %p281, %p282
      %p284 = scmp.ne.s32.totalorder %s273, %s274
      %p285 = scmp.eq.s32.totalorder %s29, 0
      %p286 = por %p284, %p285
      %p287 = scmp.ne.s32.totalorder %s273, %s274
      %p288 = scmp.eq.s32.totalorder %s30, 1
      %p289 = por %p287, %p288
      %p291 = scmp.ne.s32.totalorder %s274, %s290
      %p292 = scmp.eq.s32.totalorder %s30, 0
      %p293 = por %p291, %p292
      %p294 = scmp.le.s32.totalorder 1, %s24
      %p295 = scmp.lt.s32.totalorder %s24, 3
      %p296 = pnand %p294, %p295
      %p297 = pneg %p296
      // Predicated region
      $region9: #{tpu_custom_call.1} parent=5 // pred_check
        _
      $region10: #{tpu_custom_call.1} parent=5 // pred_check_branch
        %299 = sbr.rel (%p296) target = $region12
      $region11: #{tpu_custom_call.1} parent=5 // pred_region
        %s300 = ssub.s32 %s24, 1
        // Predicated region
        $region13: #{tpu_custom_call.1} parent=11 // pred_check
          %p301 = pneg %p71
        $region14: #{tpu_custom_call.1} parent=11 // pred_check_branch
          %303 = sbr.rel (%p301) target = $region16
        $region15: #{tpu_custom_call.1} parent=11 // pred_region
          _
        $region16: #{tpu_custom_call.1} parent=11 // pred_fallthru
          _
        // Predicated region
        $region17: #{tpu_custom_call.1} parent=11 // pred_check
          %p304 = pneg %p92
        $region18: #{tpu_custom_call.1} parent=11 // pred_check_branch
          %306 = sbr.rel (%p304) target = $region20
        $region19: #{tpu_custom_call.1} parent=11 // pred_region
          %s308 = ssub.s32 2048, 2048
          %309 = vsyncadd [#allocation6], %s308
          %s310 = sshll.u32 [#allocation5], 4
          %s311 = int_to_ptr.vmem [resolvable:$true] %s310
          %316 = dma.hbm_to_vmem [thread:$0]  %s2, 2048, %s311, [#allocation6], 256, 256, 16
        $region20: #{tpu_custom_call.1} parent=11 // pred_fallthru
          _
        // Predicated region
        $region21: #{tpu_custom_call.1} parent=11 // pred_check
          %p317 = pneg %p113
        $region22: #{tpu_custom_call.1} parent=11 // pred_check_branch
          %319 = sbr.rel (%p317) target = $region24
        $region23: #{tpu_custom_call.1} parent=11 // pred_region
          _
        $region24: #{tpu_custom_call.1} parent=11 // pred_fallthru
          _
        // Predicated region
        $region25: #{tpu_custom_call.1} parent=11 // pred_check
          %p320 = pneg %p134
        $region26: #{tpu_custom_call.1} parent=11 // pred_check_branch
          %322 = sbr.rel (%p320) target = $region28
        $region27: #{tpu_custom_call.1} parent=11 // pred_region
          %s324 = ssub.s32 1024, 1024
          %325 = vsyncadd [#allocation6], %s324
          %s326 = sshll.u32 [#allocation7], 4
          %s327 = int_to_ptr.vmem [resolvable:$true] %s326
          %332 = dma.hbm_to_vmem [thread:$0]  %s4, 1024, %s327, [#allocation6], 128, 128, 8
        $region28: #{tpu_custom_call.1} parent=11 // pred_fallthru
          _
        // Predicated region
        $region29: #{tpu_custom_call.1} parent=11 // pred_check
          %p333 = pneg %p155
        $region30: #{tpu_custom_call.1} parent=11 // pred_check_branch
          %335 = sbr.rel (%p333) target = $region32
        $region31: #{tpu_custom_call.1} parent=11 // pred_region
          _
        $region32: #{tpu_custom_call.1} parent=11 // pred_fallthru
          _
        // Predicated region
        $region33: #{tpu_custom_call.1} parent=11 // pred_check
          %p336 = pneg %p176
        $region34: #{tpu_custom_call.1} parent=11 // pred_check_branch
          %338 = sbr.rel (%p336) target = $region36
        $region35: #{tpu_custom_call.1} parent=11 // pred_region
          _
        $region36: #{tpu_custom_call.1} parent=11 // pred_fallthru
          _
        // Predicated region
        $region37: #{tpu_custom_call.1} parent=11 // pred_check
          %p339 = pneg %p197
        $region38: #{tpu_custom_call.1} parent=11 // pred_check_branch
          %341 = sbr.rel (%p339) target = $region40
        $region39: #{tpu_custom_call.1} parent=11 // pred_region
          _
        $region40: #{tpu_custom_call.1} parent=11 // pred_fallthru
          _
        // Predicated region
        $region41: #{tpu_custom_call.1} parent=11 // pred_check
          %p342 = pneg %p218
        $region42: #{tpu_custom_call.1} parent=11 // pred_check_branch
          %344 = sbr.rel (%p342) target = $region44
        $region43: #{tpu_custom_call.1} parent=11 // pred_region
          %s346 = ssub.s32 4608, 4608
          %347 = vsyncadd [#allocation9], %s346
          %s348 = sshll.u32 [#allocation8], 4
          %s349 = int_to_ptr.vmem [resolvable:$true] %s348
          %354 = dma.hbm_to_vmem [thread:$0]  %s8, 4608, %s349, [#allocation9], 384, 384, 24
        $region44: #{tpu_custom_call.1} parent=11 // pred_fallthru
          _
        // Predicated region
        $region45: #{tpu_custom_call.1} parent=11 // pred_check
          %p355 = pneg %p239
        $region46: #{tpu_custom_call.1} parent=11 // pred_check_branch
          %357 = sbr.rel (%p355) target = $region48
        $region47: #{tpu_custom_call.1} parent=11 // pred_region
          _
        $region48: #{tpu_custom_call.1} parent=11 // pred_fallthru
          _
        // Predicated region
        $region49: #{tpu_custom_call.1} parent=11 // pred_check
          %p358 = pneg %p260
        $region50: #{tpu_custom_call.1} parent=11 // pred_check_branch
          %360 = sbr.rel (%p358) target = $region52
        $region51: #{tpu_custom_call.1} parent=11 // pred_region
          _
        $region52: #{tpu_custom_call.1} parent=11 // pred_fallthru
          _
      $region12: #{tpu_custom_call.1} parent=5 // pred_fallthru
        _
      %p361 = scmp.lt.s32.totalorder %s24, 2
      // Predicated region
      $region53: #{tpu_custom_call.1} parent=5 // pred_check
        %p362 = pneg %p361
      $region54: #{tpu_custom_call.1} parent=5 // pred_check_branch
        %364 = sbr.rel (%p362) target = $region56
      $region55: #{tpu_custom_call.1} parent=5 // pred_region
        // Predicated region
        $region57: #{tpu_custom_call.1} parent=55 // pred_check
          %p365 = pneg %p44
        $region58: #{tpu_custom_call.1} parent=55 // pred_check_branch
          %367 = sbr.rel (%p365) target = $region60
        $region59: #{tpu_custom_call.1} parent=55 // pred_region
          %s368 = sand.u32 %s34, 1
          %s369 = scalar_lea.sflag [#allocation4], %s368
          %s370 = sand.u32 %s34, 1
          %s371 = smul.addr %s370, 8
          %s372 = scalar_lea.vmem [#allocation3], %s371
          %s374 = ssub.s32 128, 128
          %375 = vsyncadd %s369, %s374
          %s376 = smul.addr %s24, 128
          %s377 = scalar_lea.hbm %s0, %s376
          %s379 = sshll.u32 %s372, 4
          %s380 = int_to_ptr.vmem [resolvable:$true] %s379
          %382 = dma.hbm_to_vmem [thread:$0]  %s377, 128, %s380, %s369
        $region60: #{tpu_custom_call.1} parent=55 // pred_fallthru
          _
      $region56: #{tpu_custom_call.1} parent=5 // pred_fallthru
        _
      %p383 = scmp.le.s32.totalorder 1, %s24
      %p384 = scmp.lt.s32.totalorder %s24, 3
      %p385 = pnand %p383, %p384
      %p386 = pneg %p385
      // Predicated region
      $region61: #{tpu_custom_call.1} parent=5 // pred_check
        _
      $region62: #{tpu_custom_call.1} parent=5 // pred_check_branch
        %388 = sbr.rel (%p385) target = $region64
      $region63: #{tpu_custom_call.1} parent=5 // pred_region
        %s389 = ssub.s32 %s24, 1
        %s390 = sand.u32 %s37, 1
        %s391 = scalar_lea.sflag [#allocation4], %s390
        %s392 = sand.u32 %s37, 1
        %s393 = smul.addr %s392, 8
        %s394 = scalar_lea.vmem [#allocation3], %s393
        // Predicated region
        $region65: #{tpu_custom_call.1} parent=63 // pred_check
          %p395 = pneg %p50
        $region66: #{tpu_custom_call.1} parent=63 // pred_check_branch
          %397 = sbr.rel (%p395) target = $region68
        $region67: #{tpu_custom_call.1} parent=63 // pred_region
          %398 = dma.done %s391, 128
        $region68: #{tpu_custom_call.1} parent=63 // pred_fallthru
          _
        // Predicated region
        $region69: #{tpu_custom_call.1} parent=63 // pred_check
          %p399 = pneg %p92
        $region70: #{tpu_custom_call.1} parent=63 // pred_check_branch
          %401 = sbr.rel (%p399) target = $region72
        $region71: #{tpu_custom_call.1} parent=63 // pred_region
          %402 = dma.done [#allocation6], 2048
        $region72: #{tpu_custom_call.1} parent=63 // pred_fallthru
          _
        // Predicated region
        $region73: #{tpu_custom_call.1} parent=63 // pred_check
          %p403 = pneg %p134
        $region74: #{tpu_custom_call.1} parent=63 // pred_check_branch
          %405 = sbr.rel (%p403) target = $region76
        $region75: #{tpu_custom_call.1} parent=63 // pred_region
          %406 = dma.done [#allocation6], 1024
        $region76: #{tpu_custom_call.1} parent=63 // pred_fallthru
          _
        // Predicated region
        $region77: #{tpu_custom_call.1} parent=63 // pred_check
          %p407 = pneg %p218
        $region78: #{tpu_custom_call.1} parent=63 // pred_check_branch
          %409 = sbr.rel (%p407) target = $region80
        $region79: #{tpu_custom_call.1} parent=63 // pred_region
          %410 = dma.done [#allocation9], 4608
        $region80: #{tpu_custom_call.1} parent=63 // pred_fallthru
          _
        %s411 = sand.u32 %s37, 1
        %s412 = scalar_lea.sflag [#allocation4], %s411
        %s413 = sand.u32 %s37, 1
        %s414 = smul.addr %s413, 8
        %s415 = scalar_lea.vmem [#allocation3], %s414
        %p416 = pneg %p50
        %p417 = pneg %p47
        %p418 = pneg %p71
        %p419 = pneg %p68
        %p420 = pneg %p92
        %p421 = pneg %p89
        %p422 = pneg %p113
        %p423 = pneg %p110
        %p424 = pneg %p134
        %p425 = pneg %p131
        %p426 = pneg %p155
        %p427 = pneg %p152
        %p428 = pneg %p176
        %p429 = pneg %p173
        %p430 = pneg %p197
        %p431 = pneg %p194
        %p432 = pneg %p218
        %p433 = pneg %p215
        %p434 = pneg %p239
        %p435 = pneg %p236
        %p436 = pneg %p260
        %p437 = pneg %p257
        %p438 = pneg %p286
        %p439 = pneg %p283
        %p440 = scmp.lt.s32.totalorder %s29, 1
        %s441 = scalar_select %p440, %s29, 1
        %s442 = smul.addr %s441, 8
        %s443 = smul.addr %s442, 8
        %s444 = scalar_lea.vmem %s11, %s443
        %p445 = scmp.lt.s32.totalorder %s29, 1
        %s446 = scalar_select %p445, %s29, 1
        %s447 = smul.addr %s446, 8
        %s448 = smul.addr %s447, 8
        %s449 = scalar_lea.vmem %s11, %s448
        %v450 = vld [vmem:[%s394] sm:$0xff]
        %v451 = vld [vmem:[%s1] sm:$0x3]
        %453 = vset.pattern.permute.xlu0 0
        %454 = vperm.xlu0 %453, %v450
        %v455 = vpop.permute.xlu0 %454
        %v458 = vlaneseq
        %v459 = vshrl.u32 %v458, 7
        %v460 = vsub.s32 0, %v459
        %v461 = vrot.slane %v451, %v460
        %v462 = vlaneseq
        %v463 = vshrl.u32 %v462, 7
        %v464 = vsub.s32 1, %v463
        %v465 = vrot.slane %v451, %v464
        %v468 = vmul.f32 %v455, %v461
        %v469 = vmul.f32 %v455, %v465
        %v470 = vld [vmem:[%s3] sm:$0x3]
        %v472 = vlaneseq
        %v473 = vshrl.u32 %v472, 7
        %v474 = vsub.s32 0, %v473
        %v475 = vrot.slane %v470, %v474
        %v476 = vlaneseq
        %v477 = vshrl.u32 %v476, 7
        %v478 = vsub.s32 1, %v477
        %v479 = vrot.slane %v470, %v478
        %v482 = vadd.f32 %v468, %v475
        %v483 = vadd.f32 %v469, %v479
        %v484 = vld [vmem:[#allocation5] sm:$0xff]
        %v485 = vld [vmem:[#allocation5 + $0x8] sm:$0xff]
        %v486 = vld [vmem:[#allocation5 + $0x10] sm:$0xff]
        %v487 = vld [vmem:[#allocation5 + $0x18] sm:$0xff]
        %v488 = vld [vmem:[#allocation5 + $0x20] sm:$0xff]
        %v489 = vld [vmem:[#allocation5 + $0x28] sm:$0xff]
        %v490 = vld [vmem:[#allocation5 + $0x30] sm:$0xff]
        %v491 = vld [vmem:[#allocation5 + $0x38] sm:$0xff]
        %v492 = vld [vmem:[#allocation5 + $0x40] sm:$0xff]
        %v493 = vld [vmem:[#allocation5 + $0x48] sm:$0xff]
        %v494 = vld [vmem:[#allocation5 + $0x50] sm:$0xff]
        %v495 = vld [vmem:[#allocation5 + $0x58] sm:$0xff]
        %v496 = vld [vmem:[#allocation5 + $0x60] sm:$0xff]
        %v497 = vld [vmem:[#allocation5 + $0x68] sm:$0xff]
        %v498 = vld [vmem:[#allocation5 + $0x70] sm:$0xff]
        %v499 = vld [vmem:[#allocation5 + $0x78] sm:$0xff]
        %vm500 = vcmask 523264
        %v502 = vsel %vm500, 0.0, 0
        %504 = vmatprep.subr.mxu0 0.0
        %505 = vmatpush1.msra.mxu0 0.0
        %506 = vmatprep.subr.mxu0 0.0
        %507 = vmatpush1.msra.mxu0 0.0
        %508 = vmatprep.subr.mxu0 0.0
        %509 = vmatpush1.msra.mxu0 0.0
        %510 = vmatprep.subr.mxu0 0.0
        %511 = vmatpush1.msra.mxu0 0.0
        %512 = vmatprep.subr.mxu0 0.0
        %513 = vmatpush1.msra.mxu0 0.0
        %514 = vmatprep.subr.mxu0 0.0
        %515 = vmatpush1.msra.mxu0 0.0
        %516 = vmatprep.subr.mxu0 0.0
        %517 = vmatpush1.msra.mxu0 0.0
        %518 = vmatprep.subr.mxu0 0.0
        %519 = vmatpush1.msra.mxu0 0.0
        %520 = vmatprep.subr.mxu0 %v499
        %521 = vmatpush1.msra.mxu0 %v498
        %522 = vmatprep.subr.mxu0 %v497
        %523 = vmatpush1.msra.mxu0 %v496
        %524 = vmatprep.subr.mxu0 %v495
        %525 = vmatpush1.msra.mxu0 %v494
        %526 = vmatprep.subr.mxu0 %v493
        %527 = vmatpush1.msra.mxu0 %v492
        %528 = vmatprep.subr.mxu0 %v491
        %529 = vmatpush1.msra.mxu0 %v490
        %530 = vmatprep.subr.mxu0 %v489
        %531 = vmatpush1.msra.mxu0 %v488
        %532 = vmatprep.subr.mxu0 %v487
        %533 = vmatpush1.msra.mxu0 %v486
        %534 = vmatprep.subr.mxu0 %v485
        %535 = vmatpush1.msra.mxu0 %v484
        %536 = vmatprep.subr.mxu0 0.0
        %537 = vmatpush2.msra.mxu0 0.0
        %538 = vmatprep.subr.mxu0 0.0
        %539 = vmatpush2.msra.mxu0 0.0
        %540 = vmatprep.subr.mxu0 0.0
        %541 = vmatpush2.msra.mxu0 0.0
        %542 = vmatprep.subr.mxu0 0.0
        %543 = vmatpush2.msra.mxu0 0.0
        %544 = vmatprep.subr.mxu0 0.0
        %545 = vmatpush2.msra.mxu0 0.0
        %546 = vmatprep.subr.mxu0 0.0
        %547 = vmatpush2.msra.mxu0 0.0
        %548 = vmatprep.subr.mxu0 0.0
        %549 = vmatpush2.msra.mxu0 0.0
        %550 = vmatprep.subr.mxu0 0.0
        %551 = vmatpush2.msra.mxu0 0.0
        %552 = vmatprep.subr.mxu0 0.0
        %553 = vmatpush2.msra.mxu0 0.0
        %554 = vmatprep.subr.mxu0 0.0
        %555 = vmatpush2.msra.mxu0 0.0
        %556 = vmatprep.subr.mxu0 0.0
        %557 = vmatpush2.msra.mxu0 0.0
        %558 = vmatprep.subr.mxu0 0.0
        %559 = vmatpush2.msra.mxu0 0.0
        %560 = vmatprep.subr.mxu0 0.0
        %561 = vmatpush2.msra.mxu0 0.0
        %562 = vmatprep.subr.mxu0 0.0
        %563 = vmatpush2.msra.mxu0 0.0
        %564 = vmatprep.subr.mxu0 0.0
        %565 = vmatpush2.msra.mxu0 0.0
        %566 = vmatprep.subr.mxu0 0.0
        %567 = vmatpush2.msra.mxu0 0.0
        %568 = vmatprep.mubr.f32.mxu0 0.0
        %569 = vmatmul.mubr.f32.gmra.mxu0 %v502
        %v570 = vpop.f32.mrf.mxu0
        %v571 = vadd.f32 0.0, %v570
        %v572 = vpop.f32.mrf.mxu0
        %v573 = vadd.f32 0.0, %v572
        %574 = vdwg.mxu0
        %v575 = vadd.f32 %v482, %v571
        %v576 = vadd.f32 %v483, %v573
        %v577 = vxor.u32 %v575, 2147483648
        %v578 = vxor.u32 %v576, 2147483648
        %v579 = vmul.f32 %v577, 1.442695
        %v580 = vpow.pop %v579
        %v581 = vmul.f32 %v578, 1.442695
        %v582 = vpow.pop %v581
        %v583 = vadd.f32 %v580, 1.0
        %v584 = vadd.f32 %v582, 1.0
        %v585 = vrcp.pop %v583
        %v586 = vmul.f32 1.0, %v585
        %v587 = vrcp.pop %v584
        %v588 = vmul.f32 1.0, %v587
        %v589 = vtanh.pop %v576
        %v590 = vmul.f32 %v586, 0.0
        %592 = vrot.lane.b32.xlu0 %v589, 64
        %v593 = vpop.permute.xlu0 %592
        %v595 = vmul.f32 %v586, %v593
        %597 = vrot.lane.b32.xlu0 %v595, 64
        %v598 = vpop.permute.xlu0 %597
        %v600 = vadd.f32 %v590, %v598
        %v601 = vtanh.pop %v600
        %603 = vrot.lane.b32.xlu0 %v601, 64
        %v604 = vpop.permute.xlu0 %603
        %v606 = vmul.f32 %v588, %v604
        %607 = vset.pattern.permute.xlu0 1
        %608 = vperm.xlu0 %607, %v450
        %v609 = vpop.permute.xlu0 %608
        %v611 = vmul.f32 %v609, %v461
        %v612 = vmul.f32 %v609, %v465
        %v613 = vadd.f32 %v611, %v475
        %v614 = vadd.f32 %v612, %v479
        %v616 = vsel %vm500, %v606, 0
        %618 = vmatprep.subr.mxu0 0.0
        %619 = vmatpush1.msra.mxu0 0.0
        %620 = vmatprep.subr.mxu0 0.0
        %621 = vmatpush1.msra.mxu0 0.0
        %622 = vmatprep.subr.mxu0 0.0
        %623 = vmatpush1.msra.mxu0 0.0
        %624 = vmatprep.subr.mxu0 0.0
        %625 = vmatpush1.msra.mxu0 0.0
        %626 = vmatprep.subr.mxu0 0.0
        %627 = vmatpush1.msra.mxu0 0.0
        %628 = vmatprep.subr.mxu0 0.0
        %629 = vmatpush1.msra.mxu0 0.0
        %630 = vmatprep.subr.mxu0 0.0
        %631 = vmatpush1.msra.mxu0 0.0
        %632 = vmatprep.subr.mxu0 0.0
        %633 = vmatpush1.msra.mxu0 0.0
        %634 = vmatprep.subr.mxu0 %v499
        %635 = vmatpush1.msra.mxu0 %v498
        %636 = vmatprep.subr.mxu0 %v497
        %637 = vmatpush1.msra.mxu0 %v496
        %638 = vmatprep.subr.mxu0 %v495
        %639 = vmatpush1.msra.mxu0 %v494
        %640 = vmatprep.subr.mxu0 %v493
        %641 = vmatpush1.msra.mxu0 %v492
        %642 = vmatprep.subr.mxu0 %v491
        %643 = vmatpush1.msra.mxu0 %v490
        %644 = vmatprep.subr.mxu0 %v489
        %645 = vmatpush1.msra.mxu0 %v488
        %646 = vmatprep.subr.mxu0 %v487
        %647 = vmatpush1.msra.mxu0 %v486
        %648 = vmatprep.subr.mxu0 %v485
        %649 = vmatpush1.msra.mxu0 %v484
        %650 = vmatprep.subr.mxu0 0.0
        %651 = vmatpush2.msra.mxu0 0.0
        %652 = vmatprep.subr.mxu0 0.0
        %653 = vmatpush2.msra.mxu0 0.0
        %654 = vmatprep.subr.mxu0 0.0
        %655 = vmatpush2.msra.mxu0 0.0
        %656 = vmatprep.subr.mxu0 0.0
        %657 = vmatpush2.msra.mxu0 0.0
        %658 = vmatprep.subr.mxu0 0.0
        %659 = vmatpush2.msra.mxu0 0.0
        %660 = vmatprep.subr.mxu0 0.0
        %661 = vmatpush2.msra.mxu0 0.0
        %662 = vmatprep.subr.mxu0 0.0
        %663 = vmatpush2.msra.mxu0 0.0
        %664 = vmatprep.subr.mxu0 0.0
        %665 = vmatpush2.msra.mxu0 0.0
        %666 = vmatprep.subr.mxu0 0.0
        %667 = vmatpush2.msra.mxu0 0.0
        %668 = vmatprep.subr.mxu0 0.0
        %669 = vmatpush2.msra.mxu0 0.0
        %670 = vmatprep.subr.mxu0 0.0
        %671 = vmatpush2.msra.mxu0 0.0
        %672 = vmatprep.subr.mxu0 0.0
        %673 = vmatpush2.msra.mxu0 0.0
        %674 = vmatprep.subr.mxu0 0.0
        %675 = vmatpush2.msra.mxu0 0.0
        %676 = vmatprep.subr.mxu0 0.0
        %677 = vmatpush2.msra.mxu0 0.0
        %678 = vmatprep.subr.mxu0 0.0
        %679 = vmatpush2.msra.mxu0 0.0
        %680 = vmatprep.subr.mxu0 0.0
        %681 = vmatpush2.msra.mxu0 0.0
        %682 = vmatprep.mubr.f32.mxu0 0.0
        %683 = vmatmul.mubr.f32.gmra.mxu0 %v616
        %v684 = vpop.f32.mrf.mxu0
        %v685 = vadd.f32 0.0, %v684
        %v686 = vpop.f32.mrf.mxu0
        %v687 = vadd.f32 0.0, %v686
        %688 = vdwg.mxu0
        %v689 = vadd.f32 %v613, %v685
        %v690 = vadd.f32 %v614, %v687
        %v691 = vxor.u32 %v689, 2147483648
        %v692 = vxor.u32 %v690, 2147483648
        %v693 = vmul.f32 %v691, 1.442695
        %v694 = vpow.pop %v693
        %v695 = vmul.f32 %v692, 1.442695
        %v696 = vpow.pop %v695
        %v697 = vadd.f32 %v694, 1.0
        %v698 = vadd.f32 %v696, 1.0
        %v699 = vrcp.pop %v697
        %v700 = vmul.f32 1.0, %v699
        %v701 = vrcp.pop %v698
        %v702 = vmul.f32 1.0, %v701
        %v703 = vtanh.pop %v690
        %v704 = vmul.f32 %v700, %v600
        %706 = vrot.lane.b32.xlu0 %v703, 64
        %v707 = vpop.permute.xlu0 %706
        %v709 = vmul.f32 %v700, %v707
        %711 = vrot.lane.b32.xlu0 %v709, 64
        %v712 = vpop.permute.xlu0 %711
        %v714 = vadd.f32 %v704, %v712
        %v715 = vtanh.pop %v714
        %717 = vrot.lane.b32.xlu0 %v715, 64
        %v718 = vpop.permute.xlu0 %717
        %v720 = vmul.f32 %v702, %v718
        %721 = vset.pattern.permute.xlu0 2
        %722 = vperm.xlu0 %721, %v450
        %v723 = vpop.permute.xlu0 %722
        %v725 = vmul.f32 %v723, %v461
        %v726 = vmul.f32 %v723, %v465
        %v727 = vadd.f32 %v725, %v475
        %v728 = vadd.f32 %v726, %v479
        %v730 = vsel %vm500, %v720, 0
        %732 = vmatprep.subr.mxu0 0.0
        %733 = vmatpush1.msra.mxu0 0.0
        %734 = vmatprep.subr.mxu0 0.0
        %735 = vmatpush1.msra.mxu0 0.0
        %736 = vmatprep.subr.mxu0 0.0
        %737 = vmatpush1.msra.mxu0 0.0
        %738 = vmatprep.subr.mxu0 0.0
        %739 = vmatpush1.msra.mxu0 0.0
        %740 = vmatprep.subr.mxu0 0.0
        %741 = vmatpush1.msra.mxu0 0.0
        %742 = vmatprep.subr.mxu0 0.0
        %743 = vmatpush1.msra.mxu0 0.0
        %744 = vmatprep.subr.mxu0 0.0
        %745 = vmatpush1.msra.mxu0 0.0
        %746 = vmatprep.subr.mxu0 0.0
        %747 = vmatpush1.msra.mxu0 0.0
        %748 = vmatprep.subr.mxu0 %v499
        %749 = vmatpush1.msra.mxu0 %v498
        %750 = vmatprep.subr.mxu0 %v497
        %751 = vmatpush1.msra.mxu0 %v496
        %752 = vmatprep.subr.mxu0 %v495
        %753 = vmatpush1.msra.mxu0 %v494
        %754 = vmatprep.subr.mxu0 %v493
        %755 = vmatpush1.msra.mxu0 %v492
        %756 = vmatprep.subr.mxu0 %v491
        %757 = vmatpush1.msra.mxu0 %v490
        %758 = vmatprep.subr.mxu0 %v489
        %759 = vmatpush1.msra.mxu0 %v488
        %760 = vmatprep.subr.mxu0 %v487
        %761 = vmatpush1.msra.mxu0 %v486
        %762 = vmatprep.subr.mxu0 %v485
        %763 = vmatpush1.msra.mxu0 %v484
        %764 = vmatprep.subr.mxu0 0.0
        %765 = vmatpush2.msra.mxu0 0.0
        %766 = vmatprep.subr.mxu0 0.0
        %767 = vmatpush2.msra.mxu0 0.0
        %768 = vmatprep.subr.mxu0 0.0
        %769 = vmatpush2.msra.mxu0 0.0
        %770 = vmatprep.subr.mxu0 0.0
        %771 = vmatpush2.msra.mxu0 0.0
        %772 = vmatprep.subr.mxu0 0.0
        %773 = vmatpush2.msra.mxu0 0.0
        %774 = vmatprep.subr.mxu0 0.0
        %775 = vmatpush2.msra.mxu0 0.0
        %776 = vmatprep.subr.mxu0 0.0
        %777 = vmatpush2.msra.mxu0 0.0
        %778 = vmatprep.subr.mxu0 0.0
        %779 = vmatpush2.msra.mxu0 0.0
        %780 = vmatprep.subr.mxu0 0.0
        %781 = vmatpush2.msra.mxu0 0.0
        %782 = vmatprep.subr.mxu0 0.0
        %783 = vmatpush2.msra.mxu0 0.0
        %784 = vmatprep.subr.mxu0 0.0
        %785 = vmatpush2.msra.mxu0 0.0
        %786 = vmatprep.subr.mxu0 0.0
        %787 = vmatpush2.msra.mxu0 0.0
        %788 = vmatprep.subr.mxu0 0.0
        %789 = vmatpush2.msra.mxu0 0.0
        %790 = vmatprep.subr.mxu0 0.0
        %791 = vmatpush2.msra.mxu0 0.0
        %792 = vmatprep.subr.mxu0 0.0
        %793 = vmatpush2.msra.mxu0 0.0
        %794 = vmatprep.subr.mxu0 0.0
        %795 = vmatpush2.msra.mxu0 0.0
        %796 = vmatprep.mubr.f32.mxu0 0.0
        %797 = vmatmul.mubr.f32.gmra.mxu0 %v730
        %v798 = vpop.f32.mrf.mxu0
        %v799 = vadd.f32 0.0, %v798
        %v800 = vpop.f32.mrf.mxu0
        %v801 = vadd.f32 0.0, %v800
        %802 = vdwg.mxu0
        %v803 = vadd.f32 %v727, %v799
        %v804 = vadd.f32 %v728, %v801
        %v805 = vxor.u32 %v803, 2147483648
        %v806 = vxor.u32 %v804, 2147483648
        %v807 = vmul.f32 %v805, 1.442695
        %v808 = vpow.pop %v807
        %v809 = vmul.f32 %v806, 1.442695
        %v810 = vpow.pop %v809
        %v811 = vadd.f32 %v808, 1.0
        %v812 = vadd.f32 %v810, 1.0
        %v813 = vrcp.pop %v811
        %v814 = vmul.f32 1.0, %v813
        %v815 = vrcp.pop %v812
        %v816 = vmul.f32 1.0, %v815
        %v817 = vtanh.pop %v804
        %v818 = vmul.f32 %v814, %v714
        %820 = vrot.lane.b32.xlu0 %v817, 64
        %v821 = vpop.permute.xlu0 %820
        %v823 = vmul.f32 %v814, %v821
        %825 = vrot.lane.b32.xlu0 %v823, 64
        %v826 = vpop.permute.xlu0 %825
        %v828 = vadd.f32 %v818, %v826
        %v829 = vtanh.pop %v828
        %831 = vrot.lane.b32.xlu0 %v829, 64
        %v832 = vpop.permute.xlu0 %831
        %v834 = vmul.f32 %v816, %v832
        %835 = vset.pattern.permute.xlu0 3
        %836 = vperm.xlu0 %835, %v450
        %v837 = vpop.permute.xlu0 %836
        %v839 = vmul.f32 %v837, %v461
        %v840 = vmul.f32 %v837, %v465
        %v841 = vadd.f32 %v839, %v475
        %v842 = vadd.f32 %v840, %v479
        %v844 = vsel %vm500, %v834, 0
        %846 = vmatprep.subr.mxu0 0.0
        %847 = vmatpush1.msra.mxu0 0.0
        %848 = vmatprep.subr.mxu0 0.0
        %849 = vmatpush1.msra.mxu0 0.0
        %850 = vmatprep.subr.mxu0 0.0
        %851 = vmatpush1.msra.mxu0 0.0
        %852 = vmatprep.subr.mxu0 0.0
        %853 = vmatpush1.msra.mxu0 0.0
        %854 = vmatprep.subr.mxu0 0.0
        %855 = vmatpush1.msra.mxu0 0.0
        %856 = vmatprep.subr.mxu0 0.0
        %857 = vmatpush1.msra.mxu0 0.0
        %858 = vmatprep.subr.mxu0 0.0
        %859 = vmatpush1.msra.mxu0 0.0
        %860 = vmatprep.subr.mxu0 0.0
        %861 = vmatpush1.msra.mxu0 0.0
        %862 = vmatprep.subr.mxu0 %v499
        %863 = vmatpush1.msra.mxu0 %v498
        %864 = vmatprep.subr.mxu0 %v497
        %865 = vmatpush1.msra.mxu0 %v496
        %866 = vmatprep.subr.mxu0 %v495
        %867 = vmatpush1.msra.mxu0 %v494
        %868 = vmatprep.subr.mxu0 %v493
        %869 = vmatpush1.msra.mxu0 %v492
        %870 = vmatprep.subr.mxu0 %v491
        %871 = vmatpush1.msra.mxu0 %v490
        %872 = vmatprep.subr.mxu0 %v489
        %873 = vmatpush1.msra.mxu0 %v488
        %874 = vmatprep.subr.mxu0 %v487
        %875 = vmatpush1.msra.mxu0 %v486
        %876 = vmatprep.subr.mxu0 %v485
        %877 = vmatpush1.msra.mxu0 %v484
        %878 = vmatprep.subr.mxu0 0.0
        %879 = vmatpush2.msra.mxu0 0.0
        %880 = vmatprep.subr.mxu0 0.0
        %881 = vmatpush2.msra.mxu0 0.0
        %882 = vmatprep.subr.mxu0 0.0
        %883 = vmatpush2.msra.mxu0 0.0
        %884 = vmatprep.subr.mxu0 0.0
        %885 = vmatpush2.msra.mxu0 0.0
        %886 = vmatprep.subr.mxu0 0.0
        %887 = vmatpush2.msra.mxu0 0.0
        %888 = vmatprep.subr.mxu0 0.0
        %889 = vmatpush2.msra.mxu0 0.0
        %890 = vmatprep.subr.mxu0 0.0
        %891 = vmatpush2.msra.mxu0 0.0
        %892 = vmatprep.subr.mxu0 0.0
        %893 = vmatpush2.msra.mxu0 0.0
        %894 = vmatprep.subr.mxu0 0.0
        %895 = vmatpush2.msra.mxu0 0.0
        %896 = vmatprep.subr.mxu0 0.0
        %897 = vmatpush2.msra.mxu0 0.0
        %898 = vmatprep.subr.mxu0 0.0
        %899 = vmatpush2.msra.mxu0 0.0
        %900 = vmatprep.subr.mxu0 0.0
        %901 = vmatpush2.msra.mxu0 0.0
        %902 = vmatprep.subr.mxu0 0.0
        %903 = vmatpush2.msra.mxu0 0.0
        %904 = vmatprep.subr.mxu0 0.0
        %905 = vmatpush2.msra.mxu0 0.0
        %906 = vmatprep.subr.mxu0 0.0
        %907 = vmatpush2.msra.mxu0 0.0
        %908 = vmatprep.subr.mxu0 0.0
        %909 = vmatpush2.msra.mxu0 0.0
        %910 = vmatprep.mubr.f32.mxu0 0.0
        %911 = vmatmul.mubr.f32.gmra.mxu0 %v844
        %v912 = vpop.f32.mrf.mxu0
        %v913 = vadd.f32 0.0, %v912
        %v914 = vpop.f32.mrf.mxu0
        %v915 = vadd.f32 0.0, %v914
        %916 = vdwg.mxu0
        %v917 = vadd.f32 %v841, %v913
        %v918 = vadd.f32 %v842, %v915
        %v919 = vxor.u32 %v917, 2147483648
        %v920 = vxor.u32 %v918, 2147483648
        %v921 = vmul.f32 %v919, 1.442695
        %v922 = vpow.pop %v921
        %v923 = vmul.f32 %v920, 1.442695
        %v924 = vpow.pop %v923
        %v925 = vadd.f32 %v922, 1.0
        %v926 = vadd.f32 %v924, 1.0
        %v927 = vrcp.pop %v925
        %v928 = vmul.f32 1.0, %v927
        %v929 = vrcp.pop %v926
        %v930 = vmul.f32 1.0, %v929
        %v931 = vtanh.pop %v918
        %v932 = vmul.f32 %v928, %v828
        %934 = vrot.lane.b32.xlu0 %v931, 64
        %v935 = vpop.permute.xlu0 %934
        %v937 = vmul.f32 %v928, %v935
        %939 = vrot.lane.b32.xlu0 %v937, 64
        %v940 = vpop.permute.xlu0 %939
        %v942 = vadd.f32 %v932, %v940
        %v943 = vtanh.pop %v942
        %945 = vrot.lane.b32.xlu0 %v943, 64
        %v946 = vpop.permute.xlu0 %945
        %v948 = vmul.f32 %v930, %v946
        %949 = vset.pattern.permute.xlu0 4
        %950 = vperm.xlu0 %949, %v450
        %v951 = vpop.permute.xlu0 %950
        %v953 = vmul.f32 %v951, %v461
        %v954 = vmul.f32 %v951, %v465
        %v955 = vadd.f32 %v953, %v475
        %v956 = vadd.f32 %v954, %v479
        %v958 = vsel %vm500, %v948, 0
        %960 = vmatprep.subr.mxu0 0.0
        %961 = vmatpush1.msra.mxu0 0.0
        %962 = vmatprep.subr.mxu0 0.0
        %963 = vmatpush1.msra.mxu0 0.0
        %964 = vmatprep.subr.mxu0 0.0
        %965 = vmatpush1.msra.mxu0 0.0
        %966 = vmatprep.subr.mxu0 0.0
        %967 = vmatpush1.msra.mxu0 0.0
        %968 = vmatprep.subr.mxu0 0.0
        %969 = vmatpush1.msra.mxu0 0.0
        %970 = vmatprep.subr.mxu0 0.0
        %971 = vmatpush1.msra.mxu0 0.0
        %972 = vmatprep.subr.mxu0 0.0
        %973 = vmatpush1.msra.mxu0 0.0
        %974 = vmatprep.subr.mxu0 0.0
        %975 = vmatpush1.msra.mxu0 0.0
        %976 = vmatprep.subr.mxu0 %v499
        %977 = vmatpush1.msra.mxu0 %v498
        %978 = vmatprep.subr.mxu0 %v497
        %979 = vmatpush1.msra.mxu0 %v496
        %980 = vmatprep.subr.mxu0 %v495
        %981 = vmatpush1.msra.mxu0 %v494
        %982 = vmatprep.subr.mxu0 %v493
        %983 = vmatpush1.msra.mxu0 %v492
        %984 = vmatprep.subr.mxu0 %v491
        %985 = vmatpush1.msra.mxu0 %v490
        %986 = vmatprep.subr.mxu0 %v489
        %987 = vmatpush1.msra.mxu0 %v488
        %988 = vmatprep.subr.mxu0 %v487
        %989 = vmatpush1.msra.mxu0 %v486
        %990 = vmatprep.subr.mxu0 %v485
        %991 = vmatpush1.msra.mxu0 %v484
        %992 = vmatprep.subr.mxu0 0.0
        %993 = vmatpush2.msra.mxu0 0.0
        %994 = vmatprep.subr.mxu0 0.0
        %995 = vmatpush2.msra.mxu0 0.0
        %996 = vmatprep.subr.mxu0 0.0
        %997 = vmatpush2.msra.mxu0 0.0
        %998 = vmatprep.subr.mxu0 0.0
        %999 = vmatpush2.msra.mxu0 0.0
        %1000 = vmatprep.subr.mxu0 0.0
        %1001 = vmatpush2.msra.mxu0 0.0
        %1002 = vmatprep.subr.mxu0 0.0
        %1003 = vmatpush2.msra.mxu0 0.0
        %1004 = vmatprep.subr.mxu0 0.0
        %1005 = vmatpush2.msra.mxu0 0.0
        %1006 = vmatprep.subr.mxu0 0.0
        %1007 = vmatpush2.msra.mxu0 0.0
        %1008 = vmatprep.subr.mxu0 0.0
        %1009 = vmatpush2.msra.mxu0 0.0
        %1010 = vmatprep.subr.mxu0 0.0
        %1011 = vmatpush2.msra.mxu0 0.0
        %1012 = vmatprep.subr.mxu0 0.0
        %1013 = vmatpush2.msra.mxu0 0.0
        %1014 = vmatprep.subr.mxu0 0.0
        %1015 = vmatpush2.msra.mxu0 0.0
        %1016 = vmatprep.subr.mxu0 0.0
        %1017 = vmatpush2.msra.mxu0 0.0
        %1018 = vmatprep.subr.mxu0 0.0
        %1019 = vmatpush2.msra.mxu0 0.0
        %1020 = vmatprep.subr.mxu0 0.0
        %1021 = vmatpush2.msra.mxu0 0.0
        %1022 = vmatprep.subr.mxu0 0.0
        %1023 = vmatpush2.msra.mxu0 0.0
        %1024 = vmatprep.mubr.f32.mxu0 0.0
        %1025 = vmatmul.mubr.f32.gmra.mxu0 %v958
        %v1026 = vpop.f32.mrf.mxu0
        %v1027 = vadd.f32 0.0, %v1026
        %v1028 = vpop.f32.mrf.mxu0
        %v1029 = vadd.f32 0.0, %v1028
        %1030 = vdwg.mxu0
        %v1031 = vadd.f32 %v955, %v1027
        %v1032 = vadd.f32 %v956, %v1029
        %v1033 = vxor.u32 %v1031, 2147483648
        %v1034 = vxor.u32 %v1032, 2147483648
        %v1035 = vmul.f32 %v1033, 1.442695
        %v1036 = vpow.pop %v1035
        %v1037 = vmul.f32 %v1034, 1.442695
        %v1038 = vpow.pop %v1037
        %v1039 = vadd.f32 %v1036, 1.0
        %v1040 = vadd.f32 %v1038, 1.0
        %v1041 = vrcp.pop %v1039
        %v1042 = vmul.f32 1.0, %v1041
        %v1043 = vrcp.pop %v1040
        %v1044 = vmul.f32 1.0, %v1043
        %v1045 = vtanh.pop %v1032
        %v1046 = vmul.f32 %v1042, %v942
        %1048 = vrot.lane.b32.xlu0 %v1045, 64
        %v1049 = vpop.permute.xlu0 %1048
        %v1051 = vmul.f32 %v1042, %v1049
        %1053 = vrot.lane.b32.xlu0 %v1051, 64
        %v1054 = vpop.permute.xlu0 %1053
        %v1056 = vadd.f32 %v1046, %v1054
        %v1057 = vtanh.pop %v1056
        %1059 = vrot.lane.b32.xlu0 %v1057, 64
        %v1060 = vpop.permute.xlu0 %1059
        %v1062 = vmul.f32 %v1044, %v1060
        %1063 = vset.pattern.permute.xlu0 5
        %1064 = vperm.xlu0 %1063, %v450
        %v1065 = vpop.permute.xlu0 %1064
        %v1067 = vmul.f32 %v1065, %v461
        %v1068 = vmul.f32 %v1065, %v465
        %v1069 = vadd.f32 %v1067, %v475
        %v1070 = vadd.f32 %v1068, %v479
        %v1072 = vsel %vm500, %v1062, 0
        %1074 = vmatprep.subr.mxu0 0.0
        %1075 = vmatpush1.msra.mxu0 0.0
        %1076 = vmatprep.subr.mxu0 0.0
        %1077 = vmatpush1.msra.mxu0 0.0
        %1078 = vmatprep.subr.mxu0 0.0
        %1079 = vmatpush1.msra.mxu0 0.0
        %1080 = vmatprep.subr.mxu0 0.0
        %1081 = vmatpush1.msra.mxu0 0.0
        %1082 = vmatprep.subr.mxu0 0.0
        %1083 = vmatpush1.msra.mxu0 0.0
        %1084 = vmatprep.subr.mxu0 0.0
        %1085 = vmatpush1.msra.mxu0 0.0
        %1086 = vmatprep.subr.mxu0 0.0
        %1087 = vmatpush1.msra.mxu0 0.0
        %1088 = vmatprep.subr.mxu0 0.0
        %1089 = vmatpush1.msra.mxu0 0.0
        %1090 = vmatprep.subr.mxu0 %v499
        %1091 = vmatpush1.msra.mxu0 %v498
        %1092 = vmatprep.subr.mxu0 %v497
        %1093 = vmatpush1.msra.mxu0 %v496
        %1094 = vmatprep.subr.mxu0 %v495
        %1095 = vmatpush1.msra.mxu0 %v494
        %1096 = vmatprep.subr.mxu0 %v493
        %1097 = vmatpush1.msra.mxu0 %v492
        %1098 = vmatprep.subr.mxu0 %v491
        %1099 = vmatpush1.msra.mxu0 %v490
        %1100 = vmatprep.subr.mxu0 %v489
        %1101 = vmatpush1.msra.mxu0 %v488
        %1102 = vmatprep.subr.mxu0 %v487
        %1103 = vmatpush1.msra.mxu0 %v486
        %1104 = vmatprep.subr.mxu0 %v485
        %1105 = vmatpush1.msra.mxu0 %v484
        %1106 = vmatprep.subr.mxu0 0.0
        %1107 = vmatpush2.msra.mxu0 0.0
        %1108 = vmatprep.subr.mxu0 0.0
        %1109 = vmatpush2.msra.mxu0 0.0
        %1110 = vmatprep.subr.mxu0 0.0
        %1111 = vmatpush2.msra.mxu0 0.0
        %1112 = vmatprep.subr.mxu0 0.0
        %1113 = vmatpush2.msra.mxu0 0.0
        %1114 = vmatprep.subr.mxu0 0.0
        %1115 = vmatpush2.msra.mxu0 0.0
        %1116 = vmatprep.subr.mxu0 0.0
        %1117 = vmatpush2.msra.mxu0 0.0
        %1118 = vmatprep.subr.mxu0 0.0
        %1119 = vmatpush2.msra.mxu0 0.0
        %1120 = vmatprep.subr.mxu0 0.0
        %1121 = vmatpush2.msra.mxu0 0.0
        %1122 = vmatprep.subr.mxu0 0.0
        %1123 = vmatpush2.msra.mxu0 0.0
        %1124 = vmatprep.subr.mxu0 0.0
        %1125 = vmatpush2.msra.mxu0 0.0
        %1126 = vmatprep.subr.mxu0 0.0
        %1127 = vmatpush2.msra.mxu0 0.0
        %1128 = vmatprep.subr.mxu0 0.0
        %1129 = vmatpush2.msra.mxu0 0.0
        %1130 = vmatprep.subr.mxu0 0.0
        %1131 = vmatpush2.msra.mxu0 0.0
        %1132 = vmatprep.subr.mxu0 0.0
        %1133 = vmatpush2.msra.mxu0 0.0
        %1134 = vmatprep.subr.mxu0 0.0
        %1135 = vmatpush2.msra.mxu0 0.0
        %1136 = vmatprep.subr.mxu0 0.0
        %1137 = vmatpush2.msra.mxu0 0.0
        %1138 = vmatprep.mubr.f32.mxu0 0.0
        %1139 = vmatmul.mubr.f32.gmra.mxu0 %v1072
        %v1140 = vpop.f32.mrf.mxu0
        %v1141 = vadd.f32 0.0, %v1140
        %v1142 = vpop.f32.mrf.mxu0
        %v1143 = vadd.f32 0.0, %v1142
        %1144 = vdwg.mxu0
        %v1145 = vadd.f32 %v1069, %v1141
        %v1146 = vadd.f32 %v1070, %v1143
        %v1147 = vxor.u32 %v1145, 2147483648
        %v1148 = vxor.u32 %v1146, 2147483648
        %v1149 = vmul.f32 %v1147, 1.442695
        %v1150 = vpow.pop %v1149
        %v1151 = vmul.f32 %v1148, 1.442695
        %v1152 = vpow.pop %v1151
        %v1153 = vadd.f32 %v1150, 1.0
        %v1154 = vadd.f32 %v1152, 1.0
        %v1155 = vrcp.pop %v1153
        %v1156 = vmul.f32 1.0, %v1155
        %v1157 = vrcp.pop %v1154
        %v1158 = vmul.f32 1.0, %v1157
        %v1159 = vtanh.pop %v1146
        %v1160 = vmul.f32 %v1156, %v1056
        %1162 = vrot.lane.b32.xlu0 %v1159, 64
        %v1163 = vpop.permute.xlu0 %1162
        %v1165 = vmul.f32 %v1156, %v1163
        %1167 = vrot.lane.b32.xlu0 %v1165, 64
        %v1168 = vpop.permute.xlu0 %1167
        %v1170 = vadd.f32 %v1160, %v1168
        %v1171 = vtanh.pop %v1170
        %1173 = vrot.lane.b32.xlu0 %v1171, 64
        %v1174 = vpop.permute.xlu0 %1173
        %v1176 = vmul.f32 %v1158, %v1174
        %1177 = vset.pattern.permute.xlu0 6
        %1178 = vperm.xlu0 %1177, %v450
        %v1179 = vpop.permute.xlu0 %1178
        %v1181 = vmul.f32 %v1179, %v461
        %v1182 = vmul.f32 %v1179, %v465
        %v1183 = vadd.f32 %v1181, %v475
        %v1184 = vadd.f32 %v1182, %v479
        %v1186 = vsel %vm500, %v1176, 0
        %1188 = vmatprep.subr.mxu0 0.0
        %1189 = vmatpush1.msra.mxu0 0.0
        %1190 = vmatprep.subr.mxu0 0.0
        %1191 = vmatpush1.msra.mxu0 0.0
        %1192 = vmatprep.subr.mxu0 0.0
        %1193 = vmatpush1.msra.mxu0 0.0
        %1194 = vmatprep.subr.mxu0 0.0
        %1195 = vmatpush1.msra.mxu0 0.0
        %1196 = vmatprep.subr.mxu0 0.0
        %1197 = vmatpush1.msra.mxu0 0.0
        %1198 = vmatprep.subr.mxu0 0.0
        %1199 = vmatpush1.msra.mxu0 0.0
        %1200 = vmatprep.subr.mxu0 0.0
        %1201 = vmatpush1.msra.mxu0 0.0
        %1202 = vmatprep.subr.mxu0 0.0
        %1203 = vmatpush1.msra.mxu0 0.0
        %1204 = vmatprep.subr.mxu0 %v499
        %1205 = vmatpush1.msra.mxu0 %v498
        %1206 = vmatprep.subr.mxu0 %v497
        %1207 = vmatpush1.msra.mxu0 %v496
        %1208 = vmatprep.subr.mxu0 %v495
        %1209 = vmatpush1.msra.mxu0 %v494
        %1210 = vmatprep.subr.mxu0 %v493
        %1211 = vmatpush1.msra.mxu0 %v492
        %1212 = vmatprep.subr.mxu0 %v491
        %1213 = vmatpush1.msra.mxu0 %v490
        %1214 = vmatprep.subr.mxu0 %v489
        %1215 = vmatpush1.msra.mxu0 %v488
        %1216 = vmatprep.subr.mxu0 %v487
        %1217 = vmatpush1.msra.mxu0 %v486
        %1218 = vmatprep.subr.mxu0 %v485
        %1219 = vmatpush1.msra.mxu0 %v484
        %1220 = vmatprep.subr.mxu0 0.0
        %1221 = vmatpush2.msra.mxu0 0.0
        %1222 = vmatprep.subr.mxu0 0.0
        %1223 = vmatpush2.msra.mxu0 0.0
        %1224 = vmatprep.subr.mxu0 0.0
        %1225 = vmatpush2.msra.mxu0 0.0
        %1226 = vmatprep.subr.mxu0 0.0
        %1227 = vmatpush2.msra.mxu0 0.0
        %1228 = vmatprep.subr.mxu0 0.0
        %1229 = vmatpush2.msra.mxu0 0.0
        %1230 = vmatprep.subr.mxu0 0.0
        %1231 = vmatpush2.msra.mxu0 0.0
        %1232 = vmatprep.subr.mxu0 0.0
        %1233 = vmatpush2.msra.mxu0 0.0
        %1234 = vmatprep.subr.mxu0 0.0
        %1235 = vmatpush2.msra.mxu0 0.0
        %1236 = vmatprep.subr.mxu0 0.0
        %1237 = vmatpush2.msra.mxu0 0.0
        %1238 = vmatprep.subr.mxu0 0.0
        %1239 = vmatpush2.msra.mxu0 0.0
        %1240 = vmatprep.subr.mxu0 0.0
        %1241 = vmatpush2.msra.mxu0 0.0
        %1242 = vmatprep.subr.mxu0 0.0
        %1243 = vmatpush2.msra.mxu0 0.0
        %1244 = vmatprep.subr.mxu0 0.0
        %1245 = vmatpush2.msra.mxu0 0.0
        %1246 = vmatprep.subr.mxu0 0.0
        %1247 = vmatpush2.msra.mxu0 0.0
        %1248 = vmatprep.subr.mxu0 0.0
        %1249 = vmatpush2.msra.mxu0 0.0
        %1250 = vmatprep.subr.mxu0 0.0
        %1251 = vmatpush2.msra.mxu0 0.0
        %1252 = vmatprep.mubr.f32.mxu0 0.0
        %1253 = vmatmul.mubr.f32.gmra.mxu0 %v1186
        %v1254 = vpop.f32.mrf.mxu0
        %v1255 = vadd.f32 0.0, %v1254
        %v1256 = vpop.f32.mrf.mxu0
        %v1257 = vadd.f32 0.0, %v1256
        %1258 = vdwg.mxu0
        %v1259 = vadd.f32 %v1183, %v1255
        %v1260 = vadd.f32 %v1184, %v1257
        %v1261 = vxor.u32 %v1259, 2147483648
        %v1262 = vxor.u32 %v1260, 2147483648
        %v1263 = vmul.f32 %v1261, 1.442695
        %v1264 = vpow.pop %v1263
        %v1265 = vmul.f32 %v1262, 1.442695
        %v1266 = vpow.pop %v1265
        %v1267 = vadd.f32 %v1264, 1.0
        %v1268 = vadd.f32 %v1266, 1.0
        %v1269 = vrcp.pop %v1267
        %v1270 = vmul.f32 1.0, %v1269
        %v1271 = vrcp.pop %v1268
        %v1272 = vmul.f32 1.0, %v1271
        %v1273 = vtanh.pop %v1260
        %v1274 = vmul.f32 %v1270, %v1170
        %1276 = vrot.lane.b32.xlu0 %v1273, 64
        %v1277 = vpop.permute.xlu0 %1276
        %v1279 = vmul.f32 %v1270, %v1277
        %1281 = vrot.lane.b32.xlu0 %v1279, 64
        %v1282 = vpop.permute.xlu0 %1281
        %v1284 = vadd.f32 %v1274, %v1282
        %v1285 = vtanh.pop %v1284
        %1287 = vrot.lane.b32.xlu0 %v1285, 64
        %v1288 = vpop.permute.xlu0 %1287
        %v1290 = vmul.f32 %v1272, %v1288
        %1291 = vset.pattern.permute.xlu0 7
        %1292 = vperm.xlu0 %1291, %v450
        %v1293 = vpop.permute.xlu0 %1292
        %v1295 = vmul.f32 %v1293, %v461
        %v1296 = vmul.f32 %v1293, %v465
        %v1297 = vadd.f32 %v1295, %v475
        %v1298 = vadd.f32 %v1296, %v479
        %v1300 = vsel %vm500, %v1290, 0
        %1302 = vmatprep.subr.mxu0 0.0
        %1303 = vmatpush1.msra.mxu0 0.0
        %1304 = vmatprep.subr.mxu0 0.0
        %1305 = vmatpush1.msra.mxu0 0.0
        %1306 = vmatprep.subr.mxu0 0.0
        %1307 = vmatpush1.msra.mxu0 0.0
        %1308 = vmatprep.subr.mxu0 0.0
        %1309 = vmatpush1.msra.mxu0 0.0
        %1310 = vmatprep.subr.mxu0 0.0
        %1311 = vmatpush1.msra.mxu0 0.0
        %1312 = vmatprep.subr.mxu0 0.0
        %1313 = vmatpush1.msra.mxu0 0.0
        %1314 = vmatprep.subr.mxu0 0.0
        %1315 = vmatpush1.msra.mxu0 0.0
        %1316 = vmatprep.subr.mxu0 0.0
        %1317 = vmatpush1.msra.mxu0 0.0
        %1318 = vmatprep.subr.mxu0 %v499
        %1319 = vmatpush1.msra.mxu0 %v498
        %1320 = vmatprep.subr.mxu0 %v497
        %1321 = vmatpush1.msra.mxu0 %v496
        %1322 = vmatprep.subr.mxu0 %v495
        %1323 = vmatpush1.msra.mxu0 %v494
        %1324 = vmatprep.subr.mxu0 %v493
        %1325 = vmatpush1.msra.mxu0 %v492
        %1326 = vmatprep.subr.mxu0 %v491
        %1327 = vmatpush1.msra.mxu0 %v490
        %1328 = vmatprep.subr.mxu0 %v489
        %1329 = vmatpush1.msra.mxu0 %v488
        %1330 = vmatprep.subr.mxu0 %v487
        %1331 = vmatpush1.msra.mxu0 %v486
        %1332 = vmatprep.subr.mxu0 %v485
        %1333 = vmatpush1.msra.mxu0 %v484
        %1334 = vmatprep.subr.mxu0 0.0
        %1335 = vmatpush2.msra.mxu0 0.0
        %1336 = vmatprep.subr.mxu0 0.0
        %1337 = vmatpush2.msra.mxu0 0.0
        %1338 = vmatprep.subr.mxu0 0.0
        %1339 = vmatpush2.msra.mxu0 0.0
        %1340 = vmatprep.subr.mxu0 0.0
        %1341 = vmatpush2.msra.mxu0 0.0
        %1342 = vmatprep.subr.mxu0 0.0
        %1343 = vmatpush2.msra.mxu0 0.0
        %1344 = vmatprep.subr.mxu0 0.0
        %1345 = vmatpush2.msra.mxu0 0.0
        %1346 = vmatprep.subr.mxu0 0.0
        %1347 = vmatpush2.msra.mxu0 0.0
        %1348 = vmatprep.subr.mxu0 0.0
        %1349 = vmatpush2.msra.mxu0 0.0
        %1350 = vmatprep.subr.mxu0 0.0
        %1351 = vmatpush2.msra.mxu0 0.0
        %1352 = vmatprep.subr.mxu0 0.0
        %1353 = vmatpush2.msra.mxu0 0.0
        %1354 = vmatprep.subr.mxu0 0.0
        %1355 = vmatpush2.msra.mxu0 0.0
        %1356 = vmatprep.subr.mxu0 0.0
        %1357 = vmatpush2.msra.mxu0 0.0
        %1358 = vmatprep.subr.mxu0 0.0
        %1359 = vmatpush2.msra.mxu0 0.0
        %1360 = vmatprep.subr.mxu0 0.0
        %1361 = vmatpush2.msra.mxu0 0.0
        %1362 = vmatprep.subr.mxu0 0.0
        %1363 = vmatpush2.msra.mxu0 0.0
        %1364 = vmatprep.subr.mxu0 0.0
        %1365 = vmatpush2.msra.mxu0 0.0
        %1366 = vmatprep.mubr.f32.mxu0 0.0
        %1367 = vmatmul.mubr.f32.gmra.mxu0 %v1300
        %v1368 = vpop.f32.mrf.mxu0
        %v1369 = vadd.f32 0.0, %v1368
        %v1370 = vpop.f32.mrf.mxu0
        %v1371 = vadd.f32 0.0, %v1370
        %1372 = vdwg.mxu0
        %v1373 = vadd.f32 %v1297, %v1369
        %v1374 = vadd.f32 %v1298, %v1371
        %v1375 = vxor.u32 %v1373, 2147483648
        %v1376 = vxor.u32 %v1374, 2147483648
        %v1377 = vmul.f32 %v1375, 1.442695
        %v1378 = vpow.pop %v1377
        %v1379 = vmul.f32 %v1376, 1.442695
        %v1380 = vpow.pop %v1379
        %v1381 = vadd.f32 %v1378, 1.0
        %v1382 = vadd.f32 %v1380, 1.0
        %v1383 = vrcp.pop %v1381
        %v1384 = vmul.f32 1.0, %v1383
        %v1385 = vrcp.pop %v1382
        %v1386 = vmul.f32 1.0, %v1385
        %v1387 = vtanh.pop %v1374
        %v1388 = vmul.f32 %v1384, %v1284
        %1390 = vrot.lane.b32.xlu0 %v1387, 64
        %v1391 = vpop.permute.xlu0 %1390
        %v1393 = vmul.f32 %v1384, %v1391
        %1395 = vrot.lane.b32.xlu0 %v1393, 64
        %v1396 = vpop.permute.xlu0 %1395
        %v1398 = vadd.f32 %v1388, %v1396
        %v1399 = vtanh.pop %v1398
        %1401 = vrot.lane.b32.xlu0 %v1399, 64
        %v1402 = vpop.permute.xlu0 %1401
        %v1404 = vmul.f32 %v1386, %v1402
        %v1405 = vld [vmem:[#allocation7] sm:$0xff]
        %v1406 = vld [vmem:[#allocation7 + $0x8] sm:$0xff]
        %v1407 = vld [vmem:[#allocation7 + $0x10] sm:$0xff]
        %v1408 = vld [vmem:[#allocation7 + $0x18] sm:$0xff]
        %v1409 = vld [vmem:[#allocation7 + $0x20] sm:$0xff]
        %v1410 = vld [vmem:[#allocation7 + $0x28] sm:$0xff]
        %v1411 = vld [vmem:[#allocation7 + $0x30] sm:$0xff]
        %v1412 = vld [vmem:[#allocation7 + $0x38] sm:$0xff]
        %v1413 = vld [vmem:[%s5] sm:$0x1]
        %v1415 = vlaneseq
        %v1416 = vshrl.u32 %v1415, 7
        %v1417 = vsub.s32 0, %v1416
        %v1418 = vrot.slane %v1413, %v1417
        %v1421 = vsel %vm500, %v1404, 0
        %1423 = vmatprep.subr.mxu0 0.0
        %1424 = vmatpush1.msra.mxu0 0.0
        %1425 = vmatprep.subr.mxu0 0.0
        %1426 = vmatpush1.msra.mxu0 0.0
        %1427 = vmatprep.subr.mxu0 0.0
        %1428 = vmatpush1.msra.mxu0 0.0
        %1429 = vmatprep.subr.mxu0 0.0
        %1430 = vmatpush1.msra.mxu0 0.0
        %1431 = vmatprep.subr.mxu0 0.0
        %1432 = vmatpush1.msra.mxu0 0.0
        %1433 = vmatprep.subr.mxu0 0.0
        %1434 = vmatpush1.msra.mxu0 0.0
        %1435 = vmatprep.subr.mxu0 0.0
        %1436 = vmatpush1.msra.mxu0 0.0
        %1437 = vmatprep.subr.mxu0 0.0
        %1438 = vmatpush1.msra.mxu0 0.0
        %1439 = vmatprep.subr.mxu0 0.0
        %1440 = vmatpush1.msra.mxu0 %v1412
        %1441 = vmatprep.subr.mxu0 0.0
        %1442 = vmatpush1.msra.mxu0 %v1411
        %1443 = vmatprep.subr.mxu0 0.0
        %1444 = vmatpush1.msra.mxu0 %v1410
        %1445 = vmatprep.subr.mxu0 0.0
        %1446 = vmatpush1.msra.mxu0 %v1409
        %1447 = vmatprep.subr.mxu0 0.0
        %1448 = vmatpush1.msra.mxu0 %v1408
        %1449 = vmatprep.subr.mxu0 0.0
        %1450 = vmatpush1.msra.mxu0 %v1407
        %1451 = vmatprep.subr.mxu0 0.0
        %1452 = vmatpush1.msra.mxu0 %v1406
        %1453 = vmatprep.subr.mxu0 0.0
        %1454 = vmatpush1.msra.mxu0 %v1405
        %1455 = vmatprep.subr.mxu0 0.0
        %1456 = vmatpush2.msra.mxu0 0.0
        %1457 = vmatprep.subr.mxu0 0.0
        %1458 = vmatpush2.msra.mxu0 0.0
        %1459 = vmatprep.subr.mxu0 0.0
        %1460 = vmatpush2.msra.mxu0 0.0
        %1461 = vmatprep.subr.mxu0 0.0
        %1462 = vmatpush2.msra.mxu0 0.0
        %1463 = vmatprep.subr.mxu0 0.0
        %1464 = vmatpush2.msra.mxu0 0.0
        %1465 = vmatprep.subr.mxu0 0.0
        %1466 = vmatpush2.msra.mxu0 0.0
        %1467 = vmatprep.subr.mxu0 0.0
        %1468 = vmatpush2.msra.mxu0 0.0
        %1469 = vmatprep.subr.mxu0 0.0
        %1470 = vmatpush2.msra.mxu0 0.0
        %1471 = vmatprep.subr.mxu0 0.0
        %1472 = vmatpush2.msra.mxu0 0.0
        %1473 = vmatprep.subr.mxu0 0.0
        %1474 = vmatpush2.msra.mxu0 0.0
        %1475 = vmatprep.subr.mxu0 0.0
        %1476 = vmatpush2.msra.mxu0 0.0
        %1477 = vmatprep.subr.mxu0 0.0
        %1478 = vmatpush2.msra.mxu0 0.0
        %1479 = vmatprep.subr.mxu0 0.0
        %1480 = vmatpush2.msra.mxu0 0.0
        %1481 = vmatprep.subr.mxu0 0.0
        %1482 = vmatpush2.msra.mxu0 0.0
        %1483 = vmatprep.subr.mxu0 0.0
        %1484 = vmatpush2.msra.mxu0 0.0
        %1485 = vmatprep.subr.mxu0 0.0
        %1486 = vmatpush2.msra.mxu0 0.0
        %1487 = vmatprep.mubr.f32.mxu0 0.0
        %1488 = vmatmul.mubr.f32.gmra.mxu0 %v1421
        %v1489 = vpop.f32.mrf.mxu0
        %v1490 = vadd.f32 %v1418, %v1489
        %v1491 = vpop.f32.mrf.mxu0
        %1492 = vdwg.mxu0
        %v1493 = vxor.u32 %v1490, 2147483648
        %v1494 = vmul.f32 %v1493, 1.442695
        %v1495 = vpow.pop %v1494
        %v1496 = vadd.f32 %v1495, 1.0
        %v1497 = vrcp.pop %v1496
        %v1498 = vmul.f32 1.0, %v1497
        %v1499 = vtanh.pop %v1490
        %1501 = vrot.lane.b32.xlu0 %v1499, 32
        %v1502 = vpop.permute.xlu0 %1501
        %v1504 = vmul.f32 %v1498, %v1502
        %v1505 = vtanh.pop %v1504
        %1507 = vrot.lane.b32.xlu0 %v1505, 64
        %v1508 = vpop.permute.xlu0 %1507
        %v1510 = vmul.f32 %v1498, %v1508
        %v1511 = vld [vmem:[%s6] sm:$0xff]
        %v1512 = vld [vmem:[%s6 + $0x8] sm:$0xff]
        %v1513 = vld [vmem:[%s6 + $0x10] sm:$0xff]
        %v1514 = vld [vmem:[%s6 + $0x18] sm:$0xff]
        %v1515 = vld [vmem:[%s6 + $0x20] sm:$0xff]
        %v1516 = vld [vmem:[%s6 + $0x28] sm:$0xff]
        %v1517 = vld [vmem:[%s6 + $0x30] sm:$0xff]
        %v1518 = vld [vmem:[%s6 + $0x38] sm:$0xff]
        %v1519 = vld [vmem:[%s6 + $0x40] sm:$0xff]
        %v1520 = vld [vmem:[%s6 + $0x48] sm:$0xff]
        %v1521 = vld [vmem:[%s6 + $0x50] sm:$0xff]
        %v1522 = vld [vmem:[%s6 + $0x58] sm:$0xff]
        %v1523 = vld [vmem:[%s7] sm:$0x7]
        %v1525 = vlaneseq
        %v1526 = vshrl.u32 %v1525, 7
        %v1527 = vsub.s32 0, %v1526
        %v1528 = vrot.slane %v1523, %v1527
        %v1529 = vlaneseq
        %v1530 = vshrl.u32 %v1529, 7
        %v1531 = vsub.s32 1, %v1530
        %v1532 = vrot.slane %v1523, %v1531
        %v1533 = vlaneseq
        %v1534 = vshrl.u32 %v1533, 7
        %v1535 = vsub.s32 2, %v1534
        %v1536 = vrot.slane %v1523, %v1535
        %1541 = vrot.lane.b32.xlu0 %v1510, 64
        %v1542 = vpop.permute.xlu0 %1541
        %vm1543 = vcmask 261120
        %v1544 = vsel %vm1543, %v1542, 0
        %1546 = vmatprep.subr.mxu0 0.0
        %1547 = vmatpush1.msra.mxu0 0.0
        %1548 = vmatprep.subr.mxu0 0.0
        %1549 = vmatpush1.msra.mxu0 0.0
        %1550 = vmatprep.subr.mxu0 0.0
        %1551 = vmatpush1.msra.mxu0 0.0
        %1552 = vmatprep.subr.mxu0 0.0
        %1553 = vmatpush1.msra.mxu0 0.0
        %1554 = vmatprep.subr.mxu0 0.0
        %1555 = vmatpush1.msra.mxu0 0.0
        %1556 = vmatprep.subr.mxu0 0.0
        %1557 = vmatpush1.msra.mxu0 0.0
        %1558 = vmatprep.subr.mxu0 0.0
        %1559 = vmatpush1.msra.mxu0 0.0
        %1560 = vmatprep.subr.mxu0 0.0
        %1561 = vmatpush1.msra.mxu0 0.0
        %1562 = vmatprep.subr.mxu0 0.0
        %1563 = vmatpush1.msra.mxu0 0.0
        %1564 = vmatprep.subr.mxu0 0.0
        %1565 = vmatpush1.msra.mxu0 0.0
        %1566 = vmatprep.subr.mxu0 0.0
        %1567 = vmatpush1.msra.mxu0 0.0
        %1568 = vmatprep.subr.mxu0 0.0
        %1569 = vmatpush1.msra.mxu0 0.0
        %1570 = vmatprep.subr.mxu0 %v1521
        %1571 = vmatpush1.msra.mxu0 %v1520
        %1572 = vmatprep.subr.mxu0 %v1518
        %1573 = vmatpush1.msra.mxu0 %v1517
        %1574 = vmatprep.subr.mxu0 %v1515
        %1575 = vmatpush1.msra.mxu0 %v1514
        %1576 = vmatprep.subr.mxu0 %v1512
        %1577 = vmatpush1.msra.mxu0 %v1511
        %1578 = vmatprep.subr.mxu0 0.0
        %1579 = vmatpush2.msra.mxu0 0.0
        %1580 = vmatprep.subr.mxu0 0.0
        %1581 = vmatpush2.msra.mxu0 0.0
        %1582 = vmatprep.subr.mxu0 0.0
        %1583 = vmatpush2.msra.mxu0 0.0
        %1584 = vmatprep.subr.mxu0 0.0
        %1585 = vmatpush2.msra.mxu0 0.0
        %1586 = vmatprep.subr.mxu0 0.0
        %1587 = vmatpush2.msra.mxu0 0.0
        %1588 = vmatprep.subr.mxu0 0.0
        %1589 = vmatpush2.msra.mxu0 0.0
        %1590 = vmatprep.subr.mxu0 0.0
        %1591 = vmatpush2.msra.mxu0 0.0
        %1592 = vmatprep.subr.mxu0 0.0
        %1593 = vmatpush2.msra.mxu0 0.0
        %1594 = vmatprep.subr.mxu0 0.0
        %1595 = vmatpush2.msra.mxu0 0.0
        %1596 = vmatprep.subr.mxu0 0.0
        %1597 = vmatpush2.msra.mxu0 0.0
        %1598 = vmatprep.subr.mxu0 0.0
        %1599 = vmatpush2.msra.mxu0 0.0
        %1600 = vmatprep.subr.mxu0 0.0
        %1601 = vmatpush2.msra.mxu0 0.0
        %1602 = vmatprep.subr.mxu0 0.0
        %1603 = vmatpush2.msra.mxu0 0.0
        %1604 = vmatprep.subr.mxu0 0.0
        %1605 = vmatpush2.msra.mxu0 0.0
        %1606 = vmatprep.subr.mxu0 0.0
        %1607 = vmatpush2.msra.mxu0 0.0
        %1608 = vmatprep.subr.mxu0 0.0
        %1609 = vmatpush2.msra.mxu0 0.0
        %1610 = vmatprep.mubr.f32.mxu0 0.0
        %1611 = vmatmul.mubr.f32.gmra.mxu0 %v1544
        %v1612 = vpop.f32.mrf.mxu0
        %v1613 = vadd.f32 %v1528, %v1612
        %v1614 = vpop.f32.mrf.mxu0
        %v1615 = vadd.f32 %v1532, %v1614
        %1616 = vdwg.mxu0
        %1617 = vmatprep.subr.mxu0 0.0
        %1618 = vmatpush1.msra.mxu0 0.0
        %1619 = vmatprep.subr.mxu0 0.0
        %1620 = vmatpush1.msra.mxu0 0.0
        %1621 = vmatprep.subr.mxu0 0.0
        %1622 = vmatpush1.msra.mxu0 0.0
        %1623 = vmatprep.subr.mxu0 0.0
        %1624 = vmatpush1.msra.mxu0 0.0
        %1625 = vmatprep.subr.mxu0 0.0
        %1626 = vmatpush1.msra.mxu0 0.0
        %1627 = vmatprep.subr.mxu0 0.0
        %1628 = vmatpush1.msra.mxu0 0.0
        %1629 = vmatprep.subr.mxu0 0.0
        %1630 = vmatpush1.msra.mxu0 0.0
        %1631 = vmatprep.subr.mxu0 0.0
        %1632 = vmatpush1.msra.mxu0 0.0
        %1633 = vmatprep.subr.mxu0 0.0
        %1634 = vmatpush1.msra.mxu0 0.0
        %1635 = vmatprep.subr.mxu0 0.0
        %1636 = vmatpush1.msra.mxu0 0.0
        %1637 = vmatprep.subr.mxu0 0.0
        %1638 = vmatpush1.msra.mxu0 0.0
        %1639 = vmatprep.subr.mxu0 0.0
        %1640 = vmatpush1.msra.mxu0 0.0
        %1641 = vmatprep.subr.mxu0 0.0
        %1642 = vmatpush1.msra.mxu0 %v1522
        %1643 = vmatprep.subr.mxu0 0.0
        %1644 = vmatpush1.msra.mxu0 %v1519
        %1645 = vmatprep.subr.mxu0 0.0
        %1646 = vmatpush1.msra.mxu0 %v1516
        %1647 = vmatprep.subr.mxu0 0.0
        %1648 = vmatpush1.msra.mxu0 %v1513
        %1649 = vmatprep.subr.mxu0 0.0
        %1650 = vmatpush2.msra.mxu0 0.0
        %1651 = vmatprep.subr.mxu0 0.0
        %1652 = vmatpush2.msra.mxu0 0.0
        %1653 = vmatprep.subr.mxu0 0.0
        %1654 = vmatpush2.msra.mxu0 0.0
        %1655 = vmatprep.subr.mxu0 0.0
        %1656 = vmatpush2.msra.mxu0 0.0
        %1657 = vmatprep.subr.mxu0 0.0
        %1658 = vmatpush2.msra.mxu0 0.0
        %1659 = vmatprep.subr.mxu0 0.0
        %1660 = vmatpush2.msra.mxu0 0.0
        %1661 = vmatprep.subr.mxu0 0.0
        %1662 = vmatpush2.msra.mxu0 0.0
        %1663 = vmatprep.subr.mxu0 0.0
        %1664 = vmatpush2.msra.mxu0 0.0
        %1665 = vmatprep.subr.mxu0 0.0
        %1666 = vmatpush2.msra.mxu0 0.0
        %1667 = vmatprep.subr.mxu0 0.0
        %1668 = vmatpush2.msra.mxu0 0.0
        %1669 = vmatprep.subr.mxu0 0.0
        %1670 = vmatpush2.msra.mxu0 0.0
        %1671 = vmatprep.subr.mxu0 0.0
        %1672 = vmatpush2.msra.mxu0 0.0
        %1673 = vmatprep.subr.mxu0 0.0
        %1674 = vmatpush2.msra.mxu0 0.0
        %1675 = vmatprep.subr.mxu0 0.0
        %1676 = vmatpush2.msra.mxu0 0.0
        %1677 = vmatprep.subr.mxu0 0.0
        %1678 = vmatpush2.msra.mxu0 0.0
        %1679 = vmatprep.subr.mxu0 0.0
        %1680 = vmatpush2.msra.mxu0 0.0
        %1681 = vmatprep.mubr.f32.mxu0 0.0
        %1682 = vmatmul.mubr.f32.gmra.mxu0 %v1544
        %v1683 = vpop.f32.mrf.mxu0
        %v1684 = vadd.f32 %v1536, %v1683
        %v1685 = vpop.f32.mrf.mxu0
        %1686 = vdwg.mxu0
        %v1687 = vxor.u32 %v1613, 2147483648
        %v1688 = vmul.f32 %v1687, 1.442695
        %v1689 = vpow.pop %v1688
        %v1690 = vadd.f32 %v1689, 1.0
        %v1691 = vrcp.pop %v1690
        %v1692 = vmul.f32 1.0, %v1691
        %v1693 = vxor.u32 %v1615, 2147483648
        %v1694 = vmul.f32 %v1693, 1.442695
        %v1695 = vpow.pop %v1694
        %v1696 = vadd.f32 %v1695, 1.0
        %v1697 = vrcp.pop %v1696
        %v1698 = vmul.f32 1.0, %v1697
        %v1699 = vtanh.pop %v1684
        %1701 = vrot.lane.b32.xlu0 %v1699, 96
        %v1702 = vpop.permute.xlu0 %1701
        %v1704 = vmul.f32 %v1692, %v1702
        %v1705 = vtanh.pop %v1704
        %1707 = vrot.lane.b32.xlu0 %v1705, 64
        %v1708 = vpop.permute.xlu0 %1707
        %v1710 = vmul.f32 %v1698, %v1708
        %1712 = vrot.lane.b32.xlu0 %v1710, 64
        %v1713 = vpop.permute.xlu0 %1712
        %v1715 = vsel %vm1543, %v1713, 0.0
        %v1716 = vsel %vm1543, %v1704, 0.0
        %v1717 = vld [vmem:[#allocation8] sm:$0xff]
        %v1718 = vld [vmem:[#allocation8 + $0x8] sm:$0xff]
        %v1719 = vld [vmem:[#allocation8 + $0x10] sm:$0xff]
        %v1720 = vld [vmem:[#allocation8 + $0x18] sm:$0xff]
        %v1721 = vld [vmem:[#allocation8 + $0x20] sm:$0xff]
        %v1722 = vld [vmem:[#allocation8 + $0x28] sm:$0xff]
        %v1723 = vld [vmem:[#allocation8 + $0x30] sm:$0xff]
        %v1724 = vld [vmem:[#allocation8 + $0x38] sm:$0xff]
        %v1725 = vld [vmem:[#allocation8 + $0x40] sm:$0xff]
        %v1726 = vld [vmem:[#allocation8 + $0x48] sm:$0xff]
        %v1727 = vld [vmem:[#allocation8 + $0x50] sm:$0xff]
        %v1728 = vld [vmem:[#allocation8 + $0x58] sm:$0xff]
        %v1729 = vld [vmem:[#allocation8 + $0x60] sm:$0xff]
        %v1730 = vld [vmem:[#allocation8 + $0x68] sm:$0xff]
        %v1731 = vld [vmem:[#allocation8 + $0x70] sm:$0xff]
        %v1732 = vld [vmem:[#allocation8 + $0x78] sm:$0xff]
        %v1733 = vld [vmem:[#allocation8 + $0x80] sm:$0xff]
        %v1734 = vld [vmem:[#allocation8 + $0x88] sm:$0xff]
        %v1735 = vld [vmem:[#allocation8 + $0x90] sm:$0xff]
        %v1736 = vld [vmem:[#allocation8 + $0x98] sm:$0xff]
        %v1737 = vld [vmem:[#allocation8 + $0xa0] sm:$0xff]
        %v1738 = vld [vmem:[#allocation8 + $0xa8] sm:$0xff]
        %v1739 = vld [vmem:[#allocation8 + $0xb0] sm:$0xff]
        %v1740 = vld [vmem:[#allocation8 + $0xb8] sm:$0xff]
        %v1741 = vld [vmem:[#allocation8 + $0xc0] sm:$0xff]
        %v1742 = vld [vmem:[#allocation8 + $0xc8] sm:$0xff]
        %v1743 = vld [vmem:[#allocation8 + $0xd0] sm:$0xff]
        %v1744 = vld [vmem:[#allocation8 + $0xd8] sm:$0xff]
        %v1745 = vld [vmem:[#allocation8 + $0xe0] sm:$0xff]
        %v1746 = vld [vmem:[#allocation8 + $0xe8] sm:$0xff]
        %v1747 = vld [vmem:[#allocation8 + $0xf0] sm:$0xff]
        %v1748 = vld [vmem:[#allocation8 + $0xf8] sm:$0xff]
        %v1749 = vld [vmem:[#allocation8 + $0x100] sm:$0xff]
        %v1750 = vld [vmem:[#allocation8 + $0x108] sm:$0xff]
        %v1751 = vld [vmem:[#allocation8 + $0x110] sm:$0xff]
        %v1752 = vld [vmem:[#allocation8 + $0x118] sm:$0xff]
        %vm1753 = vcmask 785408
        %v1755 = vsel %vm1753, %v1715, 0
        %1757 = vmatprep.subr.mxu0 0.0
        %1758 = vmatpush1.msra.mxu0 0.0
        %1759 = vmatprep.subr.mxu0 0.0
        %1760 = vmatpush1.msra.mxu0 0.0
        %1761 = vmatprep.subr.mxu0 0.0
        %1762 = vmatpush1.msra.mxu0 0.0
        %1763 = vmatprep.subr.mxu0 0.0
        %1764 = vmatpush1.msra.mxu0 0.0
        %1765 = vmatprep.subr.mxu0 %v1751
        %1766 = vmatpush1.msra.mxu0 %v1750
        %1767 = vmatprep.subr.mxu0 %v1748
        %1768 = vmatpush1.msra.mxu0 %v1747
        %1769 = vmatprep.subr.mxu0 %v1745
        %1770 = vmatpush1.msra.mxu0 %v1744
        %1771 = vmatprep.subr.mxu0 %v1742
        %1772 = vmatpush1.msra.mxu0 %v1741
        %1773 = vmatprep.subr.mxu0 %v1739
        %1774 = vmatpush1.msra.mxu0 %v1738
        %1775 = vmatprep.subr.mxu0 %v1736
        %1776 = vmatpush1.msra.mxu0 %v1735
        %1777 = vmatprep.subr.mxu0 %v1733
        %1778 = vmatpush1.msra.mxu0 %v1732
        %1779 = vmatprep.subr.mxu0 %v1730
        %1780 = vmatpush1.msra.mxu0 %v1729
        %1781 = vmatprep.subr.mxu0 %v1727
        %1782 = vmatpush1.msra.mxu0 %v1726
        %1783 = vmatprep.subr.mxu0 %v1724
        %1784 = vmatpush1.msra.mxu0 %v1723
        %1785 = vmatprep.subr.mxu0 %v1721
        %1786 = vmatpush1.msra.mxu0 %v1720
        %1787 = vmatprep.subr.mxu0 %v1718
        %1788 = vmatpush1.msra.mxu0 %v1717
        %1789 = vmatprep.subr.mxu0 0.0
        %1790 = vmatpush2.msra.mxu0 0.0
        %1791 = vmatprep.subr.mxu0 0.0
        %1792 = vmatpush2.msra.mxu0 0.0
        %1793 = vmatprep.subr.mxu0 0.0
        %1794 = vmatpush2.msra.mxu0 0.0
        %1795 = vmatprep.subr.mxu0 0.0
        %1796 = vmatpush2.msra.mxu0 0.0
        %1797 = vmatprep.subr.mxu0 0.0
        %1798 = vmatpush2.msra.mxu0 0.0
        %1799 = vmatprep.subr.mxu0 0.0
        %1800 = vmatpush2.msra.mxu0 0.0
        %1801 = vmatprep.subr.mxu0 0.0
        %1802 = vmatpush2.msra.mxu0 0.0
        %1803 = vmatprep.subr.mxu0 0.0
        %1804 = vmatpush2.msra.mxu0 0.0
        %1805 = vmatprep.subr.mxu0 0.0
        %1806 = vmatpush2.msra.mxu0 0.0
        %1807 = vmatprep.subr.mxu0 0.0
        %1808 = vmatpush2.msra.mxu0 0.0
        %1809 = vmatprep.subr.mxu0 0.0
        %1810 = vmatpush2.msra.mxu0 0.0
        %1811 = vmatprep.subr.mxu0 0.0
        %1812 = vmatpush2.msra.mxu0 0.0
        %1813 = vmatprep.subr.mxu0 0.0
        %1814 = vmatpush2.msra.mxu0 0.0
        %1815 = vmatprep.subr.mxu0 0.0
        %1816 = vmatpush2.msra.mxu0 0.0
        %1817 = vmatprep.subr.mxu0 0.0
        %1818 = vmatpush2.msra.mxu0 0.0
        %1819 = vmatprep.subr.mxu0 0.0
        %1820 = vmatpush2.msra.mxu0 0.0
        %1821 = vmatprep.mubr.f32.mxu0 0.0
        %1822 = vmatmul.mubr.f32.gmra.mxu0 %v1755
        %v1823 = vpop.f32.mrf.mxu0
        %v1824 = vadd.f32 %v1613, %v1823
        %v1825 = vpop.f32.mrf.mxu0
        %v1826 = vadd.f32 %v1615, %v1825
        %1827 = vdwg.mxu0
        %1828 = vmatprep.subr.mxu0 0.0
        %1829 = vmatpush1.msra.mxu0 0.0
        %1830 = vmatprep.subr.mxu0 0.0
        %1831 = vmatpush1.msra.mxu0 0.0
        %1832 = vmatprep.subr.mxu0 0.0
        %1833 = vmatpush1.msra.mxu0 0.0
        %1834 = vmatprep.subr.mxu0 0.0
        %1835 = vmatpush1.msra.mxu0 0.0
        %1836 = vmatprep.subr.mxu0 0.0
        %1837 = vmatpush1.msra.mxu0 %v1752
        %1838 = vmatprep.subr.mxu0 0.0
        %1839 = vmatpush1.msra.mxu0 %v1749
        %1840 = vmatprep.subr.mxu0 0.0
        %1841 = vmatpush1.msra.mxu0 %v1746
        %1842 = vmatprep.subr.mxu0 0.0
        %1843 = vmatpush1.msra.mxu0 %v1743
        %1844 = vmatprep.subr.mxu0 0.0
        %1845 = vmatpush1.msra.mxu0 %v1740
        %1846 = vmatprep.subr.mxu0 0.0
        %1847 = vmatpush1.msra.mxu0 %v1737
        %1848 = vmatprep.subr.mxu0 0.0
        %1849 = vmatpush1.msra.mxu0 %v1734
        %1850 = vmatprep.subr.mxu0 0.0
        %1851 = vmatpush1.msra.mxu0 %v1731
        %1852 = vmatprep.subr.mxu0 0.0
        %1853 = vmatpush1.msra.mxu0 %v1728
        %1854 = vmatprep.subr.mxu0 0.0
        %1855 = vmatpush1.msra.mxu0 %v1725
        %1856 = vmatprep.subr.mxu0 0.0
        %1857 = vmatpush1.msra.mxu0 %v1722
        %1858 = vmatprep.subr.mxu0 0.0
        %1859 = vmatpush1.msra.mxu0 %v1719
        %1860 = vmatprep.subr.mxu0 0.0
        %1861 = vmatpush2.msra.mxu0 0.0
        %1862 = vmatprep.subr.mxu0 0.0
        %1863 = vmatpush2.msra.mxu0 0.0
        %1864 = vmatprep.subr.mxu0 0.0
        %1865 = vmatpush2.msra.mxu0 0.0
        %1866 = vmatprep.subr.mxu0 0.0
        %1867 = vmatpush2.msra.mxu0 0.0
        %1868 = vmatprep.subr.mxu0 0.0
        %1869 = vmatpush2.msra.mxu0 0.0
        %1870 = vmatprep.subr.mxu0 0.0
        %1871 = vmatpush2.msra.mxu0 0.0
        %1872 = vmatprep.subr.mxu0 0.0
        %1873 = vmatpush2.msra.mxu0 0.0
        %1874 = vmatprep.subr.mxu0 0.0
        %1875 = vmatpush2.msra.mxu0 0.0
        %1876 = vmatprep.subr.mxu0 0.0
        %1877 = vmatpush2.msra.mxu0 0.0
        %1878 = vmatprep.subr.mxu0 0.0
        %1879 = vmatpush2.msra.mxu0 0.0
        %1880 = vmatprep.subr.mxu0 0.0
        %1881 = vmatpush2.msra.mxu0 0.0
        %1882 = vmatprep.subr.mxu0 0.0
        %1883 = vmatpush2.msra.mxu0 0.0
        %1884 = vmatprep.subr.mxu0 0.0
        %1885 = vmatpush2.msra.mxu0 0.0
        %1886 = vmatprep.subr.mxu0 0.0
        %1887 = vmatpush2.msra.mxu0 0.0
        %1888 = vmatprep.subr.mxu0 0.0
        %1889 = vmatpush2.msra.mxu0 0.0
        %1890 = vmatprep.subr.mxu0 0.0
        %1891 = vmatpush2.msra.mxu0 0.0
        %1892 = vmatprep.mubr.f32.mxu0 0.0
        %1893 = vmatmul.mubr.f32.gmra.mxu0 %v1755
        %v1894 = vpop.f32.mrf.mxu0
        %v1895 = vadd.f32 %v1684, %v1894
        %v1896 = vpop.f32.mrf.mxu0
        %1897 = vdwg.mxu0
        %v1898 = vxor.u32 %v1824, 2147483648
        %v1899 = vxor.u32 %v1826, 2147483648
        %v1900 = vxor.u32 %v1895, 2147483648
        %v1901 = vmul.f32 %v1898, 1.442695
        %v1902 = vpow.pop %v1901
        %v1903 = vmul.f32 %v1899, 1.442695
        %v1904 = vpow.pop %v1903
        %v1905 = vmul.f32 %v1900, 1.442695
        %v1906 = vpow.pop %v1905
        %v1907 = vadd.f32 %v1902, 1.0
        %v1908 = vadd.f32 %v1904, 1.0
        %v1909 = vadd.f32 %v1906, 1.0
        %v1910 = vrcp.pop %v1907
        %v1911 = vmul.f32 1.0, %v1910
        %v1912 = vrcp.pop %v1908
        %v1913 = vmul.f32 1.0, %v1912
        %v1914 = vrcp.pop %v1909
        %v1915 = vmul.f32 1.0, %v1914
        %v1916 = vtanh.pop %v1895
        %1918 = vrot.lane.b32.xlu0 %v1716, 96
        %v1919 = vpop.permute.xlu0 %1918
        %v1921 = vmul.f32 %v1911, %v1919
        %v1922 = vmul.f32 %v1913, %v1919
        %1924 = vrot.lane.b32.xlu0 %v1916, 96
        %v1925 = vpop.permute.xlu0 %1924
        %v1927 = vmul.f32 %v1911, %v1925
        %1929 = vrot.lane.b32.xlu0 %v1927, 96
        %v1930 = vpop.permute.xlu0 %1929
        %v1932 = vadd.f32 %v1921, %v1930
        %v1933 = vadd.f32 %v1922, %v1930
        %v1934 = vtanh.pop %v1932
        %v1935 = vtanh.pop %v1933
        %1938 = vrot.lane.b32.xlu0 %v1934, 96
        %v1939 = vpop.permute.xlu0 %1938
        %1940 = vrot.lane.b32.xlu0 %v1935, 96
        %v1941 = vpop.permute.xlu0 %1940
        %v1942 = vsel %vm1753, %v1939, %v1941
        %v1945 = vmul.f32 %v1913, %v1942
        %v1946 = vmul.f32 %v1915, %v1941
        %1949 = vrot.lane.b32.xlu0 %v1945, 64
        %v1950 = vpop.permute.xlu0 %1949
        %1951 = vrot.lane.b32.xlu0 %v1946, 64
        %v1952 = vpop.permute.xlu0 %1951
        %v1953 = vsel %vm500, %v1950, %v1952
        %v1954 = vsel %vm1753, %v1953, 0
        %1956 = vmatprep.subr.mxu0 0.0
        %1957 = vmatpush1.msra.mxu0 0.0
        %1958 = vmatprep.subr.mxu0 0.0
        %1959 = vmatpush1.msra.mxu0 0.0
        %1960 = vmatprep.subr.mxu0 0.0
        %1961 = vmatpush1.msra.mxu0 0.0
        %1962 = vmatprep.subr.mxu0 0.0
        %1963 = vmatpush1.msra.mxu0 0.0
        %1964 = vmatprep.subr.mxu0 %v1751
        %1965 = vmatpush1.msra.mxu0 %v1750
        %1966 = vmatprep.subr.mxu0 %v1748
        %1967 = vmatpush1.msra.mxu0 %v1747
        %1968 = vmatprep.subr.mxu0 %v1745
        %1969 = vmatpush1.msra.mxu0 %v1744
        %1970 = vmatprep.subr.mxu0 %v1742
        %1971 = vmatpush1.msra.mxu0 %v1741
        %1972 = vmatprep.subr.mxu0 %v1739
        %1973 = vmatpush1.msra.mxu0 %v1738
        %1974 = vmatprep.subr.mxu0 %v1736
        %1975 = vmatpush1.msra.mxu0 %v1735
        %1976 = vmatprep.subr.mxu0 %v1733
        %1977 = vmatpush1.msra.mxu0 %v1732
        %1978 = vmatprep.subr.mxu0 %v1730
        %1979 = vmatpush1.msra.mxu0 %v1729
        %1980 = vmatprep.subr.mxu0 %v1727
        %1981 = vmatpush1.msra.mxu0 %v1726
        %1982 = vmatprep.subr.mxu0 %v1724
        %1983 = vmatpush1.msra.mxu0 %v1723
        %1984 = vmatprep.subr.mxu0 %v1721
        %1985 = vmatpush1.msra.mxu0 %v1720
        %1986 = vmatprep.subr.mxu0 %v1718
        %1987 = vmatpush1.msra.mxu0 %v1717
        %1988 = vmatprep.subr.mxu0 0.0
        %1989 = vmatpush2.msra.mxu0 0.0
        %1990 = vmatprep.subr.mxu0 0.0
        %1991 = vmatpush2.msra.mxu0 0.0
        %1992 = vmatprep.subr.mxu0 0.0
        %1993 = vmatpush2.msra.mxu0 0.0
        %1994 = vmatprep.subr.mxu0 0.0
        %1995 = vmatpush2.msra.mxu0 0.0
        %1996 = vmatprep.subr.mxu0 0.0
        %1997 = vmatpush2.msra.mxu0 0.0
        %1998 = vmatprep.subr.mxu0 0.0
        %1999 = vmatpush2.msra.mxu0 0.0
        %2000 = vmatprep.subr.mxu0 0.0
        %2001 = vmatpush2.msra.mxu0 0.0
        %2002 = vmatprep.subr.mxu0 0.0
        %2003 = vmatpush2.msra.mxu0 0.0
        %2004 = vmatprep.subr.mxu0 0.0
        %2005 = vmatpush2.msra.mxu0 0.0
        %2006 = vmatprep.subr.mxu0 0.0
        %2007 = vmatpush2.msra.mxu0 0.0
        %2008 = vmatprep.subr.mxu0 0.0
        %2009 = vmatpush2.msra.mxu0 0.0
        %2010 = vmatprep.subr.mxu0 0.0
        %2011 = vmatpush2.msra.mxu0 0.0
        %2012 = vmatprep.subr.mxu0 0.0
        %2013 = vmatpush2.msra.mxu0 0.0
        %2014 = vmatprep.subr.mxu0 0.0
        %2015 = vmatpush2.msra.mxu0 0.0
        %2016 = vmatprep.subr.mxu0 0.0
        %2017 = vmatpush2.msra.mxu0 0.0
        %2018 = vmatprep.subr.mxu0 0.0
        %2019 = vmatpush2.msra.mxu0 0.0
        %2020 = vmatprep.mubr.f32.mxu0 0.0
        %2021 = vmatmul.mubr.f32.gmra.mxu0 %v1954
        %v2022 = vpop.f32.mrf.mxu0
        %v2023 = vadd.f32 %v1613, %v2022
        %v2024 = vpop.f32.mrf.mxu0
        %v2025 = vadd.f32 %v1615, %v2024
        %2026 = vdwg.mxu0
        %2027 = vmatprep.subr.mxu0 0.0
        %2028 = vmatpush1.msra.mxu0 0.0
        %2029 = vmatprep.subr.mxu0 0.0
        %2030 = vmatpush1.msra.mxu0 0.0
        %2031 = vmatprep.subr.mxu0 0.0
        %2032 = vmatpush1.msra.mxu0 0.0
        %2033 = vmatprep.subr.mxu0 0.0
        %2034 = vmatpush1.msra.mxu0 0.0
        %2035 = vmatprep.subr.mxu0 0.0
        %2036 = vmatpush1.msra.mxu0 %v1752
        %2037 = vmatprep.subr.mxu0 0.0
        %2038 = vmatpush1.msra.mxu0 %v1749
        %2039 = vmatprep.subr.mxu0 0.0
        %2040 = vmatpush1.msra.mxu0 %v1746
        %2041 = vmatprep.subr.mxu0 0.0
        %2042 = vmatpush1.msra.mxu0 %v1743
        %2043 = vmatprep.subr.mxu0 0.0
        %2044 = vmatpush1.msra.mxu0 %v1740
        %2045 = vmatprep.subr.mxu0 0.0
        %2046 = vmatpush1.msra.mxu0 %v1737
        %2047 = vmatprep.subr.mxu0 0.0
        %2048 = vmatpush1.msra.mxu0 %v1734
        %2049 = vmatprep.subr.mxu0 0.0
        %2050 = vmatpush1.msra.mxu0 %v1731
        %2051 = vmatprep.subr.mxu0 0.0
        %2052 = vmatpush1.msra.mxu0 %v1728
        %2053 = vmatprep.subr.mxu0 0.0
        %2054 = vmatpush1.msra.mxu0 %v1725
        %2055 = vmatprep.subr.mxu0 0.0
        %2056 = vmatpush1.msra.mxu0 %v1722
        %2057 = vmatprep.subr.mxu0 0.0
        %2058 = vmatpush1.msra.mxu0 %v1719
        %2059 = vmatprep.subr.mxu0 0.0
        %2060 = vmatpush2.msra.mxu0 0.0
        %2061 = vmatprep.subr.mxu0 0.0
        %2062 = vmatpush2.msra.mxu0 0.0
        %2063 = vmatprep.subr.mxu0 0.0
        %2064 = vmatpush2.msra.mxu0 0.0
        %2065 = vmatprep.subr.mxu0 0.0
        %2066 = vmatpush2.msra.mxu0 0.0
        %2067 = vmatprep.subr.mxu0 0.0
        %2068 = vmatpush2.msra.mxu0 0.0
        %2069 = vmatprep.subr.mxu0 0.0
        %2070 = vmatpush2.msra.mxu0 0.0
        %2071 = vmatprep.subr.mxu0 0.0
        %2072 = vmatpush2.msra.mxu0 0.0
        %2073 = vmatprep.subr.mxu0 0.0
        %2074 = vmatpush2.msra.mxu0 0.0
        %2075 = vmatprep.subr.mxu0 0.0
        %2076 = vmatpush2.msra.mxu0 0.0
        %2077 = vmatprep.subr.mxu0 0.0
        %2078 = vmatpush2.msra.mxu0 0.0
        %2079 = vmatprep.subr.mxu0 0.0
        %2080 = vmatpush2.msra.mxu0 0.0
        %2081 = vmatprep.subr.mxu0 0.0
        %2082 = vmatpush2.msra.mxu0 0.0
        %2083 = vmatprep.subr.mxu0 0.0
        %2084 = vmatpush2.msra.mxu0 0.0
        %2085 = vmatprep.subr.mxu0 0.0
        %2086 = vmatpush2.msra.mxu0 0.0
        %2087 = vmatprep.subr.mxu0 0.0
        %2088 = vmatpush2.msra.mxu0 0.0
        %2089 = vmatprep.subr.mxu0 0.0
        %2090 = vmatpush2.msra.mxu0 0.0
        %2091 = vmatprep.mubr.f32.mxu0 0.0
        %2092 = vmatmul.mubr.f32.gmra.mxu0 %v1954
        %v2093 = vpop.f32.mrf.mxu0
        %v2094 = vadd.f32 %v1684, %v2093
        %v2095 = vpop.f32.mrf.mxu0
        %2096 = vdwg.mxu0
        %v2097 = vxor.u32 %v2023, 2147483648
        %v2098 = vxor.u32 %v2025, 2147483648
        %v2099 = vxor.u32 %v2094, 2147483648
        %v2100 = vmul.f32 %v2097, 1.442695
        %v2101 = vpow.pop %v2100
        %v2102 = vmul.f32 %v2098, 1.442695
        %v2103 = vpow.pop %v2102
        %v2104 = vmul.f32 %v2099, 1.442695
        %v2105 = vpow.pop %v2104
        %v2106 = vadd.f32 %v2101, 1.0
        %v2107 = vadd.f32 %v2103, 1.0
        %v2108 = vadd.f32 %v2105, 1.0
        %v2109 = vrcp.pop %v2106
        %v2110 = vmul.f32 1.0, %v2109
        %v2111 = vrcp.pop %v2107
        %v2112 = vmul.f32 1.0, %v2111
        %v2113 = vrcp.pop %v2108
        %v2114 = vmul.f32 1.0, %v2113
        %v2115 = vtanh.pop %v2094
        %v2116 = vmul.f32 %v2110, %v1932
        %v2117 = vmul.f32 %v2112, %v1933
        %2119 = vrot.lane.b32.xlu0 %v2115, 96
        %v2120 = vpop.permute.xlu0 %2119
        %v2122 = vmul.f32 %v2110, %v2120
        %2124 = vrot.lane.b32.xlu0 %v2122, 96
        %v2125 = vpop.permute.xlu0 %2124
        %v2127 = vadd.f32 %v2116, %v2125
        %v2128 = vadd.f32 %v2117, %v2125
        %v2129 = vtanh.pop %v2127
        %v2130 = vtanh.pop %v2128
        %2133 = vrot.lane.b32.xlu0 %v2129, 96
        %v2134 = vpop.permute.xlu0 %2133
        %2135 = vrot.lane.b32.xlu0 %v2130, 96
        %v2136 = vpop.permute.xlu0 %2135
        %v2137 = vsel %vm1753, %v2134, %v2136
        %v2140 = vmul.f32 %v2112, %v2137
        %v2141 = vmul.f32 %v2114, %v2136
        %2144 = vrot.lane.b32.xlu0 %v2140, 64
        %v2145 = vpop.permute.xlu0 %2144
        %2146 = vrot.lane.b32.xlu0 %v2141, 64
        %v2147 = vpop.permute.xlu0 %2146
        %v2148 = vsel %vm500, %v2145, %v2147
        %v2149 = vsel %vm1753, %v2148, 0
        %2151 = vmatprep.subr.mxu0 0.0
        %2152 = vmatpush1.msra.mxu0 0.0
        %2153 = vmatprep.subr.mxu0 0.0
        %2154 = vmatpush1.msra.mxu0 0.0
        %2155 = vmatprep.subr.mxu0 0.0
        %2156 = vmatpush1.msra.mxu0 0.0
        %2157 = vmatprep.subr.mxu0 0.0
        %2158 = vmatpush1.msra.mxu0 0.0
        %2159 = vmatprep.subr.mxu0 %v1751
        %2160 = vmatpush1.msra.mxu0 %v1750
        %2161 = vmatprep.subr.mxu0 %v1748
        %2162 = vmatpush1.msra.mxu0 %v1747
        %2163 = vmatprep.subr.mxu0 %v1745
        %2164 = vmatpush1.msra.mxu0 %v1744
        %2165 = vmatprep.subr.mxu0 %v1742
        %2166 = vmatpush1.msra.mxu0 %v1741
        %2167 = vmatprep.subr.mxu0 %v1739
        %2168 = vmatpush1.msra.mxu0 %v1738
        %2169 = vmatprep.subr.mxu0 %v1736
        %2170 = vmatpush1.msra.mxu0 %v1735
        %2171 = vmatprep.subr.mxu0 %v1733
        %2172 = vmatpush1.msra.mxu0 %v1732
        %2173 = vmatprep.subr.mxu0 %v1730
        %2174 = vmatpush1.msra.mxu0 %v1729
        %2175 = vmatprep.subr.mxu0 %v1727
        %2176 = vmatpush1.msra.mxu0 %v1726
        %2177 = vmatprep.subr.mxu0 %v1724
        %2178 = vmatpush1.msra.mxu0 %v1723
        %2179 = vmatprep.subr.mxu0 %v1721
        %2180 = vmatpush1.msra.mxu0 %v1720
        %2181 = vmatprep.subr.mxu0 %v1718
        %2182 = vmatpush1.msra.mxu0 %v1717
        %2183 = vmatprep.subr.mxu0 0.0
        %2184 = vmatpush2.msra.mxu0 0.0
        %2185 = vmatprep.subr.mxu0 0.0
        %2186 = vmatpush2.msra.mxu0 0.0
        %2187 = vmatprep.subr.mxu0 0.0
        %2188 = vmatpush2.msra.mxu0 0.0
        %2189 = vmatprep.subr.mxu0 0.0
        %2190 = vmatpush2.msra.mxu0 0.0
        %2191 = vmatprep.subr.mxu0 0.0
        %2192 = vmatpush2.msra.mxu0 0.0
        %2193 = vmatprep.subr.mxu0 0.0
        %2194 = vmatpush2.msra.mxu0 0.0
        %2195 = vmatprep.subr.mxu0 0.0
        %2196 = vmatpush2.msra.mxu0 0.0
        %2197 = vmatprep.subr.mxu0 0.0
        %2198 = vmatpush2.msra.mxu0 0.0
        %2199 = vmatprep.subr.mxu0 0.0
        %2200 = vmatpush2.msra.mxu0 0.0
        %2201 = vmatprep.subr.mxu0 0.0
        %2202 = vmatpush2.msra.mxu0 0.0
        %2203 = vmatprep.subr.mxu0 0.0
        %2204 = vmatpush2.msra.mxu0 0.0
        %2205 = vmatprep.subr.mxu0 0.0
        %2206 = vmatpush2.msra.mxu0 0.0
        %2207 = vmatprep.subr.mxu0 0.0
        %2208 = vmatpush2.msra.mxu0 0.0
        %2209 = vmatprep.subr.mxu0 0.0
        %2210 = vmatpush2.msra.mxu0 0.0
        %2211 = vmatprep.subr.mxu0 0.0
        %2212 = vmatpush2.msra.mxu0 0.0
        %2213 = vmatprep.subr.mxu0 0.0
        %2214 = vmatpush2.msra.mxu0 0.0
        %2215 = vmatprep.mubr.f32.mxu0 0.0
        %2216 = vmatmul.mubr.f32.gmra.mxu0 %v2149
        %v2217 = vpop.f32.mrf.mxu0
        %v2218 = vadd.f32 %v1613, %v2217
        %v2219 = vpop.f32.mrf.mxu0
        %v2220 = vadd.f32 %v1615, %v2219
        %2221 = vdwg.mxu0
        %2222 = vmatprep.subr.mxu0 0.0
        %2223 = vmatpush1.msra.mxu0 0.0
        %2224 = vmatprep.subr.mxu0 0.0
        %2225 = vmatpush1.msra.mxu0 0.0
        %2226 = vmatprep.subr.mxu0 0.0
        %2227 = vmatpush1.msra.mxu0 0.0
        %2228 = vmatprep.subr.mxu0 0.0
        %2229 = vmatpush1.msra.mxu0 0.0
        %2230 = vmatprep.subr.mxu0 0.0
        %2231 = vmatpush1.msra.mxu0 %v1752
        %2232 = vmatprep.subr.mxu0 0.0
        %2233 = vmatpush1.msra.mxu0 %v1749
        %2234 = vmatprep.subr.mxu0 0.0
        %2235 = vmatpush1.msra.mxu0 %v1746
        %2236 = vmatprep.subr.mxu0 0.0
        %2237 = vmatpush1.msra.mxu0 %v1743
        %2238 = vmatprep.subr.mxu0 0.0
        %2239 = vmatpush1.msra.mxu0 %v1740
        %2240 = vmatprep.subr.mxu0 0.0
        %2241 = vmatpush1.msra.mxu0 %v1737
        %2242 = vmatprep.subr.mxu0 0.0
        %2243 = vmatpush1.msra.mxu0 %v1734
        %2244 = vmatprep.subr.mxu0 0.0
        %2245 = vmatpush1.msra.mxu0 %v1731
        %2246 = vmatprep.subr.mxu0 0.0
        %2247 = vmatpush1.msra.mxu0 %v1728
        %2248 = vmatprep.subr.mxu0 0.0
        %2249 = vmatpush1.msra.mxu0 %v1725
        %2250 = vmatprep.subr.mxu0 0.0
        %2251 = vmatpush1.msra.mxu0 %v1722
        %2252 = vmatprep.subr.mxu0 0.0
        %2253 = vmatpush1.msra.mxu0 %v1719
        %2254 = vmatprep.subr.mxu0 0.0
        %2255 = vmatpush2.msra.mxu0 0.0
        %2256 = vmatprep.subr.mxu0 0.0
        %2257 = vmatpush2.msra.mxu0 0.0
        %2258 = vmatprep.subr.mxu0 0.0
        %2259 = vmatpush2.msra.mxu0 0.0
        %2260 = vmatprep.subr.mxu0 0.0
        %2261 = vmatpush2.msra.mxu0 0.0
        %2262 = vmatprep.subr.mxu0 0.0
        %2263 = vmatpush2.msra.mxu0 0.0
        %2264 = vmatprep.subr.mxu0 0.0
        %2265 = vmatpush2.msra.mxu0 0.0
        %2266 = vmatprep.subr.mxu0 0.0
        %2267 = vmatpush2.msra.mxu0 0.0
        %2268 = vmatprep.subr.mxu0 0.0
        %2269 = vmatpush2.msra.mxu0 0.0
        %2270 = vmatprep.subr.mxu0 0.0
        %2271 = vmatpush2.msra.mxu0 0.0
        %2272 = vmatprep.subr.mxu0 0.0
        %2273 = vmatpush2.msra.mxu0 0.0
        %2274 = vmatprep.subr.mxu0 0.0
        %2275 = vmatpush2.msra.mxu0 0.0
        %2276 = vmatprep.subr.mxu0 0.0
        %2277 = vmatpush2.msra.mxu0 0.0
        %2278 = vmatprep.subr.mxu0 0.0
        %2279 = vmatpush2.msra.mxu0 0.0
        %2280 = vmatprep.subr.mxu0 0.0
        %2281 = vmatpush2.msra.mxu0 0.0
        %2282 = vmatprep.subr.mxu0 0.0
        %2283 = vmatpush2.msra.mxu0 0.0
        %2284 = vmatprep.subr.mxu0 0.0
        %2285 = vmatpush2.msra.mxu0 0.0
        %2286 = vmatprep.mubr.f32.mxu0 0.0
        %2287 = vmatmul.mubr.f32.gmra.mxu0 %v2149
        %v2288 = vpop.f32.mrf.mxu0
        %v2289 = vadd.f32 %v1684, %v2288
        %v2290 = vpop.f32.mrf.mxu0
        %2291 = vdwg.mxu0
        %v2292 = vxor.u32 %v2218, 2147483648
        %v2293 = vxor.u32 %v2220, 2147483648
        %v2294 = vxor.u32 %v2289, 2147483648
        %v2295 = vmul.f32 %v2292, 1.442695
        %v2296 = vpow.pop %v2295
        %v2297 = vmul.f32 %v2293, 1.442695
        %v2298 = vpow.pop %v2297
        %v2299 = vmul.f32 %v2294, 1.442695
        %v2300 = vpow.pop %v2299
        %v2301 = vadd.f32 %v2296, 1.0
        %v2302 = vadd.f32 %v2298, 1.0
        %v2303 = vadd.f32 %v2300, 1.0
        %v2304 = vrcp.pop %v2301
        %v2305 = vmul.f32 1.0, %v2304
        %v2306 = vrcp.pop %v2302
        %v2307 = vmul.f32 1.0, %v2306
        %v2308 = vrcp.pop %v2303
        %v2309 = vmul.f32 1.0, %v2308
        %v2310 = vtanh.pop %v2289
        %v2311 = vmul.f32 %v2305, %v2127
        %v2312 = vmul.f32 %v2307, %v2128
        %2314 = vrot.lane.b32.xlu0 %v2310, 96
        %v2315 = vpop.permute.xlu0 %2314
        %v2317 = vmul.f32 %v2305, %v2315
        %2319 = vrot.lane.b32.xlu0 %v2317, 96
        %v2320 = vpop.permute.xlu0 %2319
        %v2322 = vadd.f32 %v2311, %v2320
        %v2323 = vadd.f32 %v2312, %v2320
        %v2324 = vtanh.pop %v2322
        %v2325 = vtanh.pop %v2323
        %2328 = vrot.lane.b32.xlu0 %v2324, 96
        %v2329 = vpop.permute.xlu0 %2328
        %2330 = vrot.lane.b32.xlu0 %v2325, 96
        %v2331 = vpop.permute.xlu0 %2330
        %v2332 = vsel %vm1753, %v2329, %v2331
        %v2335 = vmul.f32 %v2307, %v2332
        %v2336 = vmul.f32 %v2309, %v2331
        %2339 = vrot.lane.b32.xlu0 %v2335, 64
        %v2340 = vpop.permute.xlu0 %2339
        %2341 = vrot.lane.b32.xlu0 %v2336, 64
        %v2342 = vpop.permute.xlu0 %2341
        %v2343 = vsel %vm500, %v2340, %v2342
        %v2344 = vsel %vm1753, %v2343, 0
        %2346 = vmatprep.subr.mxu0 0.0
        %2347 = vmatpush1.msra.mxu0 0.0
        %2348 = vmatprep.subr.mxu0 0.0
        %2349 = vmatpush1.msra.mxu0 0.0
        %2350 = vmatprep.subr.mxu0 0.0
        %2351 = vmatpush1.msra.mxu0 0.0
        %2352 = vmatprep.subr.mxu0 0.0
        %2353 = vmatpush1.msra.mxu0 0.0
        %2354 = vmatprep.subr.mxu0 %v1751
        %2355 = vmatpush1.msra.mxu0 %v1750
        %2356 = vmatprep.subr.mxu0 %v1748
        %2357 = vmatpush1.msra.mxu0 %v1747
        %2358 = vmatprep.subr.mxu0 %v1745
        %2359 = vmatpush1.msra.mxu0 %v1744
        %2360 = vmatprep.subr.mxu0 %v1742
        %2361 = vmatpush1.msra.mxu0 %v1741
        %2362 = vmatprep.subr.mxu0 %v1739
        %2363 = vmatpush1.msra.mxu0 %v1738
        %2364 = vmatprep.subr.mxu0 %v1736
        %2365 = vmatpush1.msra.mxu0 %v1735
        %2366 = vmatprep.subr.mxu0 %v1733
        %2367 = vmatpush1.msra.mxu0 %v1732
        %2368 = vmatprep.subr.mxu0 %v1730
        %2369 = vmatpush1.msra.mxu0 %v1729
        %2370 = vmatprep.subr.mxu0 %v1727
        %2371 = vmatpush1.msra.mxu0 %v1726
        %2372 = vmatprep.subr.mxu0 %v1724
        %2373 = vmatpush1.msra.mxu0 %v1723
        %2374 = vmatprep.subr.mxu0 %v1721
        %2375 = vmatpush1.msra.mxu0 %v1720
        %2376 = vmatprep.subr.mxu0 %v1718
        %2377 = vmatpush1.msra.mxu0 %v1717
        %2378 = vmatprep.subr.mxu0 0.0
        %2379 = vmatpush2.msra.mxu0 0.0
        %2380 = vmatprep.subr.mxu0 0.0
        %2381 = vmatpush2.msra.mxu0 0.0
        %2382 = vmatprep.subr.mxu0 0.0
        %2383 = vmatpush2.msra.mxu0 0.0
        %2384 = vmatprep.subr.mxu0 0.0
        %2385 = vmatpush2.msra.mxu0 0.0
        %2386 = vmatprep.subr.mxu0 0.0
        %2387 = vmatpush2.msra.mxu0 0.0
        %2388 = vmatprep.subr.mxu0 0.0
        %2389 = vmatpush2.msra.mxu0 0.0
        %2390 = vmatprep.subr.mxu0 0.0
        %2391 = vmatpush2.msra.mxu0 0.0
        %2392 = vmatprep.subr.mxu0 0.0
        %2393 = vmatpush2.msra.mxu0 0.0
        %2394 = vmatprep.subr.mxu0 0.0
        %2395 = vmatpush2.msra.mxu0 0.0
        %2396 = vmatprep.subr.mxu0 0.0
        %2397 = vmatpush2.msra.mxu0 0.0
        %2398 = vmatprep.subr.mxu0 0.0
        %2399 = vmatpush2.msra.mxu0 0.0
        %2400 = vmatprep.subr.mxu0 0.0
        %2401 = vmatpush2.msra.mxu0 0.0
        %2402 = vmatprep.subr.mxu0 0.0
        %2403 = vmatpush2.msra.mxu0 0.0
        %2404 = vmatprep.subr.mxu0 0.0
        %2405 = vmatpush2.msra.mxu0 0.0
        %2406 = vmatprep.subr.mxu0 0.0
        %2407 = vmatpush2.msra.mxu0 0.0
        %2408 = vmatprep.subr.mxu0 0.0
        %2409 = vmatpush2.msra.mxu0 0.0
        %2410 = vmatprep.mubr.f32.mxu0 0.0
        %2411 = vmatmul.mubr.f32.gmra.mxu0 %v2344
        %v2412 = vpop.f32.mrf.mxu0
        %v2413 = vadd.f32 %v1613, %v2412
        %v2414 = vpop.f32.mrf.mxu0
        %v2415 = vadd.f32 %v1615, %v2414
        %2416 = vdwg.mxu0
        %2417 = vmatprep.subr.mxu0 0.0
        %2418 = vmatpush1.msra.mxu0 0.0
        %2419 = vmatprep.subr.mxu0 0.0
        %2420 = vmatpush1.msra.mxu0 0.0
        %2421 = vmatprep.subr.mxu0 0.0
        %2422 = vmatpush1.msra.mxu0 0.0
        %2423 = vmatprep.subr.mxu0 0.0
        %2424 = vmatpush1.msra.mxu0 0.0
        %2425 = vmatprep.subr.mxu0 0.0
        %2426 = vmatpush1.msra.mxu0 %v1752
        %2427 = vmatprep.subr.mxu0 0.0
        %2428 = vmatpush1.msra.mxu0 %v1749
        %2429 = vmatprep.subr.mxu0 0.0
        %2430 = vmatpush1.msra.mxu0 %v1746
        %2431 = vmatprep.subr.mxu0 0.0
        %2432 = vmatpush1.msra.mxu0 %v1743
        %2433 = vmatprep.subr.mxu0 0.0
        %2434 = vmatpush1.msra.mxu0 %v1740
        %2435 = vmatprep.subr.mxu0 0.0
        %2436 = vmatpush1.msra.mxu0 %v1737
        %2437 = vmatprep.subr.mxu0 0.0
        %2438 = vmatpush1.msra.mxu0 %v1734
        %2439 = vmatprep.subr.mxu0 0.0
        %2440 = vmatpush1.msra.mxu0 %v1731
        %2441 = vmatprep.subr.mxu0 0.0
        %2442 = vmatpush1.msra.mxu0 %v1728
        %2443 = vmatprep.subr.mxu0 0.0
        %2444 = vmatpush1.msra.mxu0 %v1725
        %2445 = vmatprep.subr.mxu0 0.0
        %2446 = vmatpush1.msra.mxu0 %v1722
        %2447 = vmatprep.subr.mxu0 0.0
        %2448 = vmatpush1.msra.mxu0 %v1719
        %2449 = vmatprep.subr.mxu0 0.0
        %2450 = vmatpush2.msra.mxu0 0.0
        %2451 = vmatprep.subr.mxu0 0.0
        %2452 = vmatpush2.msra.mxu0 0.0
        %2453 = vmatprep.subr.mxu0 0.0
        %2454 = vmatpush2.msra.mxu0 0.0
        %2455 = vmatprep.subr.mxu0 0.0
        %2456 = vmatpush2.msra.mxu0 0.0
        %2457 = vmatprep.subr.mxu0 0.0
        %2458 = vmatpush2.msra.mxu0 0.0
        %2459 = vmatprep.subr.mxu0 0.0
        %2460 = vmatpush2.msra.mxu0 0.0
        %2461 = vmatprep.subr.mxu0 0.0
        %2462 = vmatpush2.msra.mxu0 0.0
        %2463 = vmatprep.subr.mxu0 0.0
        %2464 = vmatpush2.msra.mxu0 0.0
        %2465 = vmatprep.subr.mxu0 0.0
        %2466 = vmatpush2.msra.mxu0 0.0
        %2467 = vmatprep.subr.mxu0 0.0
        %2468 = vmatpush2.msra.mxu0 0.0
        %2469 = vmatprep.subr.mxu0 0.0
        %2470 = vmatpush2.msra.mxu0 0.0
        %2471 = vmatprep.subr.mxu0 0.0
        %2472 = vmatpush2.msra.mxu0 0.0
        %2473 = vmatprep.subr.mxu0 0.0
        %2474 = vmatpush2.msra.mxu0 0.0
        %2475 = vmatprep.subr.mxu0 0.0
        %2476 = vmatpush2.msra.mxu0 0.0
        %2477 = vmatprep.subr.mxu0 0.0
        %2478 = vmatpush2.msra.mxu0 0.0
        %2479 = vmatprep.subr.mxu0 0.0
        %2480 = vmatpush2.msra.mxu0 0.0
        %2481 = vmatprep.mubr.f32.mxu0 0.0
        %2482 = vmatmul.mubr.f32.gmra.mxu0 %v2344
        %v2483 = vpop.f32.mrf.mxu0
        %v2484 = vadd.f32 %v1684, %v2483
        %v2485 = vpop.f32.mrf.mxu0
        %2486 = vdwg.mxu0
        %v2487 = vxor.u32 %v2413, 2147483648
        %v2488 = vxor.u32 %v2415, 2147483648
        %v2489 = vxor.u32 %v2484, 2147483648
        %v2490 = vmul.f32 %v2487, 1.442695
        %v2491 = vpow.pop %v2490
        %v2492 = vmul.f32 %v2488, 1.442695
        %v2493 = vpow.pop %v2492
        %v2494 = vmul.f32 %v2489, 1.442695
        %v2495 = vpow.pop %v2494
        %v2496 = vadd.f32 %v2491, 1.0
        %v2497 = vadd.f32 %v2493, 1.0
        %v2498 = vadd.f32 %v2495, 1.0
        %v2499 = vrcp.pop %v2496
        %v2500 = vmul.f32 1.0, %v2499
        %v2501 = vrcp.pop %v2497
        %v2502 = vmul.f32 1.0, %v2501
        %v2503 = vrcp.pop %v2498
        %v2504 = vmul.f32 1.0, %v2503
        %v2505 = vtanh.pop %v2484
        %v2506 = vmul.f32 %v2500, %v2322
        %v2507 = vmul.f32 %v2502, %v2323
        %2509 = vrot.lane.b32.xlu0 %v2505, 96
        %v2510 = vpop.permute.xlu0 %2509
        %v2512 = vmul.f32 %v2500, %v2510
        %2514 = vrot.lane.b32.xlu0 %v2512, 96
        %v2515 = vpop.permute.xlu0 %2514
        %v2517 = vadd.f32 %v2506, %v2515
        %v2518 = vadd.f32 %v2507, %v2515
        %v2519 = vtanh.pop %v2517
        %v2520 = vtanh.pop %v2518
        %2523 = vrot.lane.b32.xlu0 %v2519, 96
        %v2524 = vpop.permute.xlu0 %2523
        %2525 = vrot.lane.b32.xlu0 %v2520, 96
        %v2526 = vpop.permute.xlu0 %2525
        %v2527 = vsel %vm1753, %v2524, %v2526
        %v2530 = vmul.f32 %v2502, %v2527
        %v2531 = vmul.f32 %v2504, %v2526
        %2534 = vrot.lane.b32.xlu0 %v2530, 64
        %v2535 = vpop.permute.xlu0 %2534
        %2536 = vrot.lane.b32.xlu0 %v2531, 64
        %v2537 = vpop.permute.xlu0 %2536
        %v2538 = vsel %vm500, %v2535, %v2537
        %v2539 = vsel %vm1753, %v2538, 0
        %2541 = vmatprep.subr.mxu0 0.0
        %2542 = vmatpush1.msra.mxu0 0.0
        %2543 = vmatprep.subr.mxu0 0.0
        %2544 = vmatpush1.msra.mxu0 0.0
        %2545 = vmatprep.subr.mxu0 0.0
        %2546 = vmatpush1.msra.mxu0 0.0
        %2547 = vmatprep.subr.mxu0 0.0
        %2548 = vmatpush1.msra.mxu0 0.0
        %2549 = vmatprep.subr.mxu0 %v1751
        %2550 = vmatpush1.msra.mxu0 %v1750
        %2551 = vmatprep.subr.mxu0 %v1748
        %2552 = vmatpush1.msra.mxu0 %v1747
        %2553 = vmatprep.subr.mxu0 %v1745
        %2554 = vmatpush1.msra.mxu0 %v1744
        %2555 = vmatprep.subr.mxu0 %v1742
        %2556 = vmatpush1.msra.mxu0 %v1741
        %2557 = vmatprep.subr.mxu0 %v1739
        %2558 = vmatpush1.msra.mxu0 %v1738
        %2559 = vmatprep.subr.mxu0 %v1736
        %2560 = vmatpush1.msra.mxu0 %v1735
        %2561 = vmatprep.subr.mxu0 %v1733
        %2562 = vmatpush1.msra.mxu0 %v1732
        %2563 = vmatprep.subr.mxu0 %v1730
        %2564 = vmatpush1.msra.mxu0 %v1729
        %2565 = vmatprep.subr.mxu0 %v1727
        %2566 = vmatpush1.msra.mxu0 %v1726
        %2567 = vmatprep.subr.mxu0 %v1724
        %2568 = vmatpush1.msra.mxu0 %v1723
        %2569 = vmatprep.subr.mxu0 %v1721
        %2570 = vmatpush1.msra.mxu0 %v1720
        %2571 = vmatprep.subr.mxu0 %v1718
        %2572 = vmatpush1.msra.mxu0 %v1717
        %2573 = vmatprep.subr.mxu0 0.0
        %2574 = vmatpush2.msra.mxu0 0.0
        %2575 = vmatprep.subr.mxu0 0.0
        %2576 = vmatpush2.msra.mxu0 0.0
        %2577 = vmatprep.subr.mxu0 0.0
        %2578 = vmatpush2.msra.mxu0 0.0
        %2579 = vmatprep.subr.mxu0 0.0
        %2580 = vmatpush2.msra.mxu0 0.0
        %2581 = vmatprep.subr.mxu0 0.0
        %2582 = vmatpush2.msra.mxu0 0.0
        %2583 = vmatprep.subr.mxu0 0.0
        %2584 = vmatpush2.msra.mxu0 0.0
        %2585 = vmatprep.subr.mxu0 0.0
        %2586 = vmatpush2.msra.mxu0 0.0
        %2587 = vmatprep.subr.mxu0 0.0
        %2588 = vmatpush2.msra.mxu0 0.0
        %2589 = vmatprep.subr.mxu0 0.0
        %2590 = vmatpush2.msra.mxu0 0.0
        %2591 = vmatprep.subr.mxu0 0.0
        %2592 = vmatpush2.msra.mxu0 0.0
        %2593 = vmatprep.subr.mxu0 0.0
        %2594 = vmatpush2.msra.mxu0 0.0
        %2595 = vmatprep.subr.mxu0 0.0
        %2596 = vmatpush2.msra.mxu0 0.0
        %2597 = vmatprep.subr.mxu0 0.0
        %2598 = vmatpush2.msra.mxu0 0.0
        %2599 = vmatprep.subr.mxu0 0.0
        %2600 = vmatpush2.msra.mxu0 0.0
        %2601 = vmatprep.subr.mxu0 0.0
        %2602 = vmatpush2.msra.mxu0 0.0
        %2603 = vmatprep.subr.mxu0 0.0
        %2604 = vmatpush2.msra.mxu0 0.0
        %2605 = vmatprep.mubr.f32.mxu0 0.0
        %2606 = vmatmul.mubr.f32.gmra.mxu0 %v2539
        %v2607 = vpop.f32.mrf.mxu0
        %v2608 = vadd.f32 %v1613, %v2607
        %v2609 = vpop.f32.mrf.mxu0
        %v2610 = vadd.f32 %v1615, %v2609
        %2611 = vdwg.mxu0
        %2612 = vmatprep.subr.mxu0 0.0
        %2613 = vmatpush1.msra.mxu0 0.0
        %2614 = vmatprep.subr.mxu0 0.0
        %2615 = vmatpush1.msra.mxu0 0.0
        %2616 = vmatprep.subr.mxu0 0.0
        %2617 = vmatpush1.msra.mxu0 0.0
        %2618 = vmatprep.subr.mxu0 0.0
        %2619 = vmatpush1.msra.mxu0 0.0
        %2620 = vmatprep.subr.mxu0 0.0
        %2621 = vmatpush1.msra.mxu0 %v1752
        %2622 = vmatprep.subr.mxu0 0.0
        %2623 = vmatpush1.msra.mxu0 %v1749
        %2624 = vmatprep.subr.mxu0 0.0
        %2625 = vmatpush1.msra.mxu0 %v1746
        %2626 = vmatprep.subr.mxu0 0.0
        %2627 = vmatpush1.msra.mxu0 %v1743
        %2628 = vmatprep.subr.mxu0 0.0
        %2629 = vmatpush1.msra.mxu0 %v1740
        %2630 = vmatprep.subr.mxu0 0.0
        %2631 = vmatpush1.msra.mxu0 %v1737
        %2632 = vmatprep.subr.mxu0 0.0
        %2633 = vmatpush1.msra.mxu0 %v1734
        %2634 = vmatprep.subr.mxu0 0.0
        %2635 = vmatpush1.msra.mxu0 %v1731
        %2636 = vmatprep.subr.mxu0 0.0
        %2637 = vmatpush1.msra.mxu0 %v1728
        %2638 = vmatprep.subr.mxu0 0.0
        %2639 = vmatpush1.msra.mxu0 %v1725
        %2640 = vmatprep.subr.mxu0 0.0
        %2641 = vmatpush1.msra.mxu0 %v1722
        %2642 = vmatprep.subr.mxu0 0.0
        %2643 = vmatpush1.msra.mxu0 %v1719
        %2644 = vmatprep.subr.mxu0 0.0
        %2645 = vmatpush2.msra.mxu0 0.0
        %2646 = vmatprep.subr.mxu0 0.0
        %2647 = vmatpush2.msra.mxu0 0.0
        %2648 = vmatprep.subr.mxu0 0.0
        %2649 = vmatpush2.msra.mxu0 0.0
        %2650 = vmatprep.subr.mxu0 0.0
        %2651 = vmatpush2.msra.mxu0 0.0
        %2652 = vmatprep.subr.mxu0 0.0
        %2653 = vmatpush2.msra.mxu0 0.0
        %2654 = vmatprep.subr.mxu0 0.0
        %2655 = vmatpush2.msra.mxu0 0.0
        %2656 = vmatprep.subr.mxu0 0.0
        %2657 = vmatpush2.msra.mxu0 0.0
        %2658 = vmatprep.subr.mxu0 0.0
        %2659 = vmatpush2.msra.mxu0 0.0
        %2660 = vmatprep.subr.mxu0 0.0
        %2661 = vmatpush2.msra.mxu0 0.0
        %2662 = vmatprep.subr.mxu0 0.0
        %2663 = vmatpush2.msra.mxu0 0.0
        %2664 = vmatprep.subr.mxu0 0.0
        %2665 = vmatpush2.msra.mxu0 0.0
        %2666 = vmatprep.subr.mxu0 0.0
        %2667 = vmatpush2.msra.mxu0 0.0
        %2668 = vmatprep.subr.mxu0 0.0
        %2669 = vmatpush2.msra.mxu0 0.0
        %2670 = vmatprep.subr.mxu0 0.0
        %2671 = vmatpush2.msra.mxu0 0.0
        %2672 = vmatprep.subr.mxu0 0.0
        %2673 = vmatpush2.msra.mxu0 0.0
        %2674 = vmatprep.subr.mxu0 0.0
        %2675 = vmatpush2.msra.mxu0 0.0
        %2676 = vmatprep.mubr.f32.mxu0 0.0
        %2677 = vmatmul.mubr.f32.gmra.mxu0 %v2539
        %v2678 = vpop.f32.mrf.mxu0
        %v2679 = vadd.f32 %v1684, %v2678
        %v2680 = vpop.f32.mrf.mxu0
        %2681 = vdwg.mxu0
        %v2682 = vxor.u32 %v2608, 2147483648
        %v2683 = vxor.u32 %v2610, 2147483648
        %v2684 = vxor.u32 %v2679, 2147483648
        %v2685 = vmul.f32 %v2682, 1.442695
        %v2686 = vpow.pop %v2685
        %v2687 = vmul.f32 %v2683, 1.442695
        %v2688 = vpow.pop %v2687
        %v2689 = vmul.f32 %v2684, 1.442695
        %v2690 = vpow.pop %v2689
        %v2691 = vadd.f32 %v2686, 1.0
        %v2692 = vadd.f32 %v2688, 1.0
        %v2693 = vadd.f32 %v2690, 1.0
        %v2694 = vrcp.pop %v2691
        %v2695 = vmul.f32 1.0, %v2694
        %v2696 = vrcp.pop %v2692
        %v2697 = vmul.f32 1.0, %v2696
        %v2698 = vrcp.pop %v2693
        %v2699 = vmul.f32 1.0, %v2698
        %v2700 = vtanh.pop %v2679
        %v2701 = vmul.f32 %v2695, %v2517
        %v2702 = vmul.f32 %v2697, %v2518
        %2704 = vrot.lane.b32.xlu0 %v2700, 96
        %v2705 = vpop.permute.xlu0 %2704
        %v2707 = vmul.f32 %v2695, %v2705
        %2709 = vrot.lane.b32.xlu0 %v2707, 96
        %v2710 = vpop.permute.xlu0 %2709
        %v2712 = vadd.f32 %v2701, %v2710
        %v2713 = vadd.f32 %v2702, %v2710
        %v2714 = vtanh.pop %v2712
        %v2715 = vtanh.pop %v2713
        %2718 = vrot.lane.b32.xlu0 %v2714, 96
        %v2719 = vpop.permute.xlu0 %2718
        %2720 = vrot.lane.b32.xlu0 %v2715, 96
        %v2721 = vpop.permute.xlu0 %2720
        %v2722 = vsel %vm1753, %v2719, %v2721
        %v2725 = vmul.f32 %v2697, %v2722
        %v2726 = vmul.f32 %v2699, %v2721
        %2729 = vrot.lane.b32.xlu0 %v2725, 64
        %v2730 = vpop.permute.xlu0 %2729
        %2731 = vrot.lane.b32.xlu0 %v2726, 64
        %v2732 = vpop.permute.xlu0 %2731
        %v2733 = vsel %vm500, %v2730, %v2732
        %v2734 = vsel %vm1753, %v2733, 0
        %2736 = vmatprep.subr.mxu0 0.0
        %2737 = vmatpush1.msra.mxu0 0.0
        %2738 = vmatprep.subr.mxu0 0.0
        %2739 = vmatpush1.msra.mxu0 0.0
        %2740 = vmatprep.subr.mxu0 0.0
        %2741 = vmatpush1.msra.mxu0 0.0
        %2742 = vmatprep.subr.mxu0 0.0
        %2743 = vmatpush1.msra.mxu0 0.0
        %2744 = vmatprep.subr.mxu0 %v1751
        %2745 = vmatpush1.msra.mxu0 %v1750
        %2746 = vmatprep.subr.mxu0 %v1748
        %2747 = vmatpush1.msra.mxu0 %v1747
        %2748 = vmatprep.subr.mxu0 %v1745
        %2749 = vmatpush1.msra.mxu0 %v1744
        %2750 = vmatprep.subr.mxu0 %v1742
        %2751 = vmatpush1.msra.mxu0 %v1741
        %2752 = vmatprep.subr.mxu0 %v1739
        %2753 = vmatpush1.msra.mxu0 %v1738
        %2754 = vmatprep.subr.mxu0 %v1736
        %2755 = vmatpush1.msra.mxu0 %v1735
        %2756 = vmatprep.subr.mxu0 %v1733
        %2757 = vmatpush1.msra.mxu0 %v1732
        %2758 = vmatprep.subr.mxu0 %v1730
        %2759 = vmatpush1.msra.mxu0 %v1729
        %2760 = vmatprep.subr.mxu0 %v1727
        %2761 = vmatpush1.msra.mxu0 %v1726
        %2762 = vmatprep.subr.mxu0 %v1724
        %2763 = vmatpush1.msra.mxu0 %v1723
        %2764 = vmatprep.subr.mxu0 %v1721
        %2765 = vmatpush1.msra.mxu0 %v1720
        %2766 = vmatprep.subr.mxu0 %v1718
        %2767 = vmatpush1.msra.mxu0 %v1717
        %2768 = vmatprep.subr.mxu0 0.0
        %2769 = vmatpush2.msra.mxu0 0.0
        %2770 = vmatprep.subr.mxu0 0.0
        %2771 = vmatpush2.msra.mxu0 0.0
        %2772 = vmatprep.subr.mxu0 0.0
        %2773 = vmatpush2.msra.mxu0 0.0
        %2774 = vmatprep.subr.mxu0 0.0
        %2775 = vmatpush2.msra.mxu0 0.0
        %2776 = vmatprep.subr.mxu0 0.0
        %2777 = vmatpush2.msra.mxu0 0.0
        %2778 = vmatprep.subr.mxu0 0.0
        %2779 = vmatpush2.msra.mxu0 0.0
        %2780 = vmatprep.subr.mxu0 0.0
        %2781 = vmatpush2.msra.mxu0 0.0
        %2782 = vmatprep.subr.mxu0 0.0
        %2783 = vmatpush2.msra.mxu0 0.0
        %2784 = vmatprep.subr.mxu0 0.0
        %2785 = vmatpush2.msra.mxu0 0.0
        %2786 = vmatprep.subr.mxu0 0.0
        %2787 = vmatpush2.msra.mxu0 0.0
        %2788 = vmatprep.subr.mxu0 0.0
        %2789 = vmatpush2.msra.mxu0 0.0
        %2790 = vmatprep.subr.mxu0 0.0
        %2791 = vmatpush2.msra.mxu0 0.0
        %2792 = vmatprep.subr.mxu0 0.0
        %2793 = vmatpush2.msra.mxu0 0.0
        %2794 = vmatprep.subr.mxu0 0.0
        %2795 = vmatpush2.msra.mxu0 0.0
        %2796 = vmatprep.subr.mxu0 0.0
        %2797 = vmatpush2.msra.mxu0 0.0
        %2798 = vmatprep.subr.mxu0 0.0
        %2799 = vmatpush2.msra.mxu0 0.0
        %2800 = vmatprep.mubr.f32.mxu0 0.0
        %2801 = vmatmul.mubr.f32.gmra.mxu0 %v2734
        %v2802 = vpop.f32.mrf.mxu0
        %v2803 = vadd.f32 %v1613, %v2802
        %v2804 = vpop.f32.mrf.mxu0
        %v2805 = vadd.f32 %v1615, %v2804
        %2806 = vdwg.mxu0
        %2807 = vmatprep.subr.mxu0 0.0
        %2808 = vmatpush1.msra.mxu0 0.0
        %2809 = vmatprep.subr.mxu0 0.0
        %2810 = vmatpush1.msra.mxu0 0.0
        %2811 = vmatprep.subr.mxu0 0.0
        %2812 = vmatpush1.msra.mxu0 0.0
        %2813 = vmatprep.subr.mxu0 0.0
        %2814 = vmatpush1.msra.mxu0 0.0
        %2815 = vmatprep.subr.mxu0 0.0
        %2816 = vmatpush1.msra.mxu0 %v1752
        %2817 = vmatprep.subr.mxu0 0.0
        %2818 = vmatpush1.msra.mxu0 %v1749
        %2819 = vmatprep.subr.mxu0 0.0
        %2820 = vmatpush1.msra.mxu0 %v1746
        %2821 = vmatprep.subr.mxu0 0.0
        %2822 = vmatpush1.msra.mxu0 %v1743
        %2823 = vmatprep.subr.mxu0 0.0
        %2824 = vmatpush1.msra.mxu0 %v1740
        %2825 = vmatprep.subr.mxu0 0.0
        %2826 = vmatpush1.msra.mxu0 %v1737
        %2827 = vmatprep.subr.mxu0 0.0
        %2828 = vmatpush1.msra.mxu0 %v1734
        %2829 = vmatprep.subr.mxu0 0.0
        %2830 = vmatpush1.msra.mxu0 %v1731
        %2831 = vmatprep.subr.mxu0 0.0
        %2832 = vmatpush1.msra.mxu0 %v1728
        %2833 = vmatprep.subr.mxu0 0.0
        %2834 = vmatpush1.msra.mxu0 %v1725
        %2835 = vmatprep.subr.mxu0 0.0
        %2836 = vmatpush1.msra.mxu0 %v1722
        %2837 = vmatprep.subr.mxu0 0.0
        %2838 = vmatpush1.msra.mxu0 %v1719
        %2839 = vmatprep.subr.mxu0 0.0
        %2840 = vmatpush2.msra.mxu0 0.0
        %2841 = vmatprep.subr.mxu0 0.0
        %2842 = vmatpush2.msra.mxu0 0.0
        %2843 = vmatprep.subr.mxu0 0.0
        %2844 = vmatpush2.msra.mxu0 0.0
        %2845 = vmatprep.subr.mxu0 0.0
        %2846 = vmatpush2.msra.mxu0 0.0
        %2847 = vmatprep.subr.mxu0 0.0
        %2848 = vmatpush2.msra.mxu0 0.0
        %2849 = vmatprep.subr.mxu0 0.0
        %2850 = vmatpush2.msra.mxu0 0.0
        %2851 = vmatprep.subr.mxu0 0.0
        %2852 = vmatpush2.msra.mxu0 0.0
        %2853 = vmatprep.subr.mxu0 0.0
        %2854 = vmatpush2.msra.mxu0 0.0
        %2855 = vmatprep.subr.mxu0 0.0
        %2856 = vmatpush2.msra.mxu0 0.0
        %2857 = vmatprep.subr.mxu0 0.0
        %2858 = vmatpush2.msra.mxu0 0.0
        %2859 = vmatprep.subr.mxu0 0.0
        %2860 = vmatpush2.msra.mxu0 0.0
        %2861 = vmatprep.subr.mxu0 0.0
        %2862 = vmatpush2.msra.mxu0 0.0
        %2863 = vmatprep.subr.mxu0 0.0
        %2864 = vmatpush2.msra.mxu0 0.0
        %2865 = vmatprep.subr.mxu0 0.0
        %2866 = vmatpush2.msra.mxu0 0.0
        %2867 = vmatprep.subr.mxu0 0.0
        %2868 = vmatpush2.msra.mxu0 0.0
        %2869 = vmatprep.subr.mxu0 0.0
        %2870 = vmatpush2.msra.mxu0 0.0
        %2871 = vmatprep.mubr.f32.mxu0 0.0
        %2872 = vmatmul.mubr.f32.gmra.mxu0 %v2734
        %v2873 = vpop.f32.mrf.mxu0
        %v2874 = vadd.f32 %v1684, %v2873
        %v2875 = vpop.f32.mrf.mxu0
        %2876 = vdwg.mxu0
        %v2877 = vxor.u32 %v2803, 2147483648
        %v2878 = vxor.u32 %v2805, 2147483648
        %v2879 = vxor.u32 %v2874, 2147483648
        %v2880 = vmul.f32 %v2877, 1.442695
        %v2881 = vpow.pop %v2880
        %v2882 = vmul.f32 %v2878, 1.442695
        %v2883 = vpow.pop %v2882
        %v2884 = vmul.f32 %v2879, 1.442695
        %v2885 = vpow.pop %v2884
        %v2886 = vadd.f32 %v2881, 1.0
        %v2887 = vadd.f32 %v2883, 1.0
        %v2888 = vadd.f32 %v2885, 1.0
        %v2889 = vrcp.pop %v2886
        %v2890 = vmul.f32 1.0, %v2889
        %v2891 = vrcp.pop %v2887
        %v2892 = vmul.f32 1.0, %v2891
        %v2893 = vrcp.pop %v2888
        %v2894 = vmul.f32 1.0, %v2893
        %v2895 = vtanh.pop %v2874
        %v2896 = vmul.f32 %v2890, %v2712
        %v2897 = vmul.f32 %v2892, %v2713
        %2899 = vrot.lane.b32.xlu0 %v2895, 96
        %v2900 = vpop.permute.xlu0 %2899
        %v2902 = vmul.f32 %v2890, %v2900
        %2904 = vrot.lane.b32.xlu0 %v2902, 96
        %v2905 = vpop.permute.xlu0 %2904
        %v2907 = vadd.f32 %v2896, %v2905
        %v2908 = vadd.f32 %v2897, %v2905
        %v2909 = vtanh.pop %v2907
        %v2910 = vtanh.pop %v2908
        %2913 = vrot.lane.b32.xlu0 %v2909, 96
        %v2914 = vpop.permute.xlu0 %2913
        %2915 = vrot.lane.b32.xlu0 %v2910, 96
        %v2916 = vpop.permute.xlu0 %2915
        %v2917 = vsel %vm1753, %v2914, %v2916
        %v2920 = vmul.f32 %v2892, %v2917
        %v2921 = vmul.f32 %v2894, %v2916
        %2924 = vrot.lane.b32.xlu0 %v2920, 64
        %v2925 = vpop.permute.xlu0 %2924
        %2926 = vrot.lane.b32.xlu0 %v2921, 64
        %v2927 = vpop.permute.xlu0 %2926
        %v2928 = vsel %vm500, %v2925, %v2927
        %v2929 = vsel %vm1753, %v2928, 0
        %2931 = vmatprep.subr.mxu0 0.0
        %2932 = vmatpush1.msra.mxu0 0.0
        %2933 = vmatprep.subr.mxu0 0.0
        %2934 = vmatpush1.msra.mxu0 0.0
        %2935 = vmatprep.subr.mxu0 0.0
        %2936 = vmatpush1.msra.mxu0 0.0
        %2937 = vmatprep.subr.mxu0 0.0
        %2938 = vmatpush1.msra.mxu0 0.0
        %2939 = vmatprep.subr.mxu0 %v1751
        %2940 = vmatpush1.msra.mxu0 %v1750
        %2941 = vmatprep.subr.mxu0 %v1748
        %2942 = vmatpush1.msra.mxu0 %v1747
        %2943 = vmatprep.subr.mxu0 %v1745
        %2944 = vmatpush1.msra.mxu0 %v1744
        %2945 = vmatprep.subr.mxu0 %v1742
        %2946 = vmatpush1.msra.mxu0 %v1741
        %2947 = vmatprep.subr.mxu0 %v1739
        %2948 = vmatpush1.msra.mxu0 %v1738
        %2949 = vmatprep.subr.mxu0 %v1736
        %2950 = vmatpush1.msra.mxu0 %v1735
        %2951 = vmatprep.subr.mxu0 %v1733
        %2952 = vmatpush1.msra.mxu0 %v1732
        %2953 = vmatprep.subr.mxu0 %v1730
        %2954 = vmatpush1.msra.mxu0 %v1729
        %2955 = vmatprep.subr.mxu0 %v1727
        %2956 = vmatpush1.msra.mxu0 %v1726
        %2957 = vmatprep.subr.mxu0 %v1724
        %2958 = vmatpush1.msra.mxu0 %v1723
        %2959 = vmatprep.subr.mxu0 %v1721
        %2960 = vmatpush1.msra.mxu0 %v1720
        %2961 = vmatprep.subr.mxu0 %v1718
        %2962 = vmatpush1.msra.mxu0 %v1717
        %2963 = vmatprep.subr.mxu0 0.0
        %2964 = vmatpush2.msra.mxu0 0.0
        %2965 = vmatprep.subr.mxu0 0.0
        %2966 = vmatpush2.msra.mxu0 0.0
        %2967 = vmatprep.subr.mxu0 0.0
        %2968 = vmatpush2.msra.mxu0 0.0
        %2969 = vmatprep.subr.mxu0 0.0
        %2970 = vmatpush2.msra.mxu0 0.0
        %2971 = vmatprep.subr.mxu0 0.0
        %2972 = vmatpush2.msra.mxu0 0.0
        %2973 = vmatprep.subr.mxu0 0.0
        %2974 = vmatpush2.msra.mxu0 0.0
        %2975 = vmatprep.subr.mxu0 0.0
        %2976 = vmatpush2.msra.mxu0 0.0
        %2977 = vmatprep.subr.mxu0 0.0
        %2978 = vmatpush2.msra.mxu0 0.0
        %2979 = vmatprep.subr.mxu0 0.0
        %2980 = vmatpush2.msra.mxu0 0.0
        %2981 = vmatprep.subr.mxu0 0.0
        %2982 = vmatpush2.msra.mxu0 0.0
        %2983 = vmatprep.subr.mxu0 0.0
        %2984 = vmatpush2.msra.mxu0 0.0
        %2985 = vmatprep.subr.mxu0 0.0
        %2986 = vmatpush2.msra.mxu0 0.0
        %2987 = vmatprep.subr.mxu0 0.0
        %2988 = vmatpush2.msra.mxu0 0.0
        %2989 = vmatprep.subr.mxu0 0.0
        %2990 = vmatpush2.msra.mxu0 0.0
        %2991 = vmatprep.subr.mxu0 0.0
        %2992 = vmatpush2.msra.mxu0 0.0
        %2993 = vmatprep.subr.mxu0 0.0
        %2994 = vmatpush2.msra.mxu0 0.0
        %2995 = vmatprep.mubr.f32.mxu0 0.0
        %2996 = vmatmul.mubr.f32.gmra.mxu0 %v2929
        %v2997 = vpop.f32.mrf.mxu0
        %v2998 = vadd.f32 %v1613, %v2997
        %v2999 = vpop.f32.mrf.mxu0
        %v3000 = vadd.f32 %v1615, %v2999
        %3001 = vdwg.mxu0
        %3002 = vmatprep.subr.mxu0 0.0
        %3003 = vmatpush1.msra.mxu0 0.0
        %3004 = vmatprep.subr.mxu0 0.0
        %3005 = vmatpush1.msra.mxu0 0.0
        %3006 = vmatprep.subr.mxu0 0.0
        %3007 = vmatpush1.msra.mxu0 0.0
        %3008 = vmatprep.subr.mxu0 0.0
        %3009 = vmatpush1.msra.mxu0 0.0
        %3010 = vmatprep.subr.mxu0 0.0
        %3011 = vmatpush1.msra.mxu0 %v1752
        %3012 = vmatprep.subr.mxu0 0.0
        %3013 = vmatpush1.msra.mxu0 %v1749
        %3014 = vmatprep.subr.mxu0 0.0
        %3015 = vmatpush1.msra.mxu0 %v1746
        %3016 = vmatprep.subr.mxu0 0.0
        %3017 = vmatpush1.msra.mxu0 %v1743
        %3018 = vmatprep.subr.mxu0 0.0
        %3019 = vmatpush1.msra.mxu0 %v1740
        %3020 = vmatprep.subr.mxu0 0.0
        %3021 = vmatpush1.msra.mxu0 %v1737
        %3022 = vmatprep.subr.mxu0 0.0
        %3023 = vmatpush1.msra.mxu0 %v1734
        %3024 = vmatprep.subr.mxu0 0.0
        %3025 = vmatpush1.msra.mxu0 %v1731
        %3026 = vmatprep.subr.mxu0 0.0
        %3027 = vmatpush1.msra.mxu0 %v1728
        %3028 = vmatprep.subr.mxu0 0.0
        %3029 = vmatpush1.msra.mxu0 %v1725
        %3030 = vmatprep.subr.mxu0 0.0
        %3031 = vmatpush1.msra.mxu0 %v1722
        %3032 = vmatprep.subr.mxu0 0.0
        %3033 = vmatpush1.msra.mxu0 %v1719
        %3034 = vmatprep.subr.mxu0 0.0
        %3035 = vmatpush2.msra.mxu0 0.0
        %3036 = vmatprep.subr.mxu0 0.0
        %3037 = vmatpush2.msra.mxu0 0.0
        %3038 = vmatprep.subr.mxu0 0.0
        %3039 = vmatpush2.msra.mxu0 0.0
        %3040 = vmatprep.subr.mxu0 0.0
        %3041 = vmatpush2.msra.mxu0 0.0
        %3042 = vmatprep.subr.mxu0 0.0
        %3043 = vmatpush2.msra.mxu0 0.0
        %3044 = vmatprep.subr.mxu0 0.0
        %3045 = vmatpush2.msra.mxu0 0.0
        %3046 = vmatprep.subr.mxu0 0.0
        %3047 = vmatpush2.msra.mxu0 0.0
        %3048 = vmatprep.subr.mxu0 0.0
        %3049 = vmatpush2.msra.mxu0 0.0
        %3050 = vmatprep.subr.mxu0 0.0
        %3051 = vmatpush2.msra.mxu0 0.0
        %3052 = vmatprep.subr.mxu0 0.0
        %3053 = vmatpush2.msra.mxu0 0.0
        %3054 = vmatprep.subr.mxu0 0.0
        %3055 = vmatpush2.msra.mxu0 0.0
        %3056 = vmatprep.subr.mxu0 0.0
        %3057 = vmatpush2.msra.mxu0 0.0
        %3058 = vmatprep.subr.mxu0 0.0
        %3059 = vmatpush2.msra.mxu0 0.0
        %3060 = vmatprep.subr.mxu0 0.0
        %3061 = vmatpush2.msra.mxu0 0.0
        %3062 = vmatprep.subr.mxu0 0.0
        %3063 = vmatpush2.msra.mxu0 0.0
        %3064 = vmatprep.subr.mxu0 0.0
        %3065 = vmatpush2.msra.mxu0 0.0
        %3066 = vmatprep.mubr.f32.mxu0 0.0
        %3067 = vmatmul.mubr.f32.gmra.mxu0 %v2929
        %v3068 = vpop.f32.mrf.mxu0
        %v3069 = vadd.f32 %v1684, %v3068
        %v3070 = vpop.f32.mrf.mxu0
        %3071 = vdwg.mxu0
        %v3072 = vxor.u32 %v2998, 2147483648
        %v3073 = vxor.u32 %v3000, 2147483648
        %v3074 = vxor.u32 %v3069, 2147483648
        %v3075 = vmul.f32 %v3072, 1.442695
        %v3076 = vpow.pop %v3075
        %v3077 = vmul.f32 %v3073, 1.442695
        %v3078 = vpow.pop %v3077
        %v3079 = vmul.f32 %v3074, 1.442695
        %v3080 = vpow.pop %v3079
        %v3081 = vadd.f32 %v3076, 1.0
        %v3082 = vadd.f32 %v3078, 1.0
        %v3083 = vadd.f32 %v3080, 1.0
        %v3084 = vrcp.pop %v3081
        %v3085 = vmul.f32 1.0, %v3084
        %v3086 = vrcp.pop %v3082
        %v3087 = vmul.f32 1.0, %v3086
        %v3088 = vrcp.pop %v3083
        %v3089 = vmul.f32 1.0, %v3088
        %v3090 = vtanh.pop %v3069
        %v3091 = vmul.f32 %v3085, %v2907
        %v3092 = vmul.f32 %v3087, %v2908
        %3094 = vrot.lane.b32.xlu0 %v3090, 96
        %v3095 = vpop.permute.xlu0 %3094
        %v3097 = vmul.f32 %v3085, %v3095
        %3099 = vrot.lane.b32.xlu0 %v3097, 96
        %v3100 = vpop.permute.xlu0 %3099
        %v3102 = vadd.f32 %v3091, %v3100
        %v3103 = vadd.f32 %v3092, %v3100
        %v3104 = vtanh.pop %v3102
        %v3105 = vtanh.pop %v3103
        %3108 = vrot.lane.b32.xlu0 %v3104, 96
        %v3109 = vpop.permute.xlu0 %3108
        %3110 = vrot.lane.b32.xlu0 %v3105, 96
        %v3111 = vpop.permute.xlu0 %3110
        %v3112 = vsel %vm1753, %v3109, %v3111
        %v3115 = vmul.f32 %v3087, %v3112
        %v3116 = vmul.f32 %v3089, %v3111
        %3119 = vrot.lane.b32.xlu0 %v3115, 64
        %v3120 = vpop.permute.xlu0 %3119
        %3121 = vrot.lane.b32.xlu0 %v3116, 64
        %v3122 = vpop.permute.xlu0 %3121
        %v3123 = vsel %vm500, %v3120, %v3122
        %v3124 = vsel %vm1753, %v3123, 0
        %3126 = vmatprep.subr.mxu0 0.0
        %3127 = vmatpush1.msra.mxu0 0.0
        %3128 = vmatprep.subr.mxu0 0.0
        %3129 = vmatpush1.msra.mxu0 0.0
        %3130 = vmatprep.subr.mxu0 0.0
        %3131 = vmatpush1.msra.mxu0 0.0
        %3132 = vmatprep.subr.mxu0 0.0
        %3133 = vmatpush1.msra.mxu0 0.0
        %3134 = vmatprep.subr.mxu0 %v1751
        %3135 = vmatpush1.msra.mxu0 %v1750
        %3136 = vmatprep.subr.mxu0 %v1748
        %3137 = vmatpush1.msra.mxu0 %v1747
        %3138 = vmatprep.subr.mxu0 %v1745
        %3139 = vmatpush1.msra.mxu0 %v1744
        %3140 = vmatprep.subr.mxu0 %v1742
        %3141 = vmatpush1.msra.mxu0 %v1741
        %3142 = vmatprep.subr.mxu0 %v1739
        %3143 = vmatpush1.msra.mxu0 %v1738
        %3144 = vmatprep.subr.mxu0 %v1736
        %3145 = vmatpush1.msra.mxu0 %v1735
        %3146 = vmatprep.subr.mxu0 %v1733
        %3147 = vmatpush1.msra.mxu0 %v1732
        %3148 = vmatprep.subr.mxu0 %v1730
        %3149 = vmatpush1.msra.mxu0 %v1729
        %3150 = vmatprep.subr.mxu0 %v1727
        %3151 = vmatpush1.msra.mxu0 %v1726
        %3152 = vmatprep.subr.mxu0 %v1724
        %3153 = vmatpush1.msra.mxu0 %v1723
        %3154 = vmatprep.subr.mxu0 %v1721
        %3155 = vmatpush1.msra.mxu0 %v1720
        %3156 = vmatprep.subr.mxu0 %v1718
        %3157 = vmatpush1.msra.mxu0 %v1717
        %3158 = vmatprep.subr.mxu0 0.0
        %3159 = vmatpush2.msra.mxu0 0.0
        %3160 = vmatprep.subr.mxu0 0.0
        %3161 = vmatpush2.msra.mxu0 0.0
        %3162 = vmatprep.subr.mxu0 0.0
        %3163 = vmatpush2.msra.mxu0 0.0
        %3164 = vmatprep.subr.mxu0 0.0
        %3165 = vmatpush2.msra.mxu0 0.0
        %3166 = vmatprep.subr.mxu0 0.0
        %3167 = vmatpush2.msra.mxu0 0.0
        %3168 = vmatprep.subr.mxu0 0.0
        %3169 = vmatpush2.msra.mxu0 0.0
        %3170 = vmatprep.subr.mxu0 0.0
        %3171 = vmatpush2.msra.mxu0 0.0
        %3172 = vmatprep.subr.mxu0 0.0
        %3173 = vmatpush2.msra.mxu0 0.0
        %3174 = vmatprep.subr.mxu0 0.0
        %3175 = vmatpush2.msra.mxu0 0.0
        %3176 = vmatprep.subr.mxu0 0.0
        %3177 = vmatpush2.msra.mxu0 0.0
        %3178 = vmatprep.subr.mxu0 0.0
        %3179 = vmatpush2.msra.mxu0 0.0
        %3180 = vmatprep.subr.mxu0 0.0
        %3181 = vmatpush2.msra.mxu0 0.0
        %3182 = vmatprep.subr.mxu0 0.0
        %3183 = vmatpush2.msra.mxu0 0.0
        %3184 = vmatprep.subr.mxu0 0.0
        %3185 = vmatpush2.msra.mxu0 0.0
        %3186 = vmatprep.subr.mxu0 0.0
        %3187 = vmatpush2.msra.mxu0 0.0
        %3188 = vmatprep.subr.mxu0 0.0
        %3189 = vmatpush2.msra.mxu0 0.0
        %3190 = vmatprep.mubr.f32.mxu0 0.0
        %3191 = vmatmul.mubr.f32.gmra.mxu0 %v3124
        %v3192 = vpop.f32.mrf.mxu0
        %v3193 = vadd.f32 %v1613, %v3192
        %v3194 = vpop.f32.mrf.mxu0
        %v3195 = vadd.f32 %v1615, %v3194
        %3196 = vdwg.mxu0
        %3197 = vmatprep.subr.mxu0 0.0
        %3198 = vmatpush1.msra.mxu0 0.0
        %3199 = vmatprep.subr.mxu0 0.0
        %3200 = vmatpush1.msra.mxu0 0.0
        %3201 = vmatprep.subr.mxu0 0.0
        %3202 = vmatpush1.msra.mxu0 0.0
        %3203 = vmatprep.subr.mxu0 0.0
        %3204 = vmatpush1.msra.mxu0 0.0
        %3205 = vmatprep.subr.mxu0 0.0
        %3206 = vmatpush1.msra.mxu0 %v1752
        %3207 = vmatprep.subr.mxu0 0.0
        %3208 = vmatpush1.msra.mxu0 %v1749
        %3209 = vmatprep.subr.mxu0 0.0
        %3210 = vmatpush1.msra.mxu0 %v1746
        %3211 = vmatprep.subr.mxu0 0.0
        %3212 = vmatpush1.msra.mxu0 %v1743
        %3213 = vmatprep.subr.mxu0 0.0
        %3214 = vmatpush1.msra.mxu0 %v1740
        %3215 = vmatprep.subr.mxu0 0.0
        %3216 = vmatpush1.msra.mxu0 %v1737
        %3217 = vmatprep.subr.mxu0 0.0
        %3218 = vmatpush1.msra.mxu0 %v1734
        %3219 = vmatprep.subr.mxu0 0.0
        %3220 = vmatpush1.msra.mxu0 %v1731
        %3221 = vmatprep.subr.mxu0 0.0
        %3222 = vmatpush1.msra.mxu0 %v1728
        %3223 = vmatprep.subr.mxu0 0.0
        %3224 = vmatpush1.msra.mxu0 %v1725
        %3225 = vmatprep.subr.mxu0 0.0
        %3226 = vmatpush1.msra.mxu0 %v1722
        %3227 = vmatprep.subr.mxu0 0.0
        %3228 = vmatpush1.msra.mxu0 %v1719
        %3229 = vmatprep.subr.mxu0 0.0
        %3230 = vmatpush2.msra.mxu0 0.0
        %3231 = vmatprep.subr.mxu0 0.0
        %3232 = vmatpush2.msra.mxu0 0.0
        %3233 = vmatprep.subr.mxu0 0.0
        %3234 = vmatpush2.msra.mxu0 0.0
        %3235 = vmatprep.subr.mxu0 0.0
        %3236 = vmatpush2.msra.mxu0 0.0
        %3237 = vmatprep.subr.mxu0 0.0
        %3238 = vmatpush2.msra.mxu0 0.0
        %3239 = vmatprep.subr.mxu0 0.0
        %3240 = vmatpush2.msra.mxu0 0.0
        %3241 = vmatprep.subr.mxu0 0.0
        %3242 = vmatpush2.msra.mxu0 0.0
        %3243 = vmatprep.subr.mxu0 0.0
        %3244 = vmatpush2.msra.mxu0 0.0
        %3245 = vmatprep.subr.mxu0 0.0
        %3246 = vmatpush2.msra.mxu0 0.0
        %3247 = vmatprep.subr.mxu0 0.0
        %3248 = vmatpush2.msra.mxu0 0.0
        %3249 = vmatprep.subr.mxu0 0.0
        %3250 = vmatpush2.msra.mxu0 0.0
        %3251 = vmatprep.subr.mxu0 0.0
        %3252 = vmatpush2.msra.mxu0 0.0
        %3253 = vmatprep.subr.mxu0 0.0
        %3254 = vmatpush2.msra.mxu0 0.0
        %3255 = vmatprep.subr.mxu0 0.0
        %3256 = vmatpush2.msra.mxu0 0.0
        %3257 = vmatprep.subr.mxu0 0.0
        %3258 = vmatpush2.msra.mxu0 0.0
        %3259 = vmatprep.subr.mxu0 0.0
        %3260 = vmatpush2.msra.mxu0 0.0
        %3261 = vmatprep.mubr.f32.mxu0 0.0
        %3262 = vmatmul.mubr.f32.gmra.mxu0 %v3124
        %v3263 = vpop.f32.mrf.mxu0
        %v3264 = vadd.f32 %v1684, %v3263
        %v3265 = vpop.f32.mrf.mxu0
        %3266 = vdwg.mxu0
        %v3267 = vxor.u32 %v3193, 2147483648
        %v3268 = vxor.u32 %v3195, 2147483648
        %v3269 = vxor.u32 %v3264, 2147483648
        %v3270 = vmul.f32 %v3267, 1.442695
        %v3271 = vpow.pop %v3270
        %v3272 = vmul.f32 %v3268, 1.442695
        %v3273 = vpow.pop %v3272
        %v3274 = vmul.f32 %v3269, 1.442695
        %v3275 = vpow.pop %v3274
        %v3276 = vadd.f32 %v3271, 1.0
        %v3277 = vadd.f32 %v3273, 1.0
        %v3278 = vadd.f32 %v3275, 1.0
        %v3279 = vrcp.pop %v3276
        %v3280 = vmul.f32 1.0, %v3279
        %v3281 = vrcp.pop %v3277
        %v3282 = vmul.f32 1.0, %v3281
        %v3283 = vrcp.pop %v3278
        %v3284 = vmul.f32 1.0, %v3283
        %v3285 = vtanh.pop %v3264
        %v3286 = vmul.f32 %v3280, %v3102
        %v3287 = vmul.f32 %v3282, %v3103
        %3289 = vrot.lane.b32.xlu0 %v3285, 96
        %v3290 = vpop.permute.xlu0 %3289
        %v3292 = vmul.f32 %v3280, %v3290
        %3294 = vrot.lane.b32.xlu0 %v3292, 96
        %v3295 = vpop.permute.xlu0 %3294
        %v3297 = vadd.f32 %v3286, %v3295
        %v3298 = vadd.f32 %v3287, %v3295
        %v3299 = vtanh.pop %v3297
        %v3300 = vtanh.pop %v3298
        %3303 = vrot.lane.b32.xlu0 %v3299, 96
        %v3304 = vpop.permute.xlu0 %3303
        %3305 = vrot.lane.b32.xlu0 %v3300, 96
        %v3306 = vpop.permute.xlu0 %3305
        %v3307 = vsel %vm1753, %v3304, %v3306
        %v3310 = vmul.f32 %v3282, %v3307
        %v3311 = vmul.f32 %v3284, %v3306
        %v3312 = vld [vmem:[%s9] sm:$0xff]
        %v3313 = vld [vmem:[%s9 + $0x8] sm:$0xff]
        %v3314 = vld [vmem:[%s9 + $0x10] sm:$0xff]
        %v3315 = vld [vmem:[%s9 + $0x18] sm:$0xff]
        %v3316 = vld [vmem:[%s9 + $0x20] sm:$0xff]
        %v3317 = vld [vmem:[%s9 + $0x28] sm:$0xff]
        %v3318 = vld [vmem:[%s9 + $0x30] sm:$0xff]
        %v3319 = vld [vmem:[%s9 + $0x38] sm:$0xff]
        %v3320 = vld [vmem:[%s9 + $0x40] sm:$0xff]
        %v3321 = vld [vmem:[%s9 + $0x48] sm:$0xff]
        %v3322 = vld [vmem:[%s9 + $0x50] sm:$0xff]
        %v3323 = vld [vmem:[%s9 + $0x58] sm:$0xff]
        %v3324 = vld [vmem:[#allocation2] sm:$0x1]
        %v3326 = vlaneseq
        %v3327 = vshrl.u32 %v3326, 7
        %v3328 = vsub.s32 0, %v3327
        %v3329 = vrot.slane %v3324, %v3328
        %3333 = vrot.lane.b32.xlu0 %v3310, 64
        %v3334 = vpop.permute.xlu0 %3333
        %3335 = vrot.lane.b32.xlu0 %v3311, 64
        %v3336 = vpop.permute.xlu0 %3335
        %v3337 = vsel %vm500, %v3334, %v3336
        %v3338 = vsel %vm1753, %v3337, 0
        %3340 = vmatprep.subr.mxu0 0.0
        %3341 = vmatpush1.msra.mxu0 0.0
        %3342 = vmatprep.subr.mxu0 0.0
        %3343 = vmatpush1.msra.mxu0 0.0
        %3344 = vmatprep.subr.mxu0 0.0
        %3345 = vmatpush1.msra.mxu0 0.0
        %3346 = vmatprep.subr.mxu0 0.0
        %3347 = vmatpush1.msra.mxu0 0.0
        %3348 = vmatprep.subr.mxu0 0.0
        %3349 = vmatpush1.msra.mxu0 %v3323
        %3350 = vmatprep.subr.mxu0 0.0
        %3351 = vmatpush1.msra.mxu0 %v3322
        %3352 = vmatprep.subr.mxu0 0.0
        %3353 = vmatpush1.msra.mxu0 %v3321
        %3354 = vmatprep.subr.mxu0 0.0
        %3355 = vmatpush1.msra.mxu0 %v3320
        %3356 = vmatprep.subr.mxu0 0.0
        %3357 = vmatpush1.msra.mxu0 %v3319
        %3358 = vmatprep.subr.mxu0 0.0
        %3359 = vmatpush1.msra.mxu0 %v3318
        %3360 = vmatprep.subr.mxu0 0.0
        %3361 = vmatpush1.msra.mxu0 %v3317
        %3362 = vmatprep.subr.mxu0 0.0
        %3363 = vmatpush1.msra.mxu0 %v3316
        %3364 = vmatprep.subr.mxu0 0.0
        %3365 = vmatpush1.msra.mxu0 %v3315
        %3366 = vmatprep.subr.mxu0 0.0
        %3367 = vmatpush1.msra.mxu0 %v3314
        %3368 = vmatprep.subr.mxu0 0.0
        %3369 = vmatpush1.msra.mxu0 %v3313
        %3370 = vmatprep.subr.mxu0 0.0
        %3371 = vmatpush1.msra.mxu0 %v3312
        %3372 = vmatprep.subr.mxu0 0.0
        %3373 = vmatpush2.msra.mxu0 0.0
        %3374 = vmatprep.subr.mxu0 0.0
        %3375 = vmatpush2.msra.mxu0 0.0
        %3376 = vmatprep.subr.mxu0 0.0
        %3377 = vmatpush2.msra.mxu0 0.0
        %3378 = vmatprep.subr.mxu0 0.0
        %3379 = vmatpush2.msra.mxu0 0.0
        %3380 = vmatprep.subr.mxu0 0.0
        %3381 = vmatpush2.msra.mxu0 0.0
        %3382 = vmatprep.subr.mxu0 0.0
        %3383 = vmatpush2.msra.mxu0 0.0
        %3384 = vmatprep.subr.mxu0 0.0
        %3385 = vmatpush2.msra.mxu0 0.0
        %3386 = vmatprep.subr.mxu0 0.0
        %3387 = vmatpush2.msra.mxu0 0.0
        %3388 = vmatprep.subr.mxu0 0.0
        %3389 = vmatpush2.msra.mxu0 0.0
        %3390 = vmatprep.subr.mxu0 0.0
        %3391 = vmatpush2.msra.mxu0 0.0
        %3392 = vmatprep.subr.mxu0 0.0
        %3393 = vmatpush2.msra.mxu0 0.0
        %3394 = vmatprep.subr.mxu0 0.0
        %3395 = vmatpush2.msra.mxu0 0.0
        %3396 = vmatprep.subr.mxu0 0.0
        %3397 = vmatpush2.msra.mxu0 0.0
        %3398 = vmatprep.subr.mxu0 0.0
        %3399 = vmatpush2.msra.mxu0 0.0
        %3400 = vmatprep.subr.mxu0 0.0
        %3401 = vmatpush2.msra.mxu0 0.0
        %3402 = vmatprep.subr.mxu0 0.0
        %3403 = vmatpush2.msra.mxu0 0.0
        %3404 = vmatprep.mubr.f32.mxu0 0.0
        %3405 = vmatmul.mubr.f32.gmra.mxu0 %v1954
        %v3406 = vpop.f32.mrf.mxu0
        %v3407 = vadd.f32 %v3329, %v3406
        %v3408 = vpop.f32.mrf.mxu0
        %3409 = vmatprep.mubr.f32.mxu0 0.0
        %3410 = vmatmul.mubr.f32.gmra.mxu0 %v2149
        %v3411 = vpop.f32.mrf.mxu0
        %v3412 = vadd.f32 %v3329, %v3411
        %v3413 = vpop.f32.mrf.mxu0
        %3414 = vmatprep.mubr.f32.mxu0 0.0
        %3415 = vmatmul.mubr.f32.gmra.mxu0 %v2344
        %v3416 = vpop.f32.mrf.mxu0
        %v3417 = vadd.f32 %v3329, %v3416
        %v3418 = vpop.f32.mrf.mxu0
        %3419 = vmatprep.mubr.f32.mxu0 0.0
        %3420 = vmatmul.mubr.f32.gmra.mxu0 %v2539
        %v3421 = vpop.f32.mrf.mxu0
        %v3422 = vadd.f32 %v3329, %v3421
        %v3423 = vpop.f32.mrf.mxu0
        %3424 = vmatprep.mubr.f32.mxu0 0.0
        %3425 = vmatmul.mubr.f32.gmra.mxu0 %v2734
        %v3426 = vpop.f32.mrf.mxu0
        %v3427 = vadd.f32 %v3329, %v3426
        %v3428 = vpop.f32.mrf.mxu0
        %3429 = vmatprep.mubr.f32.mxu0 0.0
        %3430 = vmatmul.mubr.f32.gmra.mxu0 %v2929
        %v3431 = vpop.f32.mrf.mxu0
        %v3432 = vadd.f32 %v3329, %v3431
        %v3433 = vpop.f32.mrf.mxu0
        %3434 = vmatprep.mubr.f32.mxu0 0.0
        %3435 = vmatmul.mubr.f32.gmra.mxu0 %v3124
        %v3436 = vpop.f32.mrf.mxu0
        %v3437 = vadd.f32 %v3329, %v3436
        %v3438 = vpop.f32.mrf.mxu0
        %3439 = vmatprep.mubr.f32.mxu0 0.0
        %3440 = vmatmul.mubr.f32.gmra.mxu0 %v3338
        %v3441 = vpop.f32.mrf.mxu0
        %v3442 = vadd.f32 %v3329, %v3441
        %v3443 = vpop.f32.mrf.mxu0
        %3444 = vdwg.mxu0
        %vm3445 = vcmask 7168
        %3446 = vst.msk [vmem:[%s449] sm:$0xff] %vm3445, %v3407
        %3447 = vst.msk [vmem:[%s449 + $0x8] sm:$0xff] %vm3445, %v3412
        %3448 = vst.msk [vmem:[%s449 + $0x10] sm:$0xff] %vm3445, %v3417
        %3449 = vst.msk [vmem:[%s449 + $0x18] sm:$0xff] %vm3445, %v3422
        %3450 = vst.msk [vmem:[%s449 + $0x20] sm:$0xff] %vm3445, %v3427
        %3451 = vst.msk [vmem:[%s449 + $0x28] sm:$0xff] %vm3445, %v3432
        %3452 = vst.msk [vmem:[%s449 + $0x30] sm:$0xff] %vm3445, %v3437
        %3453 = vst.msk [vmem:[%s449 + $0x38] sm:$0xff] %vm3445, %v3442
        %p3454 = scmp.lt.s32.totalorder %s29, 1
        %s3455 = scalar_select %p3454, %s29, 1
        %s3456 = smul.addr %s3455, 8
        %s3457 = smul.addr %s3456, 8
        %s3458 = scalar_lea.vmem %s11, %s3457
        // Predicated region
        $region81: #{tpu_custom_call.1} parent=63 // pred_check
          %p3459 = pneg %p283
        $region82: #{tpu_custom_call.1} parent=63 // pred_check_branch
          %3461 = sbr.rel (%p3459) target = $region84
        $region83: #{tpu_custom_call.1} parent=63 // pred_region
          _
        $region84: #{tpu_custom_call.1} parent=63 // pred_fallthru
          _
      $region64: #{tpu_custom_call.1} parent=5 // pred_fallthru
        _
      %p3462 = scmp.le.s32.totalorder 2, %s24
      // Predicated region
      $region85: #{tpu_custom_call.1} parent=5 // pred_check
        %p3463 = pneg %p3462
      $region86: #{tpu_custom_call.1} parent=5 // pred_check_branch
        %3465 = sbr.rel (%p3463) target = $region88
      $region87: #{tpu_custom_call.1} parent=5 // pred_region
        %s3466 = ssub.s32 %s24, 2
        // Predicated region
        $region89: #{tpu_custom_call.1} parent=87 // pred_check
          %p3467 = pneg %p289
        $region90: #{tpu_custom_call.1} parent=87 // pred_check_branch
          %3469 = sbr.rel (%p3467) target = $region92
        $region91: #{tpu_custom_call.1} parent=87 // pred_region
          %p3470 = scmp.lt.s32.totalorder %s30, 1
          %s3471 = scalar_select %p3470, %s30, 1
          %s3472 = smul.addr %s3471, 8
          %s3473 = smul.addr %s3472, 8
          %s3474 = scalar_lea.vmem %s11, %s3473
        $region92: #{tpu_custom_call.1} parent=87 // pred_fallthru
          _
      $region88: #{tpu_custom_call.1} parent=5 // pred_fallthru
        _
    $region6: #{tpu_custom_call.1} parent=1 // loop_footer
      %s28 = sadd.s32 1, %s24
    $region7: #{tpu_custom_call.1} parent=1 // loop_footer_branch
      %23 = sbr.rel target = $region3
    $region8: #{tpu_custom_call.1} parent=1 // loop_exit
      _
    %3475 = vsyncpa [#allocation4], 1
    %s3476 = scalar_lea.sflag [#allocation4], 1
    %3477 = vsyncpa %s3476, 1
    %3478 = vsyncpa [#allocation6], 1
    %3479 = vsyncpa [#allocation9], 1

</llo_original>
